<compile_context>
chip_gen: v7x
topology: tpu7x:2x2x1
jax: 0.10.0
libtpu: 0.0.40
codegen_flags: <defaults>
</compile_context>

<pallas_src>
import functools

import jax
import jax.numpy as jnp
from jax import lax
from jax.experimental import pallas as pl
from jax.experimental.pallas import tpu as pltpu


_MAX_ROW_TILE = 1024  # rows per block for row-tiled kernels (multiple of 8)


def _resident(a):
    """Whole-array block, constant index map (weights/scales resident in VMEM). 1-D grids only."""
    return pl.BlockSpec(a.shape, lambda i, _nd=a.ndim: (0,) * _nd)


def _row_tile(M):
    return M if M <= _MAX_ROW_TILE else _MAX_ROW_TILE


def _pick_chunk(T, max_chunk=32):
    tc = min(T, max_chunk)
    while T % tc != 0:
        tc -= 1
    return tc


# ----------------------------- PreNet: fused Linear+ReLU x2 -----------------------------
def _prenet_kernel(x_ref, w1_ref, b1_ref, w2_ref, b2_ref, o_ref):
    # TODO(synk): PreNet dropout after each ReLU is identity in eval mode.
    x = x_ref[...].astype(jnp.bfloat16)
    h1 = jnp.maximum(
        jnp.dot(x, w1_ref[...], preferred_element_type=jnp.float32) + b1_ref[...], 0.0)
    h2 = jnp.maximum(
        jnp.dot(h1.astype(jnp.bfloat16), w2_ref[...], preferred_element_type=jnp.float32)
        + b2_ref[...], 0.0)
    o_ref[...] = h2.astype(o_ref.dtype)


def prenet(x2d, w1, b1, w2, b2):
    M, E = x2d.shape
    Hout = w2.shape[1]
    tile = _row_tile(M)
    return pl.pallas_call(
        _prenet_kernel,
        out_shape=jax.ShapeDtypeStruct((M, Hout), jnp.bfloat16),
        grid=(pl.cdiv(M, tile),),
        in_specs=[pl.BlockSpec((tile, E), lambda i: (i, 0)),
                  _resident(w1), _resident(b1), _resident(w2), _resident(b2)],
        out_specs=pl.BlockSpec((tile, Hout), lambda i: (i, 0)),
        compiler_params=pltpu.CompilerParams(dimension_semantics=("parallel",)),
    )(x2d, w1, b1, w2, b2)


# ---------- fused conv section: bank(K)+BN+ReLU -> maxpool -> conv3+BN+ReLU -> conv3+BN+res ----------
def _cbhg_conv_kernel(x_ref, wbank_ref, bsc_ref, bsh_ref,
                      w1_ref, s1_ref, sh1_ref, w2_ref, s2_ref, sh2_ref,
                      o_ref, xpad, ppad, y1pad, *, K):
    T, H = x_ref.shape
    G = wbank_ref.shape[0]          # = ceil(K/2) paired offsets
    KH = wbank_ref.shape[2]
    PL = K // 2
    R = xpad.shape[0]               # = T + 2*G - 1
    bf16 = jnp.bfloat16

    # --- 'same' padding scratch for the bank: zero ONLY the pad rows ---
    if PL > 0:
        xpad[0:PL, :] = jnp.zeros((PL, H), bf16)
    tail = R - (PL + T)
    if tail > 0:
        xpad[PL + T:R, :] = jnp.zeros((tail, H), bf16)
    xpad[PL:PL + T, :] = x_ref[...]

    # --- Conv1d bank: adjacent time offsets paired -> 2H-deep MXU contraction per dot ---
    # TODO(synk): the offset-packed bank weight still carries zero-column MACs at large K;
    # restricting each offset to its nonzero branch-column range would recover them.
    def pair_lhs(g):
        return jnp.concatenate(
            [xpad[2 * g:2 * g + T, :], xpad[2 * g + 1:2 * g + 1 + T, :]], axis=1)

    acc = jnp.dot(pair_lhs(0), wbank_ref[0], preferred_element_type=jnp.float32)
    for g in range(1, G):
        acc = acc + jnp.dot(pair_lhs(g), wbank_ref[g], preferred_element_type=jnp.float32)
    bank = jnp.maximum(acc * bsc_ref[...] + bsh_ref[...], 0.0)

    # --- max_pool1d(kernel=2, stride=1, 'same'): out[t] = max(x[t], x[t+1]), zero right pad.
    # TODO(synk): pooling window convention assumed; post-ReLU inputs make the pad inert.
    # Pooled rows go straight into conv1's padded scratch (rows 1..T), already cast to bf16.
    ppad[0:1, :] = jnp.zeros((1, KH), bf16)
    ppad[T + 1:T + 2, :] = jnp.zeros((1, KH), bf16)
    if T > 1:
        ppad[1:T, :] = jnp.maximum(bank[0:T - 1, :], bank[1:T, :]).astype(bf16)
    ppad[T:T + 1, :] = bank[T - 1:T, :].astype(bf16)

    # --- Conv1d(k=3) + BN1 + ReLU (KH-deep contraction already fills the MXU) ---
    acc1 = jnp.dot(ppad[0:T, :], w1_ref[0], preferred_element_type=jnp.float32)
    acc1 = acc1 + jnp.dot(ppad[1:T + 1, :], w1_ref[1], preferred_element_type=jnp.float32)
    acc1 = acc1 + jnp.dot(ppad[2:T + 2, :], w1_ref[2], preferred_element_type=jnp.float32)
    y1 = jnp.maximum(acc1 * s1_ref[...] + sh1_ref[...], 0.0)

    # --- Conv1d(k=3) + BN2 + residual: the 3 taps packed into one 3H-deep dot ---
    y1pad[0:1, :] = jnp.zeros((1, H), bf16)
    y1pad[T + 1:T + 2, :] = jnp.zeros((1, H), bf16)
    y1pad[1:T + 1, :] = y1.astype(bf16)
    lhs2 = jnp.concatenate([y1pad[0:T, :], y1pad[1:T + 1, :], y1pad[2:T + 2, :]], axis=1)
    acc2 = jnp.dot(lhs2, w2_ref[...], preferred_element_type=jnp.float32)
    o_ref[...] = (acc2 * s2_ref[...] + sh2_ref[...] + x_ref[...]).astype(o_ref.dtype)


def cbhg_conv_section(pre, wbank, bsc, bsh, w1, s1, sh1, w2, s2, sh2, K):
    N, T, H = pre.shape
    G = wbank.shape[0]
    KH = wbank.shape[2]
    R = T + 2 * G - 1
    kernel = functools.partial(_cbhg_conv_kernel, K=K)
    return pl.pallas_call(
        kernel,
        out_shape=jax.ShapeDtypeStruct((N, T, H), jnp.bfloat16),
        grid=(N,),
        in_specs=[pl.BlockSpec((None, T, H), lambda n: (n, 0, 0)),
                  _resident(wbank), _resident(bsc), _resident(bsh),
                  _resident(w1), _resident(s1), _resident(sh1),
                  _resident(w2), _resident(s2), _resident(sh2)],
        out_specs=pl.BlockSpec((None, T, H), lambda n: (n, 0, 0)),
        scratch_shapes=[pltpu.VMEM((R, H), jnp.bfloat16),
                        pltpu.VMEM((T + 2, KH), jnp.bfloat16),
                        pltpu.VMEM((T + 2, H), jnp.bfloat16)],
        compiler_params=pltpu.CompilerParams(
            dimension_semantics=("parallel",),
            vmem_limit_bytes=48 * 1024 * 1024),
    )(pre, wbank, bsc, bsh, w1, s1, sh1, w2, s2, sh2)


# --------------------------------- Highway stack (all layers fused) ---------------------------------
def _highway_stack_kernel(x_ref, w_ref, b_ref, o_ref):
    num_layers, H, _ = w_ref.shape
    x = x_ref[...].astype(jnp.float32)
    for l in range(num_layers):  # static loop; fused [H,2H] weights stay resident in VMEM
        g = jnp.dot(x.astype(jnp.bfloat16), w_ref[l],
                    preferred_element_type=jnp.float32) + b_ref[l]
        h = jnp.maximum(g[:, 0:H], 0.0)
        t = jax.nn.sigmoid(g[:, H:2 * H])
        x = h * t + x * (1.0 - t)
    o_ref[...] = x.astype(o_ref.dtype)


def highway_stack(x2d, wcat, bcat):
    M, H = x2d.shape
    tile = _row_tile(M)
    return pl.pallas_call(
        _highway_stack_kernel,
        out_shape=jax.ShapeDtypeStruct((M, H), jnp.bfloat16),
        grid=(pl.cdiv(M, tile),),
        in_specs=[pl.BlockSpec((tile, H), lambda i: (i, 0)),
                  _resident(wcat), _resident(bcat)],
        out_specs=pl.BlockSpec((tile, H), lambda i: (i, 0)),
        compiler_params=pltpu.CompilerParams(dimension_semantics=("parallel",)),
    )(x2d, wcat, bcat)


# ------------------- GRU input projections: both directions, direction-stacked output -------------------
def dense_bidir(xs, ws, b_stacked, out_dtype=jnp.bfloat16):
    """xs: list of [M, Din_j]; ws: list of [2, Din_j, Dout] (bf16); b_stacked: [2, 1, Dout] f32.
    Returns [2, M, Dout] = sum_j xs[j] @ ws[j][dir] + b[dir]."""
    n_in = len(xs)
    M = xs[0].shape[0]
    Dout = ws[0].shape[2]
    tile = _row_tile(M)

    def kernel(*refs):
        x_refs = refs[:n_in]
        w_refs = refs[n_in:2 * n_in]
        b_ref = refs[2 * n_in]
        o_ref = refs[2 * n_in + 1]
        acc = jnp.dot(x_refs[0][...].astype(jnp.bfloat16), w_refs[0][...],
                      preferred_element_type=jnp.float32)
        for j in range(1, n_in):
            acc = acc + jnp.dot(x_refs[j][...].astype(jnp.bfloat16), w_refs[j][...],
                                preferred_element_type=jnp.float32)
        o_ref[...] = (acc + b_ref[...]).astype(o_ref.dtype)

    in_specs = ([pl.BlockSpec((tile, x.shape[1]), lambda i, d: (i, 0)) for x in xs]
                + [pl.BlockSpec((None, w.shape[1], Dout), lambda i, d: (d, 0, 0)) for w in ws]
                + [pl.BlockSpec((None, 1, Dout), lambda i, d: (d, 0, 0))])
    return pl.pallas_call(
        kernel,
        out_shape=jax.ShapeDtypeStruct((2, M, Dout), out_dtype),
        grid=(pl.cdiv(M, tile), 2),
        in_specs=in_specs,
        out_specs=pl.BlockSpec((None, tile, Dout), lambda i, d: (d, i, 0)),
        compiler_params=pltpu.CompilerParams(dimension_semantics=("parallel", "parallel")),
    )(*xs, *ws, b_stacked)


# ----------------- bidirectional GRU recurrence: direction-parallel grid, time-chunk streaming -----------------
def _bigru_kernel(xp_ref, whh_ref, bhh_ref, y_ref, hT_ref, h_scr):
    # xp_ref: [tc, N, 3H] bf16 chunk for the current direction (already contains bih);
    # gate order [r | z | n].  Direction d=0 consumes chunks forward in time, d=1 backward.
    tc, N, threeH = xp_ref.shape
    H = threeH // 3
    d = pl.program_id(0)
    c = pl.program_id(1)

    @pl.when(c == 0)
    def _():
        h_scr[...] = jnp.zeros_like(h_scr)  # prev_hidden=None -> zeros

    whh = whh_ref[...]   # [H, 3H] bf16
    bhh = bhh_ref[...]   # [1, 3H] f32
    rev = d == 1

    def step(i, h):
        ti = jnp.where(rev, tc - 1 - i, i)                          # local time within chunk
        gx = xp_ref[ti]                                             # [N, 3H] bf16
        gh = jnp.dot(h.astype(jnp.bfloat16), whh,
                     preferred_element_type=jnp.float32) + bhh      # [N, 3H] f32
        r = jax.nn.sigmoid(gx[:, 0:H] + gh[:, 0:H])
        z = jax.nn.sigmoid(gx[:, H:2 * H] + gh[:, H:2 * H])
        n = jnp.tanh(gx[:, 2 * H:3 * H] + r * gh[:, 2 * H:3 * H])
        h_new = (1.0 - z) * n + z * h
        y_ref[ti] = h_new.astype(y_ref.dtype)
        return h_new

    h_fin = lax.fori_loop(0, tc, step, h_scr[...])
    h_scr[...] = h_fin       # carry to the next chunk
    hT_ref[...] = h_fin      # resident across chunks; last chunk's value persists


def bigru_recurrence(xp, whh_stacked, bhh_stacked, out_dtype=jnp.float32):
    # xp: [2, T, N, 3H] bf16 (dir 0 = fwd, dir 1 = bwd).  Returns y [2, T, N, H], hT [2, N, H].
    _, T, N, threeH = xp.shape
    H = threeH // 3
    tc = _pick_chunk(T)
    nc = T // tc

    def t_map(d, c):
        cc = d * (nc - 1 - c) + (1 - d) * c   # fwd walks chunks forward, bwd backward
        return (d, cc, 0, 0)

    return pl.pallas_call(
        _bigru_kernel,
        out_shape=(jax.ShapeDtypeStruct((2, T, N, H), out_dtype),
                   jax.ShapeDtypeStruct((2, N, H), jnp.float32)),
        grid=(2, nc),
        in_specs=[pl.BlockSpec((None, tc, N, threeH), t_map),
                  pl.BlockSpec((None, H, threeH), lambda d, c: (d, 0, 0)),
                  pl.BlockSpec((None, 1, threeH), lambda d, c: (d, 0, 0))],
        out_specs=(pl.BlockSpec((None, tc, N, H), t_map),
                   pl.BlockSpec((None, N, H), lambda d, c: (d, 0, 0))),
        scratch_shapes=[pltpu.VMEM((N, H), jnp.float32)],
        compiler_params=pltpu.CompilerParams(
            dimension_semantics=("parallel", "arbitrary"),
            vmem_limit_bytes=32 * 1024 * 1024),
    )(xp, whh_stacked, bhh_stacked)


# ------------------------------------ parameters / host-side prep ------------------------------------
def _uniform(key, shape, scale=0.25):
    return jax.random.uniform(key, shape, jnp.float32, -scale, scale)


def init_params(key, hp):
    E, K, NH = hp["E"], hp["K"], hp["num_highways"]
    H = E // 2
    keys = iter(jax.random.split(key, 256))
    nk = lambda: next(keys)

    def bn(num):
        return dict(
            gamma=1.0 + _uniform(nk(), (num,), 0.2),
            beta=_uniform(nk(), (num,), 0.2),
            mean=_uniform(nk(), (num,), 0.2),
            var=1.0 + _uniform(nk(), (num,), 0.2),
        )

    p = {}
    p["pre_w1"], p["pre_b1"] = _uniform(nk(), (E, E)), _uniform(nk(), (E,))
    p["pre_w2"], p["pre_b2"] = _uniform(nk(), (E, H)), _uniform(nk(), (H,))
    p["bank_w"] = [_uniform(nk(), (k, H, H)) for k in range(1, K + 1)]
    p["bank_b"] = [_uniform(nk(), (H,)) for _ in range(K)]
    p["bank_bn"] = bn(K * H)
    p["c1_w"], p["c1_b"] = _uniform(nk(), (3, K * H, H)), _uniform(nk(), (H,))
    p["bn1"] = bn(H)
    p["c2_w"], p["c2_b"] = _uniform(nk(), (3, H, H)), _uniform(nk(), (H,))
    p["bn2"] = bn(H)
    p["hw"] = [
        dict(
            w1=_uniform(nk(), (H, H)), b1=_uniform(nk(), (H,)),
            w2=_uniform(nk(), (H, H)), b2=_uniform(nk(), (H,)),
        )
        for _ in range(NH)
    ]
    gru = []
    for layer in range(2):
        din = H if layer == 0 else 2 * H
        gru.append(
            [
                dict(
                    wih=_uniform(nk(), (din, 3 * H)), bih=_uniform(nk(), (3 * H,)),
                    whh=_uniform(nk(), (H, 3 * H)), bhh=_uniform(nk(), (3 * H,)),
                )
                for _ in range(2)
            ]
        )
    p["gru"] = gru
    return p


def _bn_fold(bn, conv_bias, eps=1e-5):
    scale = bn["gamma"] / jnp.sqrt(bn["var"] + eps)
    shift = bn["beta"] - bn["mean"] * scale + conv_bias * scale
    return scale, shift


def _pack_bank_weights_paired(bank_w, K, H):
    # Per absolute time offset d (d = relative offset + K//2):
    # Wpack[d, :, (k-1)*H:k*H] = w_k[j] where branch-k tap j has relative offset j - k//2
    # ('same' padding, truncate-to-first-T for even k — same convention as before).
    # Adjacent offsets (2g, 2g+1) are then stacked along the contraction dim -> [G, 2H, K*H].
    G = (K + 1) // 2
    wp = jnp.zeros((2 * G, H, K * H), jnp.float32)
    for k in range(1, K + 1):
        for j in range(k):
            d = j - (k // 2) + (K // 2)
            wp = wp.at[d, :, (k - 1) * H:k * H].set(bank_w[k - 1][j])
    return wp.reshape(G, 2 * H, K * H).astype(jnp.bfloat16)


# ------------------------------------------- forward pass --------------------------------------------
def encoder_forward(x, p, hp):
    N, T, E = x.shape
    H = E // 2
    K = hp["K"]
    eps = 1e-5

    # ---- PreNet (two Linear+ReLU fused), bf16 output ----
    pre = prenet(
        x.reshape(N * T, E),
        p["pre_w1"].astype(jnp.bfloat16), p["pre_b1"].reshape(1, E),
        p["pre_w2"].astype(jnp.bfloat16), p["pre_b2"].reshape(1, H),
    ).reshape(N, T, H)

    # ---- conv bank + BN + ReLU + maxpool + conv1+BN1+ReLU + conv2+BN2 + residual (one kernel) ----
    bank_scale = p["bank_bn"]["gamma"] / jnp.sqrt(p["bank_bn"]["var"] + eps)
    bank_shift = (p["bank_bn"]["beta"] - p["bank_bn"]["mean"] * bank_scale
                  + jnp.concatenate(p["bank_b"]) * bank_scale)
    wbank = _pack_bank_weights_paired(p["bank_w"], K, H)
    s1, sh1 = _bn_fold(p["bn1"], p["c1_b"], eps)
    s2, sh2 = _bn_fold(p["bn2"], p["c2_b"], eps)
    y = cbhg_conv_section(
        pre, wbank,
        bank_scale.reshape(1, K * H), bank_shift.reshape(1, K * H),
        p["c1_w"].astype(jnp.bfloat16), s1.reshape(1, H), sh1.reshape(1, H),
        p["c2_w"].reshape(3 * H, H).astype(jnp.bfloat16), s2.reshape(1, H), sh2.reshape(1, H),
        K=K,
    )

    # ---- highway stack (all layers fused, w1/w2 packed into one [H,2H] dot per layer) ----
    NH = len(p["hw"])
    wcat = jnp.stack([jnp.concatenate([hw["w1"], hw["w2"]], axis=1) for hw in p["hw"]]
                     ).astype(jnp.bfloat16)              # [NH, H, 2H]
    bcat = jnp.stack([jnp.concatenate([hw["b1"], hw["b2"]]) for hw in p["hw"]]
                     ).reshape(NH, 1, 2 * H)             # f32
    y = highway_stack(y.reshape(N * T, H), wcat, bcat).reshape(N, T, H)

    # ---- 2-layer bidirectional GRU ----
    xs = [jnp.transpose(y, (1, 0, 2)).reshape(T * N, H)]   # time-major rows (t, n)
    hid = []
    y_dir = None
    for layer in range(2):
        f, b = p["gru"][layer]
        if layer == 0:
            ws = [jnp.stack([f["wih"], b["wih"]]).astype(jnp.bfloat16)]            # [2, H, 3H]
        else:
            # split wih rows by input half so the fwd/bwd outputs of the previous layer
            # never need to be concatenated on the host
            ws = [jnp.stack([f["wih"][:H], b["wih"][:H]]).astype(jnp.bfloat16),
                  jnp.stack([f["wih"][H:], b["wih"][H:]]).astype(jnp.bfloat16)]
        bih = jnp.stack([f["bih"], b["bih"]]).reshape(2, 1, 3 * H)
        whh = jnp.stack([f["whh"], b["whh"]]).astype(jnp.bfloat16)                  # [2, H, 3H]
        bhh = jnp.stack([f["bhh"], b["bhh"]]).reshape(2, 1, 3 * H)

        xp = dense_bidir(xs, ws, bih, out_dtype=jnp.bfloat16).reshape(2, T, N, 3 * H)
        out_dtype = jnp.bfloat16 if layer == 0 else jnp.float32
        y_dir, hT = bigru_recurrence(xp, whh, bhh, out_dtype=out_dtype)
        hid.append(hT)
        xs = [y_dir[0].reshape(T * N, H), y_dir[1].reshape(T * N, H)]

    # TODO(synk): the final transpose could be folded into the recurrence by writing
    # batch-major blocks, but that needs lane-split output blocks (< 128 at small H).
    outputs = jnp.transpose(y_dir, (2, 1, 0, 3)).reshape(N, T, 2 * H)  # [N, T, E]
    hidden = jnp.concatenate(hid, axis=0)                               # [4, N, E//2]
    return outputs, hidden


if __name__ == "__main__":
    hp = dict(E=32, K=4, num_highways=2)
    N, T = 2, 8

    root = jax.random.PRNGKey(0)
    k_params, k_input = jax.random.split(root)
    params = init_params(k_params, hp)
    x = jax.random.normal(k_input, (N, T, hp["E"]), jnp.float32)

    fwd = jax.jit(functools.partial(encoder_forward, hp=hp))
    outputs, hidden = fwd(x, params)
    jax.block_until_ready((outputs, hidden))

    assert outputs.shape == (N, T, hp["E"])
    assert hidden.shape == (4, N, hp["E"] // 2)
    assert bool(jnp.all(jnp.isfinite(outputs))) and bool(jnp.all(jnp.isfinite(hidden)))
    print("KERNEL_OK")
</pallas_src>

<mosaic_0001>
module attributes {stable_mosaic.version = 11 : i64} {
  func.func @_prenet_kernel(%arg0: i32, %arg1: memref<16x32xf32, #tpu.memory_space<vmem>>, %arg2: memref<32x32xbf16, #tpu.memory_space<vmem>>, %arg3: memref<1x32xf32, #tpu.memory_space<vmem>>, %arg4: memref<32x16xbf16, #tpu.memory_space<vmem>>, %arg5: memref<1x16xf32, #tpu.memory_space<vmem>>, %arg6: memref<16x16xbf16, #tpu.memory_space<vmem>>) attributes {dimension_semantics = [#tpu.dimension_semantics<parallel>], iteration_bounds = array<i64: 1>, scalar_prefetch = 0 : i64, scratch_operands = 0 : i64, tpu.core_type = #tpu.core_type<tc>, window_params = [{transform_indices = @transform_0, window_bounds = array<i64: 16, 32>}, {pipeline_mode = #tpu.pipeline_mode<synchronous>, transform_indices = @transform_1, window_bounds = array<i64: 32, 32>}, {pipeline_mode = #tpu.pipeline_mode<synchronous>, transform_indices = @transform_2, window_bounds = array<i64: 1, 32>}, {pipeline_mode = #tpu.pipeline_mode<synchronous>, transform_indices = @transform_3, window_bounds = array<i64: 32, 16>}, {pipeline_mode = #tpu.pipeline_mode<synchronous>, transform_indices = @transform_4, window_bounds = array<i64: 1, 16>}, {transform_indices = @transform_5, window_bounds = array<i64: 16, 16>}]} {
    %c0 = arith.constant 0 : index
    %c0_0 = arith.constant 0 : index
    %0 = vector.load %arg1[%c0, %c0_0] : memref<16x32xf32, #tpu.memory_space<vmem>>, vector<16x32xf32>
    %1 = arith.truncf %0 : vector<16x32xf32> to vector<16x32xbf16>
    %c0_1 = arith.constant 0 : index
    %c0_2 = arith.constant 0 : index
    %2 = vector.load %arg2[%c0_1, %c0_2] : memref<32x32xbf16, #tpu.memory_space<vmem>>, vector<32x32xbf16>
    %cst = arith.constant dense<0.000000e+00> : vector<16x32xf32>
    %3 = tpu.matmul %1, %2, %cst {dimension_numbers = #tpu.dot_dimension_numbers<[1], [0], [0], [1], [0, 0, 1, 1], [], []>} : vector<16x32xbf16>, vector<32x32xbf16>, vector<16x32xf32> -> vector<16x32xf32>
    %c0_3 = arith.constant 0 : index
    %c0_4 = arith.constant 0 : index
    %4 = vector.load %arg3[%c0_3, %c0_4] : memref<1x32xf32, #tpu.memory_space<vmem>>, vector<1x32xf32>
    %5 = vector.broadcast %4 : vector<1x32xf32> to vector<16x32xf32>
    %6 = arith.addf %3, %5 : vector<16x32xf32>
    %cst_5 = arith.constant 0.000000e+00 : f32
    %7 = vector.broadcast %cst_5 : f32 to vector<16x32xf32>
    %8 = arith.maximumf %6, %7 : vector<16x32xf32>
    %9 = arith.truncf %8 : vector<16x32xf32> to vector<16x32xbf16>
    %c0_6 = arith.constant 0 : index
    %c0_7 = arith.constant 0 : index
    %10 = vector.load %arg4[%c0_6, %c0_7] : memref<32x16xbf16, #tpu.memory_space<vmem>>, vector<32x16xbf16>
    %cst_8 = arith.constant dense<0.000000e+00> : vector<16x16xf32>
    %11 = tpu.matmul %9, %10, %cst_8 {dimension_numbers = #tpu.dot_dimension_numbers<[1], [0], [0], [1], [0, 0, 1, 1], [], []>} : vector<16x32xbf16>, vector<32x16xbf16>, vector<16x16xf32> -> vector<16x16xf32>
    %c0_9 = arith.constant 0 : index
    %c0_10 = arith.constant 0 : index
    %12 = vector.load %arg5[%c0_9, %c0_10] : memref<1x16xf32, #tpu.memory_space<vmem>>, vector<1x16xf32>
    %13 = vector.broadcast %12 : vector<1x16xf32> to vector<16x16xf32>
    %14 = arith.addf %11, %13 : vector<16x16xf32>
    %cst_11 = arith.constant 0.000000e+00 : f32
    %15 = vector.broadcast %cst_11 : f32 to vector<16x16xf32>
    %16 = arith.maximumf %14, %15 : vector<16x16xf32>
    %17 = arith.truncf %16 : vector<16x16xf32> to vector<16x16xbf16>
    %c0_12 = arith.constant 0 : index
    %c0_13 = arith.constant 0 : index
    %18 = vector.load %arg6[%c0_12, %c0_13] : memref<16x16xbf16, #tpu.memory_space<vmem>>, vector<16x16xbf16>
    tpu.vector_store %arg6[%c0_12, %c0_13], %17 {strides = array<i32>} : memref<16x16xbf16, #tpu.memory_space<vmem>>, vector<16x16xbf16>,
    return
  }
  func.func @transform_0(%arg0: i32) -> (i32, i32) {
    %c0_i32 = arith.constant 0 : i32
    %c0_i32_0 = arith.constant 0 : i32
    return %arg0, %c0_i32 : i32, i32
  }
  func.func @transform_1(%arg0: i32) -> (i32, i32) {
    %c0_i32 = arith.constant 0 : i32
    %c0_i32_0 = arith.constant 0 : i32
    %c0_i32_1 = arith.constant 0 : i32
    return %c0_i32, %c0_i32_0 : i32, i32
  }
  func.func @transform_2(%arg0: i32) -> (i32, i32) {
    %c0_i32 = arith.constant 0 : i32
    %c0_i32_0 = arith.constant 0 : i32
    %c0_i32_1 = arith.constant 0 : i32
    return %c0_i32, %c0_i32_0 : i32, i32
  }
  func.func @transform_3(%arg0: i32) -> (i32, i32) {
    %c0_i32 = arith.constant 0 : i32
    %c0_i32_0 = arith.constant 0 : i32
    %c0_i32_1 = arith.constant 0 : i32
    return %c0_i32, %c0_i32_0 : i32, i32
  }
  func.func @transform_4(%arg0: i32) -> (i32, i32) {
    %c0_i32 = arith.constant 0 : i32
    %c0_i32_0 = arith.constant 0 : i32
    %c0_i32_1 = arith.constant 0 : i32
    return %c0_i32, %c0_i32_0 : i32, i32
  }
  func.func @transform_5(%arg0: i32) -> (i32, i32) {
    %c0_i32 = arith.constant 0 : i32
    %c0_i32_0 = arith.constant 0 : i32
    return %arg0, %c0_i32 : i32, i32
  }
}

module attributes {stable_mosaic.version = 11 : i64} {
  func.func @_cbhg_conv_kernel(%arg0: i32, %arg1: memref<1x8x16xbf16, #tpu.memory_space<vmem>>, %arg2: memref<2x32x64xbf16, #tpu.memory_space<vmem>>, %arg3: memref<1x64xf32, #tpu.memory_space<vmem>>, %arg4: memref<1x64xf32, #tpu.memory_space<vmem>>, %arg5: memref<3x64x16xbf16, #tpu.memory_space<vmem>>, %arg6: memref<1x16xf32, #tpu.memory_space<vmem>>, %arg7: memref<1x16xf32, #tpu.memory_space<vmem>>, %arg8: memref<48x16xbf16, #tpu.memory_space<vmem>>, %arg9: memref<1x16xf32, #tpu.memory_space<vmem>>, %arg10: memref<1x16xf32, #tpu.memory_space<vmem>>, %arg11: memref<1x8x16xbf16, #tpu.memory_space<vmem>>, %arg12: memref<11x16xbf16, #tpu.memory_space<vmem>>, %arg13: memref<10x64xbf16, #tpu.memory_space<vmem>>, %arg14: memref<10x16xbf16, #tpu.memory_space<vmem>>) attributes {dimension_semantics = [#tpu.dimension_semantics<parallel>], iteration_bounds = array<i64: 2>, scalar_prefetch = 0 : i64, scratch_operands = 3 : i64, tpu.core_type = #tpu.core_type<tc>, window_params = [{transform_indices = @transform_0, window_bounds = array<i64: 1, 8, 16>}, {pipeline_mode = #tpu.pipeline_mode<synchronous>, transform_indices = @transform_1, window_bounds = array<i64: 2, 32, 64>}, {pipeline_mode = #tpu.pipeline_mode<synchronous>, transform_indices = @transform_2, window_bounds = array<i64: 1, 64>}, {pipeline_mode = #tpu.pipeline_mode<synchronous>, transform_indices = @transform_3, window_bounds = array<i64: 1, 64>}, {pipeline_mode = #tpu.pipeline_mode<synchronous>, transform_indices = @transform_4, window_bounds = array<i64: 3, 64, 16>}, {pipeline_mode = #tpu.pipeline_mode<synchronous>, transform_indices = @transform_5, window_bounds = array<i64: 1, 16>}, {pipeline_mode = #tpu.pipeline_mode<synchronous>, transform_indices = @transform_6, window_bounds = array<i64: 1, 16>}, {pipeline_mode = #tpu.pipeline_mode<synchronous>, transform_indices = @transform_7, window_bounds = array<i64: 48, 16>}, {pipeline_mode = #tpu.pipeline_mode<synchronous>, transform_indices = @transform_8, window_bounds = array<i64: 1, 16>}, {pipeline_mode = #tpu.pipeline_mode<synchronous>, transform_indices = @transform_9, window_bounds = array<i64: 1, 16>}, {transform_indices = @transform_10, window_bounds = array<i64: 1, 8, 16>}]} {
    %cst = arith.constant 0.000000e+00 : bf16
    %0 = vector.broadcast %cst : bf16 to vector<2x16xbf16>
    %c0 = arith.constant 0 : index
    %c0_0 = arith.constant 0 : index
    %1 = vector.load %arg12[%c0, %c0_0] : memref<11x16xbf16, #tpu.memory_space<vmem>>, vector<2x16xbf16>
    tpu.vector_store %arg12[%c0, %c0_0], %0 {strides = array<i32>} : memref<11x16xbf16, #tpu.memory_space<vmem>>, vector<2x16xbf16>,
    %cst_1 = arith.constant 0.000000e+00 : bf16
    %2 = vector.broadcast %cst_1 : bf16 to vector<1x16xbf16>
    %c10 = arith.constant 10 : index
    %c0_2 = arith.constant 0 : index
    %3 = vector.load %arg12[%c10, %c0_2] : memref<11x16xbf16, #tpu.memory_space<vmem>>, vector<1x16xbf16>
    tpu.vector_store %arg12[%c10, %c0_2], %2 {strides = array<i32>} : memref<11x16xbf16, #tpu.memory_space<vmem>>, vector<1x16xbf16>,
    %c0_3 = arith.constant 0 : index
    %c0_4 = arith.constant 0 : index
    %c0_5 = arith.constant 0 : index
    %4 = vector.load %arg1[%c0_3, %c0_4, %c0_5] : memref<1x8x16xbf16, #tpu.memory_space<vmem>>, vector<1x8x16xbf16>
    %5 = vector.shape_cast %4 : vector<1x8x16xbf16> to vector<8x16xbf16>
    %c2 = arith.constant 2 : index
    %c0_6 = arith.constant 0 : index
    %6 = vector.load %arg12[%c2, %c0_6] : memref<11x16xbf16, #tpu.memory_space<vmem>>, vector<8x16xbf16>
    tpu.vector_store %arg12[%c2, %c0_6], %5 {strides = array<i32>} : memref<11x16xbf16, #tpu.memory_space<vmem>>, vector<8x16xbf16>,
    %c0_7 = arith.constant 0 : index
    %c0_8 = arith.constant 0 : index
    %7 = vector.load %arg12[%c0_7, %c0_8] : memref<11x16xbf16, #tpu.memory_space<vmem>>, vector<8x16xbf16>
    %c1 = arith.constant 1 : index
    %c0_9 = arith.constant 0 : index
    %8 = vector.load %arg12[%c1, %c0_9] : memref<11x16xbf16, #tpu.memory_space<vmem>>, vector<8x16xbf16>
    %9 = tpu.concatenate %7, %8 in 1 : vector<8x16xbf16>, vector<8x16xbf16> -> vector<8x32xbf16>
    %c0_10 = arith.constant 0 : index
    %c0_11 = arith.constant 0 : index
    %c0_12 = arith.constant 0 : index
    %10 = vector.load %arg2[%c0_10, %c0_11, %c0_12] : memref<2x32x64xbf16, #tpu.memory_space<vmem>>, vector<1x32x64xbf16>
    %11 = vector.shape_cast %10 : vector<1x32x64xbf16> to vector<32x64xbf16>
    %cst_13 = arith.constant dense<0.000000e+00> : vector<8x64xf32>
    %12 = tpu.matmul %9, %11, %cst_13 {dimension_numbers = #tpu.dot_dimension_numbers<[1], [0], [0], [1], [0, 0, 1, 1], [], []>} : vector<8x32xbf16>, vector<32x64xbf16>, vector<8x64xf32> -> vector<8x64xf32>
    %c2_14 = arith.constant 2 : index
    %c0_15 = arith.constant 0 : index
    %13 = vector.load %arg12[%c2_14, %c0_15] : memref<11x16xbf16, #tpu.memory_space<vmem>>, vector<8x16xbf16>
    %c3 = arith.constant 3 : index
    %c0_16 = arith.constant 0 : index
    %14 = vector.load %arg12[%c3, %c0_16] : memref<11x16xbf16, #tpu.memory_space<vmem>>, vector<8x16xbf16>
    %15 = tpu.concatenate %13, %14 in 1 : vector<8x16xbf16>, vector<8x16xbf16> -> vector<8x32xbf16>
    %c1_17 = arith.constant 1 : index
    %c0_18 = arith.constant 0 : index
    %c0_19 = arith.constant 0 : index
    %16 = vector.load %arg2[%c1_17, %c0_18, %c0_19] : memref<2x32x64xbf16, #tpu.memory_space<vmem>>, vector<1x32x64xbf16>
    %17 = vector.shape_cast %16 : vector<1x32x64xbf16> to vector<32x64xbf16>
    %cst_20 = arith.constant dense<0.000000e+00> : vector<8x64xf32>
    %18 = tpu.matmul %15, %17, %cst_20 {dimension_numbers = #tpu.dot_dimension_numbers<[1], [0], [0], [1], [0, 0, 1, 1], [], []>} : vector<8x32xbf16>, vector<32x64xbf16>, vector<8x64xf32> -> vector<8x64xf32>
    %19 = arith.addf %12, %18 : vector<8x64xf32>
    %c0_21 = arith.constant 0 : index
    %c0_22 = arith.constant 0 : index
    %20 = vector.load %arg3[%c0_21, %c0_22] : memref<1x64xf32, #tpu.memory_space<vmem>>, vector<1x64xf32>
    %21 = vector.broadcast %20 : vector<1x64xf32> to vector<8x64xf32>
    %22 = arith.mulf %19, %21 : vector<8x64xf32>
    %c0_23 = arith.constant 0 : index
    %c0_24 = arith.constant 0 : index
    %23 = vector.load %arg4[%c0_23, %c0_24] : memref<1x64xf32, #tpu.memory_space<vmem>>, vector<1x64xf32>
    %24 = vector.broadcast %23 : vector<1x64xf32> to vector<8x64xf32>
    %25 = arith.addf %22, %24 : vector<8x64xf32>
    %cst_25 = arith.constant 0.000000e+00 : f32
    %26 = vector.broadcast %cst_25 : f32 to vector<8x64xf32>
    %27 = arith.maximumf %25, %26 : vector<8x64xf32>
    %cst_26 = arith.constant 0.000000e+00 : bf16
    %28 = vector.broadcast %cst_26 : bf16 to vector<1x64xbf16>
    %c0_27 = arith.constant 0 : index
    %c0_28 = arith.constant 0 : index
    %29 = vector.load %arg13[%c0_27, %c0_28] : memref<10x64xbf16, #tpu.memory_space<vmem>>, vector<1x64xbf16>
    tpu.vector_store %arg13[%c0_27, %c0_28], %28 {strides = array<i32>} : memref<10x64xbf16, #tpu.memory_space<vmem>>, vector<1x64xbf16>,
    %cst_29 = arith.constant 0.000000e+00 : bf16
    %30 = vector.broadcast %cst_29 : bf16 to vector<1x64xbf16>
    %c9 = arith.constant 9 : index
    %c0_30 = arith.constant 0 : index
    %31 = vector.load %arg13[%c9, %c0_30] : memref<10x64xbf16, #tpu.memory_space<vmem>>, vector<1x64xbf16>
    tpu.vector_store %arg13[%c9, %c0_30], %30 {strides = array<i32>} : memref<10x64xbf16, #tpu.memory_space<vmem>>, vector<1x64xbf16>,
    %32 = vector.extract_strided_slice %27 {offsets = [0, 0], sizes = [7, 64], strides = [1, 1]} : vector<8x64xf32> to vector<7x64xf32>
    %33 = vector.extract_strided_slice %27 {offsets = [1, 0], sizes = [7, 64], strides = [1, 1]} : vector<8x64xf32> to vector<7x64xf32>
    %34 = arith.maximumf %32, %33 : vector<7x64xf32>
    %35 = arith.truncf %34 : vector<7x64xf32> to vector<7x64xbf16>
    %c1_31 = arith.constant 1 : index
    %c0_32 = arith.constant 0 : index
    %36 = vector.load %arg13[%c1_31, %c0_32] : memref<10x64xbf16, #tpu.memory_space<vmem>>, vector<7x64xbf16>
    tpu.vector_store %arg13[%c1_31, %c0_32], %35 {strides = array<i32>} : memref<10x64xbf16, #tpu.memory_space<vmem>>, vector<7x64xbf16>,
    %37 = vector.extract_strided_slice %27 {offsets = [7, 0], sizes = [1, 64], strides = [1, 1]} : vector<8x64xf32> to vector<1x64xf32>
    %38 = arith.truncf %37 : vector<1x64xf32> to vector<1x64xbf16>
    %c8 = arith.constant 8 : index
    %c0_33 = arith.constant 0 : index
    %39 = vector.load %arg13[%c8, %c0_33] : memref<10x64xbf16, #tpu.memory_space<vmem>>, vector<1x64xbf16>
    tpu.vector_store %arg13[%c8, %c0_33], %38 {strides = array<i32>} : memref<10x64xbf16, #tpu.memory_space<vmem>>, vector<1x64xbf16>,
    %c0_34 = arith.constant 0 : index
    %c0_35 = arith.constant 0 : index
    %40 = vector.load %arg13[%c0_34, %c0_35] : memref<10x64xbf16, #tpu.memory_space<vmem>>, vector<8x64xbf16>
    %c0_36 = arith.constant 0 : index
    %c0_37 = arith.constant 0 : index
    %c0_38 = arith.constant 0 : index
    %41 = vector.load %arg5[%c0_36, %c0_37, %c0_38] : memref<3x64x16xbf16, #tpu.memory_space<vmem>>, vector<1x64x16xbf16>
    %42 = vector.shape_cast %41 : vector<1x64x16xbf16> to vector<64x16xbf16>
    %cst_39 = arith.constant dense<0.000000e+00> : vector<8x16xf32>
    %43 = tpu.matmul %40, %42, %cst_39 {dimension_numbers = #tpu.dot_dimension_numbers<[1], [0], [0], [1], [0, 0, 1, 1], [], []>} : vector<8x64xbf16>, vector<64x16xbf16>, vector<8x16xf32> -> vector<8x16xf32>
    %c1_40 = arith.constant 1 : index
    %c0_41 = arith.constant 0 : index
    %44 = vector.load %arg13[%c1_40, %c0_41] : memref<10x64xbf16, #tpu.memory_space<vmem>>, vector<8x64xbf16>
    %c1_42 = arith.constant 1 : index
    %c0_43 = arith.constant 0 : index
    %c0_44 = arith.constant 0 : index
    %45 = vector.load %arg5[%c1_42, %c0_43, %c0_44] : memref<3x64x16xbf16, #tpu.memory_space<vmem>>, vector<1x64x16xbf16>
    %46 = vector.shape_cast %45 : vector<1x64x16xbf16> to vector<64x16xbf16>
    %cst_45 = arith.constant dense<0.000000e+00> : vector<8x16xf32>
    %47 = tpu.matmul %44, %46, %cst_45 {dimension_numbers = #tpu.dot_dimension_numbers<[1], [0], [0], [1], [0, 0, 1, 1], [], []>} : vector<8x64xbf16>, vector<64x16xbf16>, vector<8x16xf32> -> vector<8x16xf32>
    %48 = arith.addf %43, %47 : vector<8x16xf32>
    %c2_46 = arith.constant 2 : index
    %c0_47 = arith.constant 0 : index
    %49 = vector.load %arg13[%c2_46, %c0_47] : memref<10x64xbf16, #tpu.memory_space<vmem>>, vector<8x64xbf16>
    %c2_48 = arith.constant 2 : index
    %c0_49 = arith.constant 0 : index
    %c0_50 = arith.constant 0 : index
    %50 = vector.load %arg5[%c2_48, %c0_49, %c0_50] : memref<3x64x16xbf16, #tpu.memory_space<vmem>>, vector<1x64x16xbf16>
    %51 = vector.shape_cast %50 : vector<1x64x16xbf16> to vector<64x16xbf16>
    %cst_51 = arith.constant dense<0.000000e+00> : vector<8x16xf32>
    %52 = tpu.matmul %49, %51, %cst_51 {dimension_numbers = #tpu.dot_dimension_numbers<[1], [0], [0], [1], [0, 0, 1, 1], [], []>} : vector<8x64xbf16>, vector<64x16xbf16>, vector<8x16xf32> -> vector<8x16xf32>
    %53 = arith.addf %48, %52 : vector<8x16xf32>
    %c0_52 = arith.constant 0 : index
    %c0_53 = arith.constant 0 : index
    %54 = vector.load %arg6[%c0_52, %c0_53] : memref<1x16xf32, #tpu.memory_space<vmem>>, vector<1x16xf32>
    %55 = vector.broadcast %54 : vector<1x16xf32> to vector<8x16xf32>
    %56 = arith.mulf %53, %55 : vector<8x16xf32>
    %c0_54 = arith.constant 0 : index
    %c0_55 = arith.constant 0 : index
    %57 = vector.load %arg7[%c0_54, %c0_55] : memref<1x16xf32, #tpu.memory_space<vmem>>, vector<1x16xf32>
    %58 = vector.broadcast %57 : vector<1x16xf32> to vector<8x16xf32>
    %59 = arith.addf %56, %58 : vector<8x16xf32>
    %cst_56 = arith.constant 0.000000e+00 : f32
    %60 = vector.broadcast %cst_56 : f32 to vector<8x16xf32>
    %61 = arith.maximumf %59, %60 : vector<8x16xf32>
    %cst_57 = arith.constant 0.000000e+00 : bf16
    %62 = vector.broadcast %cst_57 : bf16 to vector<1x16xbf16>
    %c0_58 = arith.constant 0 : index
    %c0_59 = arith.constant 0 : index
    %63 = vector.load %arg14[%c0_58, %c0_59] : memref<10x16xbf16, #tpu.memory_space<vmem>>, vector<1x16xbf16>
    tpu.vector_store %arg14[%c0_58, %c0_59], %62 {strides = array<i32>} : memref<10x16xbf16, #tpu.memory_space<vmem>>, vector<1x16xbf16>,
    %cst_60 = arith.constant 0.000000e+00 : bf16
    %64 = vector.broadcast %cst_60 : bf16 to vector<1x16xbf16>
    %c9_61 = arith.constant 9 : index
    %c0_62 = arith.constant 0 : index
    %65 = vector.load %arg14[%c9_61, %c0_62] : memref<10x16xbf16, #tpu.memory_space<vmem>>, vector<1x16xbf16>
    tpu.vector_store %arg14[%c9_61, %c0_62], %64 {strides = array<i32>} : memref<10x16xbf16, #tpu.memory_space<vmem>>, vector<1x16xbf16>,
    %66 = arith.truncf %61 : vector<8x16xf32> to vector<8x16xbf16>
    %c1_63 = arith.constant 1 : index
    %c0_64 = arith.constant 0 : index
    %67 = vector.load %arg14[%c1_63, %c0_64] : memref<10x16xbf16, #tpu.memory_space<vmem>>, vector<8x16xbf16>
    tpu.vector_store %arg14[%c1_63, %c0_64], %66 {strides = array<i32>} : memref<10x16xbf16, #tpu.memory_space<vmem>>, vector<8x16xbf16>,
    %c0_65 = arith.constant 0 : index
    %c0_66 = arith.constant 0 : index
    %68 = vector.load %arg14[%c0_65, %c0_66] : memref<10x16xbf16, #tpu.memory_space<vmem>>, vector<8x16xbf16>
    %c1_67 = arith.constant 1 : index
    %c0_68 = arith.constant 0 : index
    %69 = vector.load %arg14[%c1_67, %c0_68] : memref<10x16xbf16, #tpu.memory_space<vmem>>, vector<8x16xbf16>
    %c2_69 = arith.constant 2 : index
    %c0_70 = arith.constant 0 : index
    %70 = vector.load %arg14[%c2_69, %c0_70] : memref<10x16xbf16, #tpu.memory_space<vmem>>, vector<8x16xbf16>
    %71 = tpu.concatenate %68, %69, %70 in 1 : vector<8x16xbf16>, vector<8x16xbf16>, vector<8x16xbf16> -> vector<8x48xbf16>
    %c0_71 = arith.constant 0 : index
    %c0_72 = arith.constant 0 : index
    %72 = vector.load %arg8[%c0_71, %c0_72] : memref<48x16xbf16, #tpu.memory_space<vmem>>, vector<48x16xbf16>
    %cst_73 = arith.constant dense<0.000000e+00> : vector<8x16xf32>
    %73 = tpu.matmul %71, %72, %cst_73 {dimension_numbers = #tpu.dot_dimension_numbers<[1], [0], [0], [1], [0, 0, 1, 1], [], []>} : vector<8x48xbf16>, vector<48x16xbf16>, vector<8x16xf32> -> vector<8x16xf32>
    %c0_74 = arith.constant 0 : index
    %c0_75 = arith.constant 0 : index
    %74 = vector.load %arg9[%c0_74, %c0_75] : memref<1x16xf32, #tpu.memory_space<vmem>>, vector<1x16xf32>
    %75 = vector.broadcast %74 : vector<1x16xf32> to vector<8x16xf32>
    %76 = arith.mulf %73, %75 : vector<8x16xf32>
    %c0_76 = arith.constant 0 : index
    %c0_77 = arith.constant 0 : index
    %77 = vector.load %arg10[%c0_76, %c0_77] : memref<1x16xf32, #tpu.memory_space<vmem>>, vector<1x16xf32>
    %78 = vector.broadcast %77 : vector<1x16xf32> to vector<8x16xf32>
    %79 = arith.addf %76, %78 : vector<8x16xf32>
    %c0_78 = arith.constant 0 : index
    %c0_79 = arith.constant 0 : index
    %c0_80 = arith.constant 0 : index
    %80 = vector.load %arg1[%c0_78, %c0_79, %c0_80] : memref<1x8x16xbf16, #tpu.memory_space<vmem>>, vector<1x8x16xbf16>
    %81 = vector.shape_cast %80 : vector<1x8x16xbf16> to vector<8x16xbf16>
    %82 = arith.extf %81 : vector<8x16xbf16> to vector<8x16xf32>
    %83 = arith.addf %79, %82 : vector<8x16xf32>
    %84 = arith.truncf %83 : vector<8x16xf32> to vector<8x16xbf16>
    %c0_81 = arith.constant 0 : index
    %c0_82 = arith.constant 0 : index
    %c0_83 = arith.constant 0 : index
    %85 = vector.load %arg11[%c0_81, %c0_82, %c0_83] : memref<1x8x16xbf16, #tpu.memory_space<vmem>>, vector<1x8x16xbf16>
    %86 = vector.shape_cast %85 : vector<1x8x16xbf16> to vector<8x16xbf16>
    %87 = vector.shape_cast %84 : vector<8x16xbf16> to vector<1x8x16xbf16>
    tpu.vector_store %arg11[%c0_81, %c0_82, %c0_83], %87 {strides = array<i32>} : memref<1x8x16xbf16, #tpu.memory_space<vmem>>, vector<1x8x16xbf16>,
    return
  }
  func.func @transform_0(%arg0: i32) -> (i32, i32, i32) {
    %c0_i32 = arith.constant 0 : i32
    %c0_i32_0 = arith.constant 0 : i32
    %c0_i32_1 = arith.constant 0 : i32
    return %arg0, %c0_i32, %c0_i32_0 : i32, i32, i32
  }
  func.func @transform_1(%arg0: i32) -> (i32, i32, i32) {
    %c0_i32 = arith.constant 0 : i32
    %c0_i32_0 = arith.constant 0 : i32
    %c0_i32_1 = arith.constant 0 : i32
    %c0_i32_2 = arith.constant 0 : i32
    return %c0_i32, %c0_i32_0, %c0_i32_1 : i32, i32, i32
  }
  func.func @transform_2(%arg0: i32) -> (i32, i32) {
    %c0_i32 = arith.constant 0 : i32
    %c0_i32_0 = arith.constant 0 : i32
    %c0_i32_1 = arith.constant 0 : i32
    return %c0_i32, %c0_i32_0 : i32, i32
  }
  func.func @transform_3(%arg0: i32) -> (i32, i32) {
    %c0_i32 = arith.constant 0 : i32
    %c0_i32_0 = arith.constant 0 : i32
    %c0_i32_1 = arith.constant 0 : i32
    return %c0_i32, %c0_i32_0 : i32, i32
  }
  func.func @transform_4(%arg0: i32) -> (i32, i32, i32) {
    %c0_i32 = arith.constant 0 : i32
    %c0_i32_0 = arith.constant 0 : i32
    %c0_i32_1 = arith.constant 0 : i32
    %c0_i32_2 = arith.constant 0 : i32
    return %c0_i32, %c0_i32_0, %c0_i32_1 : i32, i32, i32
  }
  func.func @transform_5(%arg0: i32) -> (i32, i32) {
    %c0_i32 = arith.constant 0 : i32
    %c0_i32_0 = arith.constant 0 : i32
    %c0_i32_1 = arith.constant 0 : i32
    return %c0_i32, %c0_i32_0 : i32, i32
  }
  func.func @transform_6(%arg0: i32) -> (i32, i32) {
    %c0_i32 = arith.constant 0 : i32
    %c0_i32_0 = arith.constant 0 : i32
    %c0_i32_1 = arith.constant 0 : i32
    return %c0_i32, %c0_i32_0 : i32, i32
  }
  func.func @transform_7(%arg0: i32) -> (i32, i32) {
    %c0_i32 = arith.constant 0 : i32
    %c0_i32_0 = arith.constant 0 : i32
    %c0_i32_1 = arith.constant 0 : i32
    return %c0_i32, %c0_i32_0 : i32, i32
  }
  func.func @transform_8(%arg0: i32) -> (i32, i32) {
    %c0_i32 = arith.constant 0 : i32
    %c0_i32_0 = arith.constant 0 : i32
    %c0_i32_1 = arith.constant 0 : i32
    return %c0_i32, %c0_i32_0 : i32, i32
  }
  func.func @transform_9(%arg0: i32) -> (i32, i32) {
    %c0_i32 = arith.constant 0 : i32
    %c0_i32_0 = arith.constant 0 : i32
    %c0_i32_1 = arith.constant 0 : i32
    return %c0_i32, %c0_i32_0 : i32, i32
  }
  func.func @transform_10(%arg0: i32) -> (i32, i32, i32) {
    %c0_i32 = arith.constant 0 : i32
    %c0_i32_0 = arith.constant 0 : i32
    %c0_i32_1 = arith.constant 0 : i32
    return %arg0, %c0_i32, %c0_i32_0 : i32, i32, i32
  }
}

module attributes {stable_mosaic.version = 11 : i64} {
  func.func @_highway_stack_kernel(%arg0: i32, %arg1: memref<16x16xbf16, #tpu.memory_space<vmem>>, %arg2: memref<2x16x32xbf16, #tpu.memory_space<vmem>>, %arg3: memref<2x1x32xf32, #tpu.memory_space<vmem>>, %arg4: memref<16x16xbf16, #tpu.memory_space<vmem>>) attributes {dimension_semantics = [#tpu.dimension_semantics<parallel>], iteration_bounds = array<i64: 1>, scalar_prefetch = 0 : i64, scratch_operands = 0 : i64, tpu.core_type = #tpu.core_type<tc>, window_params = [{transform_indices = @transform_0, window_bounds = array<i64: 16, 16>}, {pipeline_mode = #tpu.pipeline_mode<synchronous>, transform_indices = @transform_1, window_bounds = array<i64: 2, 16, 32>}, {pipeline_mode = #tpu.pipeline_mode<synchronous>, transform_indices = @transform_2, window_bounds = array<i64: 2, 1, 32>}, {transform_indices = @transform_3, window_bounds = array<i64: 16, 16>}]} {
    %c0 = arith.constant 0 : index
    %c0_0 = arith.constant 0 : index
    %0 = vector.load %arg1[%c0, %c0_0] : memref<16x16xbf16, #tpu.memory_space<vmem>>, vector<16x16xbf16>
    %1 = arith.extf %0 : vector<16x16xbf16> to vector<16x16xf32>
    %2 = arith.truncf %1 : vector<16x16xf32> to vector<16x16xbf16>
    %c0_1 = arith.constant 0 : index
    %c0_2 = arith.constant 0 : index
    %c0_3 = arith.constant 0 : index
    %3 = vector.load %arg2[%c0_1, %c0_2, %c0_3] : memref<2x16x32xbf16, #tpu.memory_space<vmem>>, vector<1x16x32xbf16>
    %4 = vector.shape_cast %3 : vector<1x16x32xbf16> to vector<16x32xbf16>
    %cst = arith.constant dense<0.000000e+00> : vector<16x32xf32>
    %5 = tpu.matmul %2, %4, %cst {dimension_numbers = #tpu.dot_dimension_numbers<[1], [0], [0], [1], [0, 0, 1, 1], [], []>} : vector<16x16xbf16>, vector<16x32xbf16>, vector<16x32xf32> -> vector<16x32xf32>
    %c0_4 = arith.constant 0 : index
    %c0_5 = arith.constant 0 : index
    %c0_6 = arith.constant 0 : index
    %6 = vector.load %arg3[%c0_4, %c0_5, %c0_6] : memref<2x1x32xf32, #tpu.memory_space<vmem>>, vector<1x1x32xf32>
    %7 = vector.shape_cast %6 : vector<1x1x32xf32> to vector<1x32xf32>
    %8 = vector.broadcast %7 : vector<1x32xf32> to vector<16x32xf32>
    %9 = arith.addf %5, %8 : vector<16x32xf32>
    %10 = vector.extract_strided_slice %9 {offsets = [0, 0], sizes = [16, 16], strides = [1, 1]} : vector<16x32xf32> to vector<16x16xf32>
    %cst_7 = arith.constant 0.000000e+00 : f32
    %11 = vector.broadcast %cst_7 : f32 to vector<16x16xf32>
    %12 = arith.maximumf %10, %11 : vector<16x16xf32>
    %13 = vector.extract_strided_slice %9 {offsets = [0, 16], sizes = [16, 16], strides = [1, 1]} : vector<16x32xf32> to vector<16x16xf32>
    %14 = arith.negf %13 : vector<16x16xf32>
    %15 = math.exp %14 : vector<16x16xf32>
    %cst_8 = arith.constant 1.000000e+00 : f32
    %16 = vector.broadcast %cst_8 : f32 to vector<16x16xf32>
    %17 = arith.addf %16, %15 : vector<16x16xf32>
    %18 = arith.divf %16, %17 : vector<16x16xf32>
    %19 = arith.mulf %12, %18 : vector<16x16xf32>
    %cst_9 = arith.constant 1.000000e+00 : f32
    %20 = vector.broadcast %cst_9 : f32 to vector<16x16xf32>
    %21 = arith.subf %20, %18 : vector<16x16xf32>
    %22 = arith.mulf %1, %21 : vector<16x16xf32>
    %23 = arith.addf %19, %22 : vector<16x16xf32>
    %24 = arith.truncf %23 : vector<16x16xf32> to vector<16x16xbf16>
    %c1 = arith.constant 1 : index
    %c0_10 = arith.constant 0 : index
    %c0_11 = arith.constant 0 : index
    %25 = vector.load %arg2[%c1, %c0_10, %c0_11] : memref<2x16x32xbf16, #tpu.memory_space<vmem>>, vector<1x16x32xbf16>
    %26 = vector.shape_cast %25 : vector<1x16x32xbf16> to vector<16x32xbf16>
    %cst_12 = arith.constant dense<0.000000e+00> : vector<16x32xf32>
    %27 = tpu.matmul %24, %26, %cst_12 {dimension_numbers = #tpu.dot_dimension_numbers<[1], [0], [0], [1], [0, 0, 1, 1], [], []>} : vector<16x16xbf16>, vector<16x32xbf16>, vector<16x32xf32> -> vector<16x32xf32>
    %c1_13 = arith.constant 1 : index
    %c0_14 = arith.constant 0 : index
    %c0_15 = arith.constant 0 : index
    %28 = vector.load %arg3[%c1_13, %c0_14, %c0_15] : memref<2x1x32xf32, #tpu.memory_space<vmem>>, vector<1x1x32xf32>
    %29 = vector.shape_cast %28 : vector<1x1x32xf32> to vector<1x32xf32>
    %30 = vector.broadcast %29 : vector<1x32xf32> to vector<16x32xf32>
    %31 = arith.addf %27, %30 : vector<16x32xf32>
    %32 = vector.extract_strided_slice %31 {offsets = [0, 0], sizes = [16, 16], strides = [1, 1]} : vector<16x32xf32> to vector<16x16xf32>
    %cst_16 = arith.constant 0.000000e+00 : f32
    %33 = vector.broadcast %cst_16 : f32 to vector<16x16xf32>
    %34 = arith.maximumf %32, %33 : vector<16x16xf32>
    %35 = vector.extract_strided_slice %31 {offsets = [0, 16], sizes = [16, 16], strides = [1, 1]} : vector<16x32xf32> to vector<16x16xf32>
    %36 = arith.negf %35 : vector<16x16xf32>
    %37 = math.exp %36 : vector<16x16xf32>
    %cst_17 = arith.constant 1.000000e+00 : f32
    %38 = vector.broadcast %cst_17 : f32 to vector<16x16xf32>
    %39 = arith.addf %38, %37 : vector<16x16xf32>
    %40 = arith.divf %38, %39 : vector<16x16xf32>
    %41 = arith.mulf %34, %40 : vector<16x16xf32>
    %cst_18 = arith.constant 1.000000e+00 : f32
    %42 = vector.broadcast %cst_18 : f32 to vector<16x16xf32>
    %43 = arith.subf %42, %40 : vector<16x16xf32>
    %44 = arith.mulf %23, %43 : vector<16x16xf32>
    %45 = arith.addf %41, %44 : vector<16x16xf32>
    %46 = arith.truncf %45 : vector<16x16xf32> to vector<16x16xbf16>
    %c0_19 = arith.constant 0 : index
    %c0_20 = arith.constant 0 : index
    %47 = vector.load %arg4[%c0_19, %c0_20] : memref<16x16xbf16, #tpu.memory_space<vmem>>, vector<16x16xbf16>
    tpu.vector_store %arg4[%c0_19, %c0_20], %46 {strides = array<i32>} : memref<16x16xbf16, #tpu.memory_space<vmem>>, vector<16x16xbf16>,
    return
  }
  func.func @transform_0(%arg0: i32) -> (i32, i32) {
    %c0_i32 = arith.constant 0 : i32
    %c0_i32_0 = arith.constant 0 : i32
    return %arg0, %c0_i32 : i32, i32
  }
  func.func @transform_1(%arg0: i32) -> (i32, i32, i32) {
    %c0_i32 = arith.constant 0 : i32
    %c0_i32_0 = arith.constant 0 : i32
    %c0_i32_1 = arith.constant 0 : i32
    %c0_i32_2 = arith.constant 0 : i32
    return %c0_i32, %c0_i32_0, %c0_i32_1 : i32, i32, i32
  }
  func.func @transform_2(%arg0: i32) -> (i32, i32, i32) {
    %c0_i32 = arith.constant 0 : i32
    %c0_i32_0 = arith.constant 0 : i32
    %c0_i32_1 = arith.constant 0 : i32
    %c0_i32_2 = arith.constant 0 : i32
    return %c0_i32, %c0_i32_0, %c0_i32_1 : i32, i32, i32
  }
  func.func @transform_3(%arg0: i32) -> (i32, i32) {
    %c0_i32 = arith.constant 0 : i32
    %c0_i32_0 = arith.constant 0 : i32
    return %arg0, %c0_i32 : i32, i32
  }
}

module attributes {stable_mosaic.version = 11 : i64} {
  func.func @kernel(%arg0: i32, %arg1: i32, %arg2: memref<16x16xbf16, #tpu.memory_space<vmem>>, %arg3: memref<1x16x48xbf16, #tpu.memory_space<vmem>>, %arg4: memref<1x1x48xf32, #tpu.memory_space<vmem>>, %arg5: memref<1x16x48xbf16, #tpu.memory_space<vmem>>) attributes {dimension_semantics = [#tpu.dimension_semantics<parallel>, #tpu.dimension_semantics<parallel>], iteration_bounds = array<i64: 1, 2>, scalar_prefetch = 0 : i64, scratch_operands = 0 : i64, tpu.core_type = #tpu.core_type<tc>, window_params = [{transform_indices = @transform_0, window_bounds = array<i64: 16, 16>}, {transform_indices = @transform_1, window_bounds = array<i64: 1, 16, 48>}, {transform_indices = @transform_2, window_bounds = array<i64: 1, 1, 48>}, {transform_indices = @transform_3, window_bounds = array<i64: 1, 16, 48>}]} {
    %c0 = arith.constant 0 : index
    %c0_0 = arith.constant 0 : index
    %0 = vector.load %arg2[%c0, %c0_0] : memref<16x16xbf16, #tpu.memory_space<vmem>>, vector<16x16xbf16>
    %c0_1 = arith.constant 0 : index
    %c0_2 = arith.constant 0 : index
    %c0_3 = arith.constant 0 : index
    %1 = vector.load %arg3[%c0_1, %c0_2, %c0_3] : memref<1x16x48xbf16, #tpu.memory_space<vmem>>, vector<1x16x48xbf16>
    %2 = vector.shape_cast %1 : vector<1x16x48xbf16> to vector<16x48xbf16>
    %cst = arith.constant dense<0.000000e+00> : vector<16x48xf32>
    %3 = tpu.matmul %0, %2, %cst {dimension_numbers = #tpu.dot_dimension_numbers<[1], [0], [0], [1], [0, 0, 1, 1], [], []>} : vector<16x16xbf16>, vector<16x48xbf16>, vector<16x48xf32> -> vector<16x48xf32>
    %c0_4 = arith.constant 0 : index
    %c0_5 = arith.constant 0 : index
    %c0_6 = arith.constant 0 : index
    %4 = vector.load %arg4[%c0_4, %c0_5, %c0_6] : memref<1x1x48xf32, #tpu.memory_space<vmem>>, vector<1x1x48xf32>
    %5 = vector.shape_cast %4 : vector<1x1x48xf32> to vector<1x48xf32>
    %6 = vector.broadcast %5 : vector<1x48xf32> to vector<16x48xf32>
    %7 = arith.addf %3, %6 : vector<16x48xf32>
    %8 = arith.truncf %7 : vector<16x48xf32> to vector<16x48xbf16>
    %c0_7 = arith.constant 0 : index
    %c0_8 = arith.constant 0 : index
    %c0_9 = arith.constant 0 : index
    %9 = vector.load %arg5[%c0_7, %c0_8, %c0_9] : memref<1x16x48xbf16, #tpu.memory_space<vmem>>, vector<1x16x48xbf16>
    %10 = vector.shape_cast %9 : vector<1x16x48xbf16> to vector<16x48xbf16>
    %11 = vector.shape_cast %8 : vector<16x48xbf16> to vector<1x16x48xbf16>
    tpu.vector_store %arg5[%c0_7, %c0_8, %c0_9], %11 {strides = array<i32>} : memref<1x16x48xbf16, #tpu.memory_space<vmem>>, vector<1x16x48xbf16>,
    return
  }
  func.func @transform_0(%arg0: i32, %arg1: i32) -> (i32, i32) {
    %c0_i32 = arith.constant 0 : i32
    %c0_i32_0 = arith.constant 0 : i32
    return %arg0, %c0_i32 : i32, i32
  }
  func.func @transform_1(%arg0: i32, %arg1: i32) -> (i32, i32, i32) {
    %c0_i32 = arith.constant 0 : i32
    %c0_i32_0 = arith.constant 0 : i32
    %c0_i32_1 = arith.constant 0 : i32
    return %arg1, %c0_i32, %c0_i32_0 : i32, i32, i32
  }
  func.func @transform_2(%arg0: i32, %arg1: i32) -> (i32, i32, i32) {
    %c0_i32 = arith.constant 0 : i32
    %c0_i32_0 = arith.constant 0 : i32
    %c0_i32_1 = arith.constant 0 : i32
    return %arg1, %c0_i32, %c0_i32_0 : i32, i32, i32
  }
  func.func @transform_3(%arg0: i32, %arg1: i32) -> (i32, i32, i32) {
    %c0_i32 = arith.constant 0 : i32
    %c0_i32_0 = arith.constant 0 : i32
    return %arg1, %arg0, %c0_i32 : i32, i32, i32
  }
}

module attributes {stable_mosaic.version = 11 : i64} {
  func.func @_bigru_kernel(%arg0: i32, %arg1: i32, %arg2: memref<1x8x2x48xbf16, #tpu.memory_space<vmem>>, %arg3: memref<1x16x48xbf16, #tpu.memory_space<vmem>>, %arg4: memref<1x1x48xf32, #tpu.memory_space<vmem>>, %arg5: memref<1x8x2x16xbf16, #tpu.memory_space<vmem>>, %arg6: memref<1x2x16xf32, #tpu.memory_space<vmem>>, %arg7: memref<2x16xf32, #tpu.memory_space<vmem>>) attributes {dimension_semantics = [#tpu.dimension_semantics<parallel>, #tpu.dimension_semantics<arbitrary>], iteration_bounds = array<i64: 2, 1>, scalar_prefetch = 0 : i64, scratch_operands = 1 : i64, tpu.core_type = #tpu.core_type<tc>, window_params = [{transform_indices = @transform_0, window_bounds = array<i64: 1, 8, 2, 48>}, {transform_indices = @transform_1, window_bounds = array<i64: 1, 16, 48>}, {transform_indices = @transform_2, window_bounds = array<i64: 1, 1, 48>}, {transform_indices = @transform_3, window_bounds = array<i64: 1, 8, 2, 16>}, {transform_indices = @transform_4, window_bounds = array<i64: 1, 2, 16>}]} {
    %c0_i32 = arith.constant 0 : i32
    %0 = arith.cmpi eq, %arg1, %c0_i32 : i32
    %1 = arith.extui %0 : i1 to i32
    %c0_i32_0 = arith.constant 0 : i32
    %2 = arith.cmpi ne, %1, %c0_i32_0 : i32
    scf.if %2 {
      %cst = arith.constant 0.000000e+00 : f32
      %15 = vector.broadcast %cst : f32 to vector<2x16xf32>
      %c0_16 = arith.constant 0 : index
      %c0_17 = arith.constant 0 : index
      %16 = vector.load %arg7[%c0_16, %c0_17] : memref<2x16xf32, #tpu.memory_space<vmem>>, vector<2x16xf32>
      tpu.vector_store %arg7[%c0_16, %c0_17], %15 {strides = array<i32>} : memref<2x16xf32, #tpu.memory_space<vmem>>, vector<2x16xf32>,
    } else {
    }
    %c0 = arith.constant 0 : index
    %c0_1 = arith.constant 0 : index
    %c0_2 = arith.constant 0 : index
    %3 = vector.load %arg3[%c0, %c0_1, %c0_2] : memref<1x16x48xbf16, #tpu.memory_space<vmem>>, vector<1x16x48xbf16>
    %4 = vector.shape_cast %3 : vector<1x16x48xbf16> to vector<16x48xbf16>
    %c0_3 = arith.constant 0 : index
    %c0_4 = arith.constant 0 : index
    %c0_5 = arith.constant 0 : index
    %5 = vector.load %arg4[%c0_3, %c0_4, %c0_5] : memref<1x1x48xf32, #tpu.memory_space<vmem>>, vector<1x1x48xf32>
    %6 = vector.shape_cast %5 : vector<1x1x48xf32> to vector<1x48xf32>
    %c1_i32 = arith.constant 1 : i32
    %7 = arith.cmpi eq, %arg0, %c1_i32 : i32
    %c0_6 = arith.constant 0 : index
    %c0_7 = arith.constant 0 : index
    %8 = vector.load %arg7[%c0_6, %c0_7] : memref<2x16xf32, #tpu.memory_space<vmem>>, vector<2x16xf32>
    %c0_i32_8 = arith.constant 0 : i32
    %c8_i32 = arith.constant 8 : i32
    %9 = arith.addi %c0_i32_8, %c8_i32 : i32
    %c1_i32_9 = arith.constant 1 : i32
    %10 = scf.for %arg8 = %c0_i32_8 to %9 step %c1_i32_9 iter_args(%arg9 = %8) -> (vector<2x16xf32>)  : i32 {
      %c7_i32 = arith.constant 7 : i32
      %15 = arith.subi %c7_i32, %arg8 : i32
      %16 = arith.select %7, %15, %arg8 : i32
      %c0_16 = arith.constant 0 : index
      %17 = arith.index_cast %16 : i32 to index
      %c0_17 = arith.constant 0 : index
      %c0_18 = arith.constant 0 : index
      %18 = vector.load %arg2[%c0_16, %17, %c0_17, %c0_18] : memref<1x8x2x48xbf16, #tpu.memory_space<vmem>>, vector<1x1x2x48xbf16>
      %19 = vector.shape_cast %18 : vector<1x1x2x48xbf16> to vector<2x48xbf16>
      %20 = arith.truncf %arg9 : vector<2x16xf32> to vector<2x16xbf16>
      %cst = arith.constant dense<0.000000e+00> : vector<2x48xf32>
      %21 = tpu.matmul %20, %4, %cst {dimension_numbers = #tpu.dot_dimension_numbers<[1], [0], [0], [1], [0, 0, 1, 1], [], []>} : vector<2x16xbf16>, vector<16x48xbf16>, vector<2x48xf32> -> vector<2x48xf32>
      %22 = vector.broadcast %6 : vector<1x48xf32> to vector<2x48xf32>
      %23 = arith.addf %21, %22 : vector<2x48xf32>
      %24 = vector.extract_strided_slice %19 {offsets = [0, 0], sizes = [2, 16], strides = [1, 1]} : vector<2x48xbf16> to vector<2x16xbf16>
      %25 = vector.extract_strided_slice %23 {offsets = [0, 0], sizes = [2, 16], strides = [1, 1]} : vector<2x48xf32> to vector<2x16xf32>
      %26 = arith.extf %24 : vector<2x16xbf16> to vector<2x16xf32>
      %27 = arith.addf %26, %25 : vector<2x16xf32>
      %28 = arith.negf %27 : vector<2x16xf32>
      %29 = math.exp %28 : vector<2x16xf32>
      %cst_19 = arith.constant 1.000000e+00 : f32
      %30 = vector.broadcast %cst_19 : f32 to vector<2x16xf32>
      %31 = arith.addf %30, %29 : vector<2x16xf32>
      %32 = arith.divf %30, %31 : vector<2x16xf32>
      %33 = vector.extract_strided_slice %19 {offsets = [0, 16], sizes = [2, 16], strides = [1, 1]} : vector<2x48xbf16> to vector<2x16xbf16>
      %34 = vector.extract_strided_slice %23 {offsets = [0, 16], sizes = [2, 16], strides = [1, 1]} : vector<2x48xf32> to vector<2x16xf32>
      %35 = arith.extf %33 : vector<2x16xbf16> to vector<2x16xf32>
      %36 = arith.addf %35, %34 : vector<2x16xf32>
      %37 = arith.negf %36 : vector<2x16xf32>
      %38 = math.exp %37 : vector<2x16xf32>
      %cst_20 = arith.constant 1.000000e+00 : f32
      %39 = vector.broadcast %cst_20 : f32 to vector<2x16xf32>
      %40 = arith.addf %39, %38 : vector<2x16xf32>
      %41 = arith.divf %39, %40 : vector<2x16xf32>
      %42 = vector.extract_strided_slice %19 {offsets = [0, 32], sizes = [2, 16], strides = [1, 1]} : vector<2x48xbf16> to vector<2x16xbf16>
      %43 = vector.extract_strided_slice %23 {offsets = [0, 32], sizes = [2, 16], strides = [1, 1]} : vector<2x48xf32> to vector<2x16xf32>
      %44 = arith.mulf %32, %43 : vector<2x16xf32>
      %45 = arith.extf %42 : vector<2x16xbf16> to vector<2x16xf32>
      %46 = arith.addf %45, %44 : vector<2x16xf32>
      %47 = math.tanh %46 : vector<2x16xf32>
      %cst_21 = arith.constant 1.000000e+00 : f32
      %48 = vector.broadcast %cst_21 : f32 to vector<2x16xf32>
      %49 = arith.subf %48, %41 : vector<2x16xf32>
      %50 = arith.mulf %49, %47 : vector<2x16xf32>
      %51 = arith.mulf %41, %arg9 : vector<2x16xf32>
      %52 = arith.addf %50, %51 : vector<2x16xf32>
      %53 = arith.truncf %52 : vector<2x16xf32> to vector<2x16xbf16>
      %c0_22 = arith.constant 0 : index
      %54 = arith.index_cast %16 : i32 to index
      %c0_23 = arith.constant 0 : index
      %c0_24 = arith.constant 0 : index
      %55 = vector.load %arg5[%c0_22, %54, %c0_23, %c0_24] : memref<1x8x2x16xbf16, #tpu.memory_space<vmem>>, vector<1x1x2x16xbf16>
      %56 = vector.shape_cast %55 : vector<1x1x2x16xbf16> to vector<2x16xbf16>
      %57 = vector.shape_cast %53 : vector<2x16xbf16> to vector<1x1x2x16xbf16>
      tpu.vector_store %arg5[%c0_22, %54, %c0_23, %c0_24], %57 {strides = array<i32>} : memref<1x8x2x16xbf16, #tpu.memory_space<vmem>>, vector<1x1x2x16xbf16>,
      scf.yield %52 : vector<2x16xf32>
    }
    %c8_i32_10 = arith.constant 8 : i32
    %c0_11 = arith.constant 0 : index
    %c0_12 = arith.constant 0 : index
    %11 = vector.load %arg7[%c0_11, %c0_12] : memref<2x16xf32, #tpu.memory_space<vmem>>, vector<2x16xf32>
    tpu.vector_store %arg7[%c0_11, %c0_12], %10 {strides = array<i32>} : memref<2x16xf32, #tpu.memory_space<vmem>>, vector<2x16xf32>,
    %c0_13 = arith.constant 0 : index
    %c0_14 = arith.constant 0 : index
    %c0_15 = arith.constant 0 : index
    %12 = vector.load %arg6[%c0_13, %c0_14, %c0_15] : memref<1x2x16xf32, #tpu.memory_space<vmem>>, vector<1x2x16xf32>
    %13 = vector.shape_cast %12 : vector<1x2x16xf32> to vector<2x16xf32>
    %14 = vector.shape_cast %10 : vector<2x16xf32> to vector<1x2x16xf32>
    tpu.vector_store %arg6[%c0_13, %c0_14, %c0_15], %14 {strides = array<i32>} : memref<1x2x16xf32, #tpu.memory_space<vmem>>, vector<1x2x16xf32>,
    return
  }
  func.func @transform_0(%arg0: i32, %arg1: i32) -> (i32, i32, i32, i32) {
    %c0_i32 = arith.constant 0 : i32
    %0 = arith.subi %c0_i32, %arg1 : i32
    %1 = arith.muli %arg0, %0 : i32
    %c1_i32 = arith.constant 1 : i32
    %2 = arith.subi %c1_i32, %arg0 : i32
    %3 = arith.muli %2, %arg1 : i32
    %4 = arith.addi %1, %3 : i32
    %c0_i32_0 = arith.constant 0 : i32
    %c0_i32_1 = arith.constant 0 : i32
    %c0_i32_2 = arith.constant 0 : i32
    return %arg0, %4, %c0_i32_0, %c0_i32_1 : i32, i32, i32, i32
  }
  func.func @transform_1(%arg0: i32, %arg1: i32) -> (i32, i32, i32) {
    %c0_i32 = arith.constant 0 : i32
    %c0_i32_0 = arith.constant 0 : i32
    %c0_i32_1 = arith.constant 0 : i32
    return %arg0, %c0_i32, %c0_i32_0 : i32, i32, i32
  }
  func.func @transform_2(%arg0: i32, %arg1: i32) -> (i32, i32, i32) {
    %c0_i32 = arith.constant 0 : i32
    %c0_i32_0 = arith.constant 0 : i32
    %c0_i32_1 = arith.constant 0 : i32
    return %arg0, %c0_i32, %c0_i32_0 : i32, i32, i32
  }
  func.func @transform_3(%arg0: i32, %arg1: i32) -> (i32, i32, i32, i32) {
    %c0_i32 = arith.constant 0 : i32
    %0 = arith.subi %c0_i32, %arg1 : i32
    %1 = arith.muli %arg0, %0 : i32
    %c1_i32 = arith.constant 1 : i32
    %2 = arith.subi %c1_i32, %arg0 : i32
    %3 = arith.muli %2, %arg1 : i32
    %4 = arith.addi %1, %3 : i32
    %c0_i32_0 = arith.constant 0 : i32
    %c0_i32_1 = arith.constant 0 : i32
    %c0_i32_2 = arith.constant 0 : i32
    return %arg0, %4, %c0_i32_0, %c0_i32_1 : i32, i32, i32, i32
  }
  func.func @transform_4(%arg0: i32, %arg1: i32) -> (i32, i32, i32) {
    %c0_i32 = arith.constant 0 : i32
    %c0_i32_0 = arith.constant 0 : i32
    %c0_i32_1 = arith.constant 0 : i32
    return %arg0, %c0_i32, %c0_i32_0 : i32, i32, i32
  }
}

module attributes {stable_mosaic.version = 11 : i64} {
  func.func @kernel(%arg0: i32, %arg1: i32, %arg2: memref<16x16xbf16, #tpu.memory_space<vmem>>, %arg3: memref<16x16xbf16, #tpu.memory_space<vmem>>, %arg4: memref<1x16x48xbf16, #tpu.memory_space<vmem>>, %arg5: memref<1x16x48xbf16, #tpu.memory_space<vmem>>, %arg6: memref<1x1x48xf32, #tpu.memory_space<vmem>>, %arg7: memref<1x16x48xbf16, #tpu.memory_space<vmem>>) attributes {dimension_semantics = [#tpu.dimension_semantics<parallel>, #tpu.dimension_semantics<parallel>], iteration_bounds = array<i64: 1, 2>, scalar_prefetch = 0 : i64, scratch_operands = 0 : i64, tpu.core_type = #tpu.core_type<tc>, window_params = [{transform_indices = @transform_0, window_bounds = array<i64: 16, 16>}, {transform_indices = @transform_1, window_bounds = array<i64: 16, 16>}, {transform_indices = @transform_2, window_bounds = array<i64: 1, 16, 48>}, {transform_indices = @transform_3, window_bounds = array<i64: 1, 16, 48>}, {transform_indices = @transform_4, window_bounds = array<i64: 1, 1, 48>}, {transform_indices = @transform_5, window_bounds = array<i64: 1, 16, 48>}]} {
    %c0 = arith.constant 0 : index
    %c0_0 = arith.constant 0 : index
    %0 = vector.load %arg2[%c0, %c0_0] : memref<16x16xbf16, #tpu.memory_space<vmem>>, vector<16x16xbf16>
    %c0_1 = arith.constant 0 : index
    %c0_2 = arith.constant 0 : index
    %c0_3 = arith.constant 0 : index
    %1 = vector.load %arg4[%c0_1, %c0_2, %c0_3] : memref<1x16x48xbf16, #tpu.memory_space<vmem>>, vector<1x16x48xbf16>
    %2 = vector.shape_cast %1 : vector<1x16x48xbf16> to vector<16x48xbf16>
    %cst = arith.constant dense<0.000000e+00> : vector<16x48xf32>
    %3 = tpu.matmul %0, %2, %cst {dimension_numbers = #tpu.dot_dimension_numbers<[1], [0], [0], [1], [0, 0, 1, 1], [], []>} : vector<16x16xbf16>, vector<16x48xbf16>, vector<16x48xf32> -> vector<16x48xf32>
    %c0_4 = arith.constant 0 : index
    %c0_5 = arith.constant 0 : index
    %4 = vector.load %arg3[%c0_4, %c0_5] : memref<16x16xbf16, #tpu.memory_space<vmem>>, vector<16x16xbf16>
    %c0_6 = arith.constant 0 : index
    %c0_7 = arith.constant 0 : index
    %c0_8 = arith.constant 0 : index
    %5 = vector.load %arg5[%c0_6, %c0_7, %c0_8] : memref<1x16x48xbf16, #tpu.memory_space<vmem>>, vector<1x16x48xbf16>
    %6 = vector.shape_cast %5 : vector<1x16x48xbf16> to vector<16x48xbf16>
    %cst_9 = arith.constant dense<0.000000e+00> : vector<16x48xf32>
    %7 = tpu.matmul %4, %6, %cst_9 {dimension_numbers = #tpu.dot_dimension_numbers<[1], [0], [0], [1], [0, 0, 1, 1], [], []>} : vector<16x16xbf16>, vector<16x48xbf16>, vector<16x48xf32> -> vector<16x48xf32>
    %8 = arith.addf %3, %7 : vector<16x48xf32>
    %c0_10 = arith.constant 0 : index
    %c0_11 = arith.constant 0 : index
    %c0_12 = arith.constant 0 : index
    %9 = vector.load %arg6[%c0_10, %c0_11, %c0_12] : memref<1x1x48xf32, #tpu.memory_space<vmem>>, vector<1x1x48xf32>
    %10 = vector.shape_cast %9 : vector<1x1x48xf32> to vector<1x48xf32>
    %11 = vector.broadcast %10 : vector<1x48xf32> to vector<16x48xf32>
    %12 = arith.addf %8, %11 : vector<16x48xf32>
    %13 = arith.truncf %12 : vector<16x48xf32> to vector<16x48xbf16>
    %c0_13 = arith.constant 0 : index
    %c0_14 = arith.constant 0 : index
    %c0_15 = arith.constant 0 : index
    %14 = vector.load %arg7[%c0_13, %c0_14, %c0_15] : memref<1x16x48xbf16, #tpu.memory_space<vmem>>, vector<1x16x48xbf16>
    %15 = vector.shape_cast %14 : vector<1x16x48xbf16> to vector<16x48xbf16>
    %16 = vector.shape_cast %13 : vector<16x48xbf16> to vector<1x16x48xbf16>
    tpu.vector_store %arg7[%c0_13, %c0_14, %c0_15], %16 {strides = array<i32>} : memref<1x16x48xbf16, #tpu.memory_space<vmem>>, vector<1x16x48xbf16>,
    return
  }
  func.func @transform_0(%arg0: i32, %arg1: i32) -> (i32, i32) {
    %c0_i32 = arith.constant 0 : i32
    %c0_i32_0 = arith.constant 0 : i32
    return %arg0, %c0_i32 : i32, i32
  }
  func.func @transform_1(%arg0: i32, %arg1: i32) -> (i32, i32) {
    %c0_i32 = arith.constant 0 : i32
    %c0_i32_0 = arith.constant 0 : i32
    return %arg0, %c0_i32 : i32, i32
  }
  func.func @transform_2(%arg0: i32, %arg1: i32) -> (i32, i32, i32) {
    %c0_i32 = arith.constant 0 : i32
    %c0_i32_0 = arith.constant 0 : i32
    %c0_i32_1 = arith.constant 0 : i32
    return %arg1, %c0_i32, %c0_i32_0 : i32, i32, i32
  }
  func.func @transform_3(%arg0: i32, %arg1: i32) -> (i32, i32, i32) {
    %c0_i32 = arith.constant 0 : i32
    %c0_i32_0 = arith.constant 0 : i32
    %c0_i32_1 = arith.constant 0 : i32
    return %arg1, %c0_i32, %c0_i32_0 : i32, i32, i32
  }
  func.func @transform_4(%arg0: i32, %arg1: i32) -> (i32, i32, i32) {
    %c0_i32 = arith.constant 0 : i32
    %c0_i32_0 = arith.constant 0 : i32
    %c0_i32_1 = arith.constant 0 : i32
    return %arg1, %c0_i32, %c0_i32_0 : i32, i32, i32
  }
  func.func @transform_5(%arg0: i32, %arg1: i32) -> (i32, i32, i32) {
    %c0_i32 = arith.constant 0 : i32
    %c0_i32_0 = arith.constant 0 : i32
    return %arg1, %arg0, %c0_i32 : i32, i32, i32
  }
}

module attributes {stable_mosaic.version = 11 : i64} {
  func.func @_bigru_kernel(%arg0: i32, %arg1: i32, %arg2: memref<1x8x2x48xbf16, #tpu.memory_space<vmem>>, %arg3: memref<1x16x48xbf16, #tpu.memory_space<vmem>>, %arg4: memref<1x1x48xf32, #tpu.memory_space<vmem>>, %arg5: memref<1x8x2x16xf32, #tpu.memory_space<vmem>>, %arg6: memref<1x2x16xf32, #tpu.memory_space<vmem>>, %arg7: memref<2x16xf32, #tpu.memory_space<vmem>>) attributes {dimension_semantics = [#tpu.dimension_semantics<parallel>, #tpu.dimension_semantics<arbitrary>], iteration_bounds = array<i64: 2, 1>, scalar_prefetch = 0 : i64, scratch_operands = 1 : i64, tpu.core_type = #tpu.core_type<tc>, window_params = [{transform_indices = @transform_0, window_bounds = array<i64: 1, 8, 2, 48>}, {transform_indices = @transform_1, window_bounds = array<i64: 1, 16, 48>}, {transform_indices = @transform_2, window_bounds = array<i64: 1, 1, 48>}, {transform_indices = @transform_3, window_bounds = array<i64: 1, 8, 2, 16>}, {transform_indices = @transform_4, window_bounds = array<i64: 1, 2, 16>}]} {
    %c0_i32 = arith.constant 0 : i32
    %0 = arith.cmpi eq, %arg1, %c0_i32 : i32
    %1 = arith.extui %0 : i1 to i32
    %c0_i32_0 = arith.constant 0 : i32
    %2 = arith.cmpi ne, %1, %c0_i32_0 : i32
    scf.if %2 {
      %cst = arith.constant 0.000000e+00 : f32
      %15 = vector.broadcast %cst : f32 to vector<2x16xf32>
      %c0_16 = arith.constant 0 : index
      %c0_17 = arith.constant 0 : index
      %16 = vector.load %arg7[%c0_16, %c0_17] : memref<2x16xf32, #tpu.memory_space<vmem>>, vector<2x16xf32>
      tpu.vector_store %arg7[%c0_16, %c0_17], %15 {strides = array<i32>} : memref<2x16xf32, #tpu.memory_space<vmem>>, vector<2x16xf32>,
    } else {
    }
    %c0 = arith.constant 0 : index
    %c0_1 = arith.constant 0 : index
    %c0_2 = arith.constant 0 : index
    %3 = vector.load %arg3[%c0, %c0_1, %c0_2] : memref<1x16x48xbf16, #tpu.memory_space<vmem>>, vector<1x16x48xbf16>
    %4 = vector.shape_cast %3 : vector<1x16x48xbf16> to vector<16x48xbf16>
    %c0_3 = arith.constant 0 : index
    %c0_4 = arith.constant 0 : index
    %c0_5 = arith.constant 0 : index
    %5 = vector.load %arg4[%c0_3, %c0_4, %c0_5] : memref<1x1x48xf32, #tpu.memory_space<vmem>>, vector<1x1x48xf32>
    %6 = vector.shape_cast %5 : vector<1x1x48xf32> to vector<1x48xf32>
    %c1_i32 = arith.constant 1 : i32
    %7 = arith.cmpi eq, %arg0, %c1_i32 : i32
    %c0_6 = arith.constant 0 : index
    %c0_7 = arith.constant 0 : index
    %8 = vector.load %arg7[%c0_6, %c0_7] : memref<2x16xf32, #tpu.memory_space<vmem>>, vector<2x16xf32>
    %c0_i32_8 = arith.constant 0 : i32
    %c8_i32 = arith.constant 8 : i32
    %9 = arith.addi %c0_i32_8, %c8_i32 : i32
    %c1_i32_9 = arith.constant 1 : i32
    %10 = scf.for %arg8 = %c0_i32_8 to %9 step %c1_i32_9 iter_args(%arg9 = %8) -> (vector<2x16xf32>)  : i32 {
      %c7_i32 = arith.constant 7 : i32
      %15 = arith.subi %c7_i32, %arg8 : i32
      %16 = arith.select %7, %15, %arg8 : i32
      %c0_16 = arith.constant 0 : index
      %17 = arith.index_cast %16 : i32 to index
      %c0_17 = arith.constant 0 : index
      %c0_18 = arith.constant 0 : index
      %18 = vector.load %arg2[%c0_16, %17, %c0_17, %c0_18] : memref<1x8x2x48xbf16, #tpu.memory_space<vmem>>, vector<1x1x2x48xbf16>
      %19 = vector.shape_cast %18 : vector<1x1x2x48xbf16> to vector<2x48xbf16>
      %20 = arith.truncf %arg9 : vector<2x16xf32> to vector<2x16xbf16>
      %cst = arith.constant dense<0.000000e+00> : vector<2x48xf32>
      %21 = tpu.matmul %20, %4, %cst {dimension_numbers = #tpu.dot_dimension_numbers<[1], [0], [0], [1], [0, 0, 1, 1], [], []>} : vector<2x16xbf16>, vector<16x48xbf16>, vector<2x48xf32> -> vector<2x48xf32>
      %22 = vector.broadcast %6 : vector<1x48xf32> to vector<2x48xf32>
      %23 = arith.addf %21, %22 : vector<2x48xf32>
      %24 = vector.extract_strided_slice %19 {offsets = [0, 0], sizes = [2, 16], strides = [1, 1]} : vector<2x48xbf16> to vector<2x16xbf16>
      %25 = vector.extract_strided_slice %23 {offsets = [0, 0], sizes = [2, 16], strides = [1, 1]} : vector<2x48xf32> to vector<2x16xf32>
      %26 = arith.extf %24 : vector<2x16xbf16> to vector<2x16xf32>
      %27 = arith.addf %26, %25 : vector<2x16xf32>
      %28 = arith.negf %27 : vector<2x16xf32>
      %29 = math.exp %28 : vector<2x16xf32>
      %cst_19 = arith.constant 1.000000e+00 : f32
      %30 = vector.broadcast %cst_19 : f32 to vector<2x16xf32>
      %31 = arith.addf %30, %29 : vector<2x16xf32>
      %32 = arith.divf %30, %31 : vector<2x16xf32>
      %33 = vector.extract_strided_slice %19 {offsets = [0, 16], sizes = [2, 16], strides = [1, 1]} : vector<2x48xbf16> to vector<2x16xbf16>
      %34 = vector.extract_strided_slice %23 {offsets = [0, 16], sizes = [2, 16], strides = [1, 1]} : vector<2x48xf32> to vector<2x16xf32>
      %35 = arith.extf %33 : vector<2x16xbf16> to vector<2x16xf32>
      %36 = arith.addf %35, %34 : vector<2x16xf32>
      %37 = arith.negf %36 : vector<2x16xf32>
      %38 = math.exp %37 : vector<2x16xf32>
      %cst_20 = arith.constant 1.000000e+00 : f32
      %39 = vector.broadcast %cst_20 : f32 to vector<2x16xf32>
      %40 = arith.addf %39, %38 : vector<2x16xf32>
      %41 = arith.divf %39, %40 : vector<2x16xf32>
      %42 = vector.extract_strided_slice %19 {offsets = [0, 32], sizes = [2, 16], strides = [1, 1]} : vector<2x48xbf16> to vector<2x16xbf16>
      %43 = vector.extract_strided_slice %23 {offsets = [0, 32], sizes = [2, 16], strides = [1, 1]} : vector<2x48xf32> to vector<2x16xf32>
      %44 = arith.mulf %32, %43 : vector<2x16xf32>
      %45 = arith.extf %42 : vector<2x16xbf16> to vector<2x16xf32>
      %46 = arith.addf %45, %44 : vector<2x16xf32>
      %47 = math.tanh %46 : vector<2x16xf32>
      %cst_21 = arith.constant 1.000000e+00 : f32
      %48 = vector.broadcast %cst_21 : f32 to vector<2x16xf32>
      %49 = arith.subf %48, %41 : vector<2x16xf32>
      %50 = arith.mulf %49, %47 : vector<2x16xf32>
      %51 = arith.mulf %41, %arg9 : vector<2x16xf32>
      %52 = arith.addf %50, %51 : vector<2x16xf32>
      %c0_22 = arith.constant 0 : index
      %53 = arith.index_cast %16 : i32 to index
      %c0_23 = arith.constant 0 : index
      %c0_24 = arith.constant 0 : index
      %54 = vector.load %arg5[%c0_22, %53, %c0_23, %c0_24] : memref<1x8x2x16xf32, #tpu.memory_space<vmem>>, vector<1x1x2x16xf32>
      %55 = vector.shape_cast %54 : vector<1x1x2x16xf32> to vector<2x16xf32>
      %56 = vector.shape_cast %52 : vector<2x16xf32> to vector<1x1x2x16xf32>
      tpu.vector_store %arg5[%c0_22, %53, %c0_23, %c0_24], %56 {strides = array<i32>} : memref<1x8x2x16xf32, #tpu.memory_space<vmem>>, vector<1x1x2x16xf32>,
      scf.yield %52 : vector<2x16xf32>
    }
    %c8_i32_10 = arith.constant 8 : i32
    %c0_11 = arith.constant 0 : index
    %c0_12 = arith.constant 0 : index
    %11 = vector.load %arg7[%c0_11, %c0_12] : memref<2x16xf32, #tpu.memory_space<vmem>>, vector<2x16xf32>
    tpu.vector_store %arg7[%c0_11, %c0_12], %10 {strides = array<i32>} : memref<2x16xf32, #tpu.memory_space<vmem>>, vector<2x16xf32>,
    %c0_13 = arith.constant 0 : index
    %c0_14 = arith.constant 0 : index
    %c0_15 = arith.constant 0 : index
    %12 = vector.load %arg6[%c0_13, %c0_14, %c0_15] : memref<1x2x16xf32, #tpu.memory_space<vmem>>, vector<1x2x16xf32>
    %13 = vector.shape_cast %12 : vector<1x2x16xf32> to vector<2x16xf32>
    %14 = vector.shape_cast %10 : vector<2x16xf32> to vector<1x2x16xf32>
    tpu.vector_store %arg6[%c0_13, %c0_14, %c0_15], %14 {strides = array<i32>} : memref<1x2x16xf32, #tpu.memory_space<vmem>>, vector<1x2x16xf32>,
    return
  }
  func.func @transform_0(%arg0: i32, %arg1: i32) -> (i32, i32, i32, i32) {
    %c0_i32 = arith.constant 0 : i32
    %0 = arith.subi %c0_i32, %arg1 : i32
    %1 = arith.muli %arg0, %0 : i32
    %c1_i32 = arith.constant 1 : i32
    %2 = arith.subi %c1_i32, %arg0 : i32
    %3 = arith.muli %2, %arg1 : i32
    %4 = arith.addi %1, %3 : i32
    %c0_i32_0 = arith.constant 0 : i32
    %c0_i32_1 = arith.constant 0 : i32
    %c0_i32_2 = arith.constant 0 : i32
    return %arg0, %4, %c0_i32_0, %c0_i32_1 : i32, i32, i32, i32
  }
  func.func @transform_1(%arg0: i32, %arg1: i32) -> (i32, i32, i32) {
    %c0_i32 = arith.constant 0 : i32
    %c0_i32_0 = arith.constant 0 : i32
    %c0_i32_1 = arith.constant 0 : i32
    return %arg0, %c0_i32, %c0_i32_0 : i32, i32, i32
  }
  func.func @transform_2(%arg0: i32, %arg1: i32) -> (i32, i32, i32) {
    %c0_i32 = arith.constant 0 : i32
    %c0_i32_0 = arith.constant 0 : i32
    %c0_i32_1 = arith.constant 0 : i32
    return %arg0, %c0_i32, %c0_i32_0 : i32, i32, i32
  }
  func.func @transform_3(%arg0: i32, %arg1: i32) -> (i32, i32, i32, i32) {
    %c0_i32 = arith.constant 0 : i32
    %0 = arith.subi %c0_i32, %arg1 : i32
    %1 = arith.muli %arg0, %0 : i32
    %c1_i32 = arith.constant 1 : i32
    %2 = arith.subi %c1_i32, %arg0 : i32
    %3 = arith.muli %2, %arg1 : i32
    %4 = arith.addi %1, %3 : i32
    %c0_i32_0 = arith.constant 0 : i32
    %c0_i32_1 = arith.constant 0 : i32
    %c0_i32_2 = arith.constant 0 : i32
    return %arg0, %4, %c0_i32_0, %c0_i32_1 : i32, i32, i32, i32
  }
  func.func @transform_4(%arg0: i32, %arg1: i32) -> (i32, i32, i32) {
    %c0_i32 = arith.constant 0 : i32
    %c0_i32_0 = arith.constant 0 : i32
    %c0_i32_1 = arith.constant 0 : i32
    return %arg0, %c0_i32, %c0_i32_0 : i32, i32, i32
  }
}

</mosaic_0001>

<llo_original>
// kernel: encoder_forward.7
$region0: #{encoder_forward.7}
  #allocation0 [shape = 'u32[]', space=smem, size = 0x4, offset = 0x4, fixed_abs, tag = 'smem constant byte address 0x4 - core index']
  #allocation1 [shape = 'u32[144,128]{1,0:T(1,128)}', space=vmem, size = 0x12000, scoped, tag = 'internal scratch']
  %s0 = inlined_call_operand.vmem [shape: f32[16,32], index: 0, kind: input, shape index: {}]
  %s1 = inlined_call_operand.vmem [shape: bf16[32,32], index: 1, kind: input, shape index: {}]
  %s2 = inlined_call_operand.vmem [shape: f32[1,32], index: 2, kind: input, shape index: {}]
  %s3 = inlined_call_operand.vmem [shape: bf16[32,16], index: 3, kind: input, shape index: {}]
  %s4 = inlined_call_operand.vmem [shape: f32[1,16], index: 4, kind: input, shape index: {}]
  %s5 = inlined_call_operand.vmem [shape: bf16[16,16], index: 5, kind: output, shape index: {}]
  %s6 = sld [smem:[#allocation0]]
  $region30: #{encoder_forward.7} parent=0
    _
  %s8 = ssub.s32 1, %s6
  %s9 = scalar_select 0, %s8, %s6
  // Predicated region
  $region2: #{encoder_forward.7} parent=0 // pred_check
    _
  $region3: #{encoder_forward.7} parent=0 // pred_check_branch
    %11 = sbr.rel (0) target = $region5
  $region4: #{encoder_forward.7} parent=0 // pred_region
    _
  $region5: #{encoder_forward.7} parent=0 // pred_fallthru
    _
  // Predicated region
  $region6: #{encoder_forward.7} parent=0 // pred_check
    _
  $region7: #{encoder_forward.7} parent=0 // pred_check_branch
    %13 = sbr.rel (0) target = $region9
  $region8: #{encoder_forward.7} parent=0 // pred_region
    _
  $region9: #{encoder_forward.7} parent=0 // pred_fallthru
    _
  // Predicated region
  $region10: #{encoder_forward.7} parent=0 // pred_check
    _
  $region11: #{encoder_forward.7} parent=0 // pred_check_branch
    %15 = sbr.rel (0) target = $region13
  $region12: #{encoder_forward.7} parent=0 // pred_region
    _
  $region13: #{encoder_forward.7} parent=0 // pred_fallthru
    _
  // Predicated region
  $region14: #{encoder_forward.7} parent=0 // pred_check
    _
  $region15: #{encoder_forward.7} parent=0 // pred_check_branch
    %17 = sbr.rel (0) target = $region17
  $region16: #{encoder_forward.7} parent=0 // pred_region
    _
  $region17: #{encoder_forward.7} parent=0 // pred_fallthru
    _
  // Predicated region
  $region18: #{encoder_forward.7} parent=0 // pred_check
    _
  $region19: #{encoder_forward.7} parent=0 // pred_check_branch
    %19 = sbr.rel (0) target = $region21
  $region20: #{encoder_forward.7} parent=0 // pred_region
    _
  $region21: #{encoder_forward.7} parent=0 // pred_fallthru
    _
  %v21 = vld [vmem:[%s0] sm:$0xff]
  %v22 = vld [vmem:[%s0 + $0x8] sm:$0xff]
  %v23 = vpack.c.bf16 %v22, %v21
  %v24 = vld [vmem:[%s1] sm:$0xf]
  %v25 = vld [vmem:[%s1 + $0x4] sm:$0xf]
  %v26 = vld [vmem:[%s1 + $0x8] sm:$0xf]
  %v27 = vld [vmem:[%s1 + $0xc] sm:$0xf]
  %v28 = vld [vmem:[%s2] sm:$0x1]
  %v30 = vlaneseq
  %v31 = vshrl.u32 %v30, 7
  %v32 = vsub.s32 0, %v31
  %v33 = vrot.slane %v28, %v32
  %v39 = vunpack.c.l.b16 %v24
  %v40 = vunpack.c.l.b16 %v25
  %v41 = vunpack.c.l.b16 %v26
  %v42 = vunpack.c.l.b16 %v27
  %v43 = vpack.c.b16 %v40, %v39
  %v44 = vpack.c.b16 %v42, %v41
  %vm47 = vcmask 261120
  %v49 = vsel %vm47, %v23, 0
  %51 = vmatprep.subr.bf16.mxu0 0
  %52 = vmatpush1.bf16.msra.mxu0 %v43
  %53 = vmatprep.subr.bf16.mxu0 0
  %54 = vmatpush1.bf16.msra.mxu0 %v44
  %55 = vmatprep.subr.bf16.mxu0 0
  %56 = vmatpush1.bf16.msra.mxu0 0
  %57 = vmatprep.subr.bf16.mxu0 0
  %58 = vmatpush1.bf16.msra.mxu0 0
  %59 = vmatprep.subr.bf16.mxu0 0
  %60 = vmatpush1.bf16.msra.mxu0 0
  %61 = vmatprep.subr.bf16.mxu0 0
  %62 = vmatpush1.bf16.msra.mxu0 0
  %63 = vmatprep.subr.bf16.mxu0 0
  %64 = vmatpush1.bf16.msra.mxu0 0
  %65 = vmatprep.subr.bf16.mxu0 0
  %66 = vmatpush1.bf16.msra.mxu0 0
  %67 = vmatprep.subr.bf16.mxu0 0
  %68 = vmatpush1.bf16.msra.mxu0 0
  %69 = vmatprep.subr.bf16.mxu0 0
  %70 = vmatpush1.bf16.msra.mxu0 0
  %71 = vmatprep.subr.bf16.mxu0 0
  %72 = vmatpush1.bf16.msra.mxu0 0
  %73 = vmatprep.subr.bf16.mxu0 0
  %74 = vmatpush1.bf16.msra.mxu0 0
  %75 = vmatprep.subr.bf16.mxu0 0
  %76 = vmatpush1.bf16.msra.mxu0 0
  %77 = vmatprep.subr.bf16.mxu0 0
  %78 = vmatpush1.bf16.msra.mxu0 0
  %79 = vmatprep.subr.bf16.mxu0 0
  %80 = vmatpush1.bf16.msra.mxu0 0
  %81 = vmatprep.subr.bf16.mxu0 0
  %82 = vmatpush1.bf16.msra.mxu0 0
  %83 = vmatprep.mubr.bf16.mxu0 0
  %84 = vmatmul.mubr.bf16.gmra.mrb[0].mxu0 %v49
  %v85 = vpop.f32.mrb[0].mxu0
  %v86 = vadd.f32 %v33, %v85
  %v87 = vpop.f32.mrb[0].mxu0
  %v88 = vpop.f32.mrb[0].mxu0
  %v89 = vadd.f32 %v33, %v88
  %v90 = vpop.f32.mrb[0].mxu0
  %91 = vdwg.mxu0
  %v92 = vmax.f32 %v86, 0.0
  %v93 = vmax.f32 %v89, 0.0
  %v94 = vpack.c.bf16 %v93, %v92
  %v95 = vld [vmem:[%s3] sm:$0xf]
  %v96 = vld [vmem:[%s3 + $0x4] sm:$0xf]
  %v97 = vld [vmem:[%s3 + $0x8] sm:$0xf]
  %v98 = vld [vmem:[%s3 + $0xc] sm:$0xf]
  %v99 = vld [vmem:[%s4] sm:$0x1]
  %v101 = vlaneseq
  %v102 = vshrl.u32 %v101, 7
  %v103 = vsub.s32 0, %v102
  %v104 = vrot.slane %v99, %v103
  %v110 = vunpack.c.l.b16 %v95
  %v111 = vunpack.c.l.b16 %v96
  %v112 = vunpack.c.l.b16 %v97
  %v113 = vunpack.c.l.b16 %v98
  %v114 = vpack.c.b16 %v111, %v110
  %v115 = vpack.c.b16 %v113, %v112
  %v119 = vsel %vm47, %v94, 0
  %121 = vmatprep.subr.bf16.mxu0 0
  %122 = vmatpush1.bf16.msra.mxu0 %v114
  %123 = vmatprep.subr.bf16.mxu0 0
  %124 = vmatpush1.bf16.msra.mxu0 %v115
  %125 = vmatprep.subr.bf16.mxu0 0
  %126 = vmatpush1.bf16.msra.mxu0 0
  %127 = vmatprep.subr.bf16.mxu0 0
  %128 = vmatpush1.bf16.msra.mxu0 0
  %129 = vmatprep.subr.bf16.mxu0 0
  %130 = vmatpush1.bf16.msra.mxu0 0
  %131 = vmatprep.subr.bf16.mxu0 0
  %132 = vmatpush1.bf16.msra.mxu0 0
  %133 = vmatprep.subr.bf16.mxu0 0
  %134 = vmatpush1.bf16.msra.mxu0 0
  %135 = vmatprep.subr.bf16.mxu0 0
  %136 = vmatpush1.bf16.msra.mxu0 0
  %137 = vmatprep.subr.bf16.mxu0 0
  %138 = vmatpush1.bf16.msra.mxu0 0
  %139 = vmatprep.subr.bf16.mxu0 0
  %140 = vmatpush1.bf16.msra.mxu0 0
  %141 = vmatprep.subr.bf16.mxu0 0
  %142 = vmatpush1.bf16.msra.mxu0 0
  %143 = vmatprep.subr.bf16.mxu0 0
  %144 = vmatpush1.bf16.msra.mxu0 0
  %145 = vmatprep.subr.bf16.mxu0 0
  %146 = vmatpush1.bf16.msra.mxu0 0
  %147 = vmatprep.subr.bf16.mxu0 0
  %148 = vmatpush1.bf16.msra.mxu0 0
  %149 = vmatprep.subr.bf16.mxu0 0
  %150 = vmatpush1.bf16.msra.mxu0 0
  %151 = vmatprep.subr.bf16.mxu0 0
  %152 = vmatpush1.bf16.msra.mxu0 0
  %153 = vmatprep.mubr.bf16.mxu0 0
  %154 = vmatmul.mubr.bf16.gmra.mrb[0].mxu0 %v119
  %v155 = vpop.f32.mrb[0].mxu0
  %v156 = vadd.f32 %v104, %v155
  %v157 = vpop.f32.mrb[0].mxu0
  %v158 = vpop.f32.mrb[0].mxu0
  %v159 = vadd.f32 %v104, %v158
  %v160 = vpop.f32.mrb[0].mxu0
  %161 = vdwg.mxu0
  %v162 = vmax.f32 %v156, 0.0
  %v163 = vmax.f32 %v159, 0.0
  %v164 = vpack.c.bf16 %v163, %v162
  %v166 = vunpack.c.l.b16 %v164
  %v167 = vunpack.c.h.b16 %v164
  %v168 = vpack.c.b16 %v166, %v166
  %v169 = vpack.c.b16 %v167, %v167
  %vm172 = vcmask 125952
  %173 = vst.msk [vmem:[%s5] sm:$0xf] %vm172, %v168
  %174 = vst.msk [vmem:[%s5 + $0x4] sm:$0xf] %vm172, %v169
  // Predicated region
  $region22: #{encoder_forward.7} parent=0 // pred_check
    _
  $region23: #{encoder_forward.7} parent=0 // pred_check_branch
    %176 = sbr.rel (0) target = $region25
  $region24: #{encoder_forward.7} parent=0 // pred_region
    _
  $region25: #{encoder_forward.7} parent=0 // pred_fallthru
    _
  // Predicated region
  $region26: #{encoder_forward.7} parent=0 // pred_check
    _
  $region27: #{encoder_forward.7} parent=0 // pred_check_branch
    %178 = sbr.rel (0) target = $region29
  $region28: #{encoder_forward.7} parent=0 // pred_region
    _
  $region29: #{encoder_forward.7} parent=0 // pred_fallthru
    _

// kernel: encoder_forward.9
$region0: #{encoder_forward.9}
  #allocation0 [shape = 'u32[]', space=smem, size = 0x4, offset = 0x4, fixed_abs, tag = 'smem constant byte address 0x4 - core index']
  #allocation1 [shape = 'u32[144,128]{1,0:T(1,128)}', space=vmem, size = 0x12000, scoped, tag = 'internal scratch']
  %s0 = inlined_call_operand.vmem [shape: bf16[16,16], index: 0, kind: input, shape index: {}]
  %s1 = inlined_call_operand.vmem [shape: bf16[2,16,32], index: 1, kind: input, shape index: {}]
  %s2 = inlined_call_operand.vmem [shape: f32[2,1,32], index: 2, kind: input, shape index: {}]
  %s3 = inlined_call_operand.vmem [shape: bf16[16,16], index: 3, kind: output, shape index: {}]
  %s4 = sld [smem:[#allocation0]]
  $region22: #{encoder_forward.9} parent=0
    _
  %s6 = ssub.s32 1, %s4
  %s7 = scalar_select 0, %s6, %s4
  // Predicated region
  $region2: #{encoder_forward.9} parent=0 // pred_check
    _
  $region3: #{encoder_forward.9} parent=0 // pred_check_branch
    %9 = sbr.rel (0) target = $region5
  $region4: #{encoder_forward.9} parent=0 // pred_region
    _
  $region5: #{encoder_forward.9} parent=0 // pred_fallthru
    _
  // Predicated region
  $region6: #{encoder_forward.9} parent=0 // pred_check
    _
  $region7: #{encoder_forward.9} parent=0 // pred_check_branch
    %11 = sbr.rel (0) target = $region9
  $region8: #{encoder_forward.9} parent=0 // pred_region
    _
  $region9: #{encoder_forward.9} parent=0 // pred_fallthru
    _
  // Predicated region
  $region10: #{encoder_forward.9} parent=0 // pred_check
    _
  $region11: #{encoder_forward.9} parent=0 // pred_check_branch
    %13 = sbr.rel (0) target = $region13
  $region12: #{encoder_forward.9} parent=0 // pred_region
    _
  $region13: #{encoder_forward.9} parent=0 // pred_fallthru
    _
  %v15 = vld [vmem:[%s0] sm:$0xf]
  %v16 = vld [vmem:[%s0 + $0x4] sm:$0xf]
  %v17 = vunpack.c.l.bf16 %v15
  %v18 = vunpack.c.l.bf16 %v16
  %v19 = vld [vmem:[%s1] sm:$0xf]
  %v20 = vld [vmem:[%s1 + $0x4] sm:$0xf]
  %v21 = vld [vmem:[%s2] sm:$0x1]
  %v23 = vlaneseq
  %v24 = vshrl.u32 %v23, 7
  %v25 = vsub.s32 0, %v24
  %v26 = vrot.slane %v21, %v25
  %v30 = vunpack.c.l.b16 %v15
  %v31 = vunpack.c.l.b16 %v16
  %v32 = vpack.c.b16 %v31, %v30
  %v35 = vunpack.c.l.b16 %v19
  %v36 = vunpack.c.l.b16 %v20
  %v37 = vpack.c.b16 %v36, %v35
  %vm39 = vcmask 130048
  %v41 = vsel %vm39, %v32, 0
  %43 = vmatprep.subr.bf16.mxu0 0
  %44 = vmatpush1.bf16.msra.mxu0 %v37
  %45 = vmatprep.subr.bf16.mxu0 0
  %46 = vmatpush1.bf16.msra.mxu0 0
  %47 = vmatprep.subr.bf16.mxu0 0
  %48 = vmatpush1.bf16.msra.mxu0 0
  %49 = vmatprep.subr.bf16.mxu0 0
  %50 = vmatpush1.bf16.msra.mxu0 0
  %51 = vmatprep.subr.bf16.mxu0 0
  %52 = vmatpush1.bf16.msra.mxu0 0
  %53 = vmatprep.subr.bf16.mxu0 0
  %54 = vmatpush1.bf16.msra.mxu0 0
  %55 = vmatprep.subr.bf16.mxu0 0
  %56 = vmatpush1.bf16.msra.mxu0 0
  %57 = vmatprep.subr.bf16.mxu0 0
  %58 = vmatpush1.bf16.msra.mxu0 0
  %59 = vmatprep.subr.bf16.mxu0 0
  %60 = vmatpush1.bf16.msra.mxu0 0
  %61 = vmatprep.subr.bf16.mxu0 0
  %62 = vmatpush1.bf16.msra.mxu0 0
  %63 = vmatprep.subr.bf16.mxu0 0
  %64 = vmatpush1.bf16.msra.mxu0 0
  %65 = vmatprep.subr.bf16.mxu0 0
  %66 = vmatpush1.bf16.msra.mxu0 0
  %67 = vmatprep.subr.bf16.mxu0 0
  %68 = vmatpush1.bf16.msra.mxu0 0
  %69 = vmatprep.subr.bf16.mxu0 0
  %70 = vmatpush1.bf16.msra.mxu0 0
  %71 = vmatprep.subr.bf16.mxu0 0
  %72 = vmatpush1.bf16.msra.mxu0 0
  %73 = vmatprep.subr.bf16.mxu0 0
  %74 = vmatpush1.bf16.msra.mxu0 0
  %75 = vmatprep.mubr.bf16.mxu0 0
  %76 = vmatmul.mubr.bf16.gmra.mrb[0].mxu0 %v41
  %v77 = vpop.f32.mrb[0].mxu0
  %v78 = vadd.f32 %v26, %v77
  %v79 = vpop.f32.mrb[0].mxu0
  %v80 = vpop.f32.mrb[0].mxu0
  %v81 = vadd.f32 %v26, %v80
  %v82 = vpop.f32.mrb[0].mxu0
  %83 = vdwg.mxu0
  %v84 = vmax.f32 %v78, 0.0
  %v85 = vmax.f32 %v81, 0.0
  %v86 = vxor.u32 %v78, 2147483648
  %v87 = vxor.u32 %v81, 2147483648
  %v88 = vmul.f32 %v86, 1.442695
  %v89 = vpow.pop %v88
  %v90 = vmul.f32 %v87, 1.442695
  %v91 = vpow.pop %v90
  %v92 = vadd.f32 %v89, 1.0
  %v93 = vadd.f32 %v91, 1.0
  %v94 = vrcp.pop %v92
  %v95 = vmul.f32 1.0, %v94
  %v96 = vrcp.pop %v93
  %v97 = vmul.f32 1.0, %v96
  %100 = vrot.lane.b32.xlu0 %v95, 112
  %v101 = vpop.permute.xlu0 %100
  %102 = vrot.lane.b32.xlu0 %v97, 112
  %v103 = vpop.permute.xlu0 %102
  %v106 = vmul.f32 %v84, %v101
  %v107 = vmul.f32 %v85, %v103
  %v108 = vsub.f32 1.0, %v95
  %v109 = vsub.f32 1.0, %v97
  %112 = vrot.lane.b32.xlu0 %v108, 112
  %v113 = vpop.permute.xlu0 %112
  %114 = vrot.lane.b32.xlu0 %v109, 112
  %v115 = vpop.permute.xlu0 %114
  %v118 = vmul.f32 %v17, %v113
  %v119 = vmul.f32 %v18, %v115
  %v120 = vadd.f32 %v106, %v118
  %v121 = vadd.f32 %v107, %v119
  %v122 = vpack.c.bf16 %v121, %v120
  %s123 = scalar_lea.vmem %s1, 8
  %v124 = vld [vmem:[%s123] sm:$0xf]
  %v125 = vld [vmem:[%s123 + $0x4] sm:$0xf]
  %s126 = scalar_lea.vmem %s2, 1
  %v127 = vld [vmem:[%s126] sm:$0x1]
  %v129 = vlaneseq
  %v130 = vshrl.u32 %v129, 7
  %v131 = vsub.s32 0, %v130
  %v132 = vrot.slane %v127, %v131
  %v136 = vunpack.c.l.b16 %v124
  %v137 = vunpack.c.l.b16 %v125
  %v138 = vpack.c.b16 %v137, %v136
  %v141 = vsel %vm39, %v122, 0
  %143 = vmatprep.subr.bf16.mxu0 0
  %144 = vmatpush1.bf16.msra.mxu0 %v138
  %145 = vmatprep.subr.bf16.mxu0 0
  %146 = vmatpush1.bf16.msra.mxu0 0
  %147 = vmatprep.subr.bf16.mxu0 0
  %148 = vmatpush1.bf16.msra.mxu0 0
  %149 = vmatprep.subr.bf16.mxu0 0
  %150 = vmatpush1.bf16.msra.mxu0 0
  %151 = vmatprep.subr.bf16.mxu0 0
  %152 = vmatpush1.bf16.msra.mxu0 0
  %153 = vmatprep.subr.bf16.mxu0 0
  %154 = vmatpush1.bf16.msra.mxu0 0
  %155 = vmatprep.subr.bf16.mxu0 0
  %156 = vmatpush1.bf16.msra.mxu0 0
  %157 = vmatprep.subr.bf16.mxu0 0
  %158 = vmatpush1.bf16.msra.mxu0 0
  %159 = vmatprep.subr.bf16.mxu0 0
  %160 = vmatpush1.bf16.msra.mxu0 0
  %161 = vmatprep.subr.bf16.mxu0 0
  %162 = vmatpush1.bf16.msra.mxu0 0
  %163 = vmatprep.subr.bf16.mxu0 0
  %164 = vmatpush1.bf16.msra.mxu0 0
  %165 = vmatprep.subr.bf16.mxu0 0
  %166 = vmatpush1.bf16.msra.mxu0 0
  %167 = vmatprep.subr.bf16.mxu0 0
  %168 = vmatpush1.bf16.msra.mxu0 0
  %169 = vmatprep.subr.bf16.mxu0 0
  %170 = vmatpush1.bf16.msra.mxu0 0
  %171 = vmatprep.subr.bf16.mxu0 0
  %172 = vmatpush1.bf16.msra.mxu0 0
  %173 = vmatprep.subr.bf16.mxu0 0
  %174 = vmatpush1.bf16.msra.mxu0 0
  %175 = vmatprep.mubr.bf16.mxu0 0
  %176 = vmatmul.mubr.bf16.gmra.mrb[0].mxu0 %v141
  %v177 = vpop.f32.mrb[0].mxu0
  %v178 = vadd.f32 %v132, %v177
  %v179 = vpop.f32.mrb[0].mxu0
  %v180 = vpop.f32.mrb[0].mxu0
  %v181 = vadd.f32 %v132, %v180
  %v182 = vpop.f32.mrb[0].mxu0
  %183 = vdwg.mxu0
  %v184 = vmax.f32 %v178, 0.0
  %v185 = vmax.f32 %v181, 0.0
  %v186 = vxor.u32 %v178, 2147483648
  %v187 = vxor.u32 %v181, 2147483648
  %v188 = vmul.f32 %v186, 1.442695
  %v189 = vpow.pop %v188
  %v190 = vmul.f32 %v187, 1.442695
  %v191 = vpow.pop %v190
  %v192 = vadd.f32 %v189, 1.0
  %v193 = vadd.f32 %v191, 1.0
  %v194 = vrcp.pop %v192
  %v195 = vmul.f32 1.0, %v194
  %v196 = vrcp.pop %v193
  %v197 = vmul.f32 1.0, %v196
  %200 = vrot.lane.b32.xlu0 %v195, 112
  %v201 = vpop.permute.xlu0 %200
  %202 = vrot.lane.b32.xlu0 %v197, 112
  %v203 = vpop.permute.xlu0 %202
  %v206 = vmul.f32 %v184, %v201
  %v207 = vmul.f32 %v185, %v203
  %v208 = vsub.f32 1.0, %v195
  %v209 = vsub.f32 1.0, %v197
  %212 = vrot.lane.b32.xlu0 %v208, 112
  %v213 = vpop.permute.xlu0 %212
  %214 = vrot.lane.b32.xlu0 %v209, 112
  %v215 = vpop.permute.xlu0 %214
  %v218 = vmul.f32 %v120, %v213
  %v219 = vmul.f32 %v121, %v215
  %v220 = vadd.f32 %v206, %v218
  %v221 = vadd.f32 %v207, %v219
  %v222 = vpack.c.bf16 %v221, %v220
  %v224 = vunpack.c.l.b16 %v222
  %v225 = vunpack.c.h.b16 %v222
  %v226 = vpack.c.b16 %v224, %v224
  %v227 = vpack.c.b16 %v225, %v225
  %vm230 = vcmask 125952
  %231 = vst.msk [vmem:[%s3] sm:$0xf] %vm230, %v226
  %232 = vst.msk [vmem:[%s3 + $0x4] sm:$0xf] %vm230, %v227
  // Predicated region
  $region14: #{encoder_forward.9} parent=0 // pred_check
    _
  $region15: #{encoder_forward.9} parent=0 // pred_check_branch
    %234 = sbr.rel (0) target = $region17
  $region16: #{encoder_forward.9} parent=0 // pred_region
    _
  $region17: #{encoder_forward.9} parent=0 // pred_fallthru
    _
  // Predicated region
  $region18: #{encoder_forward.9} parent=0 // pred_check
    _
  $region19: #{encoder_forward.9} parent=0 // pred_check_branch
    %236 = sbr.rel (0) target = $region21
  $region20: #{encoder_forward.9} parent=0 // pred_region
    _
  $region21: #{encoder_forward.9} parent=0 // pred_fallthru
    _

// kernel: encoder_forward.10
$region0: #{encoder_forward.10}
  #allocation0 [shape = 'u32[]', space=smem, size = 0x4, offset = 0x4, fixed_abs, tag = 'smem constant byte address 0x4 - core index']
  #allocation1 [shape = 'u32[144,128]{1,0:T(1,128)}', space=vmem, size = 0x12000, scoped, tag = 'internal scratch']
  %s0 = inlined_call_operand.vmem [shape: bf16[16,16], index: 0, kind: input, shape index: {}]
  %s1 = inlined_call_operand.vmem [shape: bf16[2,16,48], index: 1, kind: input, shape index: {}]
  %s2 = inlined_call_operand.vmem [shape: f32[2,1,48], index: 2, kind: input, shape index: {}]
  %s3 = inlined_call_operand.vmem [shape: bf16[2,16,48], index: 3, kind: output, shape index: {}]
  %s4 = sld [smem:[#allocation0]]
  $region45: #{encoder_forward.10} parent=0
    _
  %s6 = ssub.s32 1, %s4
  %s7 = scalar_select 0, %s6, %s4
  loop: start=0, step=1, limit=4
  $region2: #{encoder_forward.10} parent=0 // loop_pre_header
    _
  $region3: #{encoder_forward.10} parent=0 // loop_header
    %s9 = sphi 0, %s13
    %p10 = scmp.ge.s32.totalorder %s9, 4
    %s16 = sphi 0, %s28
    %s17 = sphi 0, %s24
    %s18 = sphi 0, %s16
    %s19 = sphi 0, %s17
    %s20 = sphi 0, %s18
    %s21 = sphi 0, %s19
    %s31 = sphi 0, %s33
    %s34 = sphi 0, %s31
    %s35 = sphi 0, %s34
    %s51 = sphi 0, %s35
    %s57 = sphi 0, %s59
    %s60 = sphi 0, %s57
    %s61 = sphi 0, %s60
    %s77 = sphi 0, %s61
    %s83 = sphi 0, %s85
    %s86 = sphi 0, %s83
    %s87 = sphi 0, %s86
    %s103 = sphi 0, %s87
    %s111 = sphi 0, %s113
    %s114 = sphi 0, %s111
    %s115 = sphi 0, %s114
    %s131 = sphi 0, %s115
  $region4: #{encoder_forward.10} parent=0 // loop_header_branch
    %12 = sbr.rel (%p10) target = $region8
  $region5: #{encoder_forward.10} parent=0 // loop_body
    %s14 = ssub.s32 %s9, 1
    %s15 = ssub.s32 %s9, 2
    %s22 = sadd.s32 1, %s17
    %p23 = scmp.ge.s32.totalorder %s22, 2
    %s24 = scalar_select %p23, 0, %s22
    %s25 = sadd.s32 1, %s16
    %s26 = scalar_select %p23, %s25, %s16
    %p27 = scmp.ge.s32.totalorder %s26, 1
    %s28 = scalar_select %p27, 0, %s26
    %s29 = ssub.s32 %s16, %s28
    %p30 = scmp.eq.s32.totalorder %s29, 0
    %s32 = sadd.s32 %s31, 1
    %s33 = scalar_select %p30, %s31, %s32
    %p36 = pneg %p30
    %p37 = scmp.eq.s32.totalorder %s9, 1
    %p38 = por %p36, %p37
    %p39 = scmp.ne.s32.totalorder %s31, %s34
    %p40 = scmp.eq.s32.totalorder %s9, 0
    %p41 = por %p39, %p40
    %p42 = scmp.ne.s32.totalorder %s31, %s34
    %p43 = scmp.eq.s32.totalorder %s14, 1
    %p44 = por %p42, %p43
    %p45 = scmp.ne.s32.totalorder %s34, %s35
    %p46 = scmp.eq.s32.totalorder %s14, 0
    %p47 = por %p45, %p46
    %p48 = scmp.ne.s32.totalorder %s34, %s35
    %p49 = scmp.eq.s32.totalorder %s15, 1
    %p50 = por %p48, %p49
    %p52 = scmp.ne.s32.totalorder %s35, %s51
    %p53 = scmp.eq.s32.totalorder %s15, 0
    %p54 = por %p52, %p53
    %s55 = ssub.s32 %s17, %s24
    %p56 = scmp.eq.s32.totalorder %s55, 0
    %s58 = sadd.s32 %s57, 1
    %s59 = scalar_select %p56, %s57, %s58
    %p62 = pneg %p56
    %p63 = scmp.eq.s32.totalorder %s9, 1
    %p64 = por %p62, %p63
    %p65 = scmp.ne.s32.totalorder %s57, %s60
    %p66 = scmp.eq.s32.totalorder %s9, 0
    %p67 = por %p65, %p66
    %p68 = scmp.ne.s32.totalorder %s57, %s60
    %p69 = scmp.eq.s32.totalorder %s14, 1
    %p70 = por %p68, %p69
    %p71 = scmp.ne.s32.totalorder %s60, %s61
    %p72 = scmp.eq.s32.totalorder %s14, 0
    %p73 = por %p71, %p72
    %p74 = scmp.ne.s32.totalorder %s60, %s61
    %p75 = scmp.eq.s32.totalorder %s15, 1
    %p76 = por %p74, %p75
    %p78 = scmp.ne.s32.totalorder %s61, %s77
    %p79 = scmp.eq.s32.totalorder %s15, 0
    %p80 = por %p78, %p79
    %s81 = ssub.s32 %s17, %s24
    %p82 = scmp.eq.s32.totalorder %s81, 0
    %s84 = sadd.s32 %s83, 1
    %s85 = scalar_select %p82, %s83, %s84
    %p88 = pneg %p82
    %p89 = scmp.eq.s32.totalorder %s9, 1
    %p90 = por %p88, %p89
    %p91 = scmp.ne.s32.totalorder %s83, %s86
    %p92 = scmp.eq.s32.totalorder %s9, 0
    %p93 = por %p91, %p92
    %p94 = scmp.ne.s32.totalorder %s83, %s86
    %p95 = scmp.eq.s32.totalorder %s14, 1
    %p96 = por %p94, %p95
    %p97 = scmp.ne.s32.totalorder %s86, %s87
    %p98 = scmp.eq.s32.totalorder %s14, 0
    %p99 = por %p97, %p98
    %p100 = scmp.ne.s32.totalorder %s86, %s87
    %p101 = scmp.eq.s32.totalorder %s15, 1
    %p102 = por %p100, %p101
    %p104 = scmp.ne.s32.totalorder %s87, %s103
    %p105 = scmp.eq.s32.totalorder %s15, 0
    %p106 = por %p104, %p105
    %s107 = ssub.s32 %s17, %s24
    %s108 = ssub.s32 %s16, %s28
    %s109 = sor.u32 %s107, %s108
    %p110 = scmp.eq.s32.totalorder %s109, 0
    %s112 = sadd.s32 %s111, 1
    %s113 = scalar_select %p110, %s111, %s112
    %p116 = pneg %p110
    %p117 = scmp.eq.s32.totalorder %s9, 1
    %p118 = por %p116, %p117
    %p119 = scmp.ne.s32.totalorder %s111, %s114
    %p120 = scmp.eq.s32.totalorder %s9, 0
    %p121 = por %p119, %p120
    %p122 = scmp.ne.s32.totalorder %s111, %s114
    %p123 = scmp.eq.s32.totalorder %s14, 1
    %p124 = por %p122, %p123
    %p125 = scmp.ne.s32.totalorder %s114, %s115
    %p126 = scmp.eq.s32.totalorder %s14, 0
    %p127 = por %p125, %p126
    %p128 = scmp.ne.s32.totalorder %s114, %s115
    %p129 = scmp.eq.s32.totalorder %s15, 1
    %p130 = por %p128, %p129
    %p132 = scmp.ne.s32.totalorder %s115, %s131
    %p133 = scmp.eq.s32.totalorder %s15, 0
    %p134 = por %p132, %p133
    %p135 = scmp.le.s32.totalorder 1, %s9
    %p136 = scmp.lt.s32.totalorder %s9, 3
    %p137 = pnand %p135, %p136
    %p138 = pneg %p137
    // Predicated region
    $region9: #{encoder_forward.10} parent=5 // pred_check
      _
    $region10: #{encoder_forward.10} parent=5 // pred_check_branch
      %140 = sbr.rel (%p137) target = $region12
    $region11: #{encoder_forward.10} parent=5 // pred_region
      %s141 = ssub.s32 %s9, 1
      // Predicated region
      $region13: #{encoder_forward.10} parent=11 // pred_check
        %p142 = pneg %p47
      $region14: #{encoder_forward.10} parent=11 // pred_check_branch
        %144 = sbr.rel (%p142) target = $region16
      $region15: #{encoder_forward.10} parent=11 // pred_region
        %s145 = smul.u32 2, %s18
        %p146 = scmp.lt.s32.totalorder %s145, 1
        %s147 = scalar_select %p146, %s145, 1
        %s148 = smul.addr %s147, 4
        %s149 = scalar_lea.vmem %s0, %s148
        %s150 = smul.u32 2, %s18
      $region16: #{encoder_forward.10} parent=11 // pred_fallthru
        _
    $region12: #{encoder_forward.10} parent=5 // pred_fallthru
      _
    %p151 = scmp.lt.s32.totalorder %s9, 2
    // Predicated region
    $region17: #{encoder_forward.10} parent=5 // pred_check
      %p152 = pneg %p151
    $region18: #{encoder_forward.10} parent=5 // pred_check_branch
      %154 = sbr.rel (%p152) target = $region20
    $region19: #{encoder_forward.10} parent=5 // pred_region
      // Predicated region
      $region21: #{encoder_forward.10} parent=19 // pred_check
        %p155 = pneg %p67
      $region22: #{encoder_forward.10} parent=19 // pred_check_branch
        %157 = sbr.rel (%p155) target = $region24
      $region23: #{encoder_forward.10} parent=19 // pred_region
        %p158 = scmp.lt.s32.totalorder %s17, 1
        %s159 = scalar_select %p158, %s17, 1
        %s160 = smul.addr %s159, 2
        %s161 = smul.addr %s160, 4
        %s162 = scalar_lea.vmem %s1, %s161
      $region24: #{encoder_forward.10} parent=19 // pred_fallthru
        _
      // Predicated region
      $region25: #{encoder_forward.10} parent=19 // pred_check
        %p163 = pneg %p93
      $region26: #{encoder_forward.10} parent=19 // pred_check_branch
        %165 = sbr.rel (%p163) target = $region28
      $region27: #{encoder_forward.10} parent=19 // pred_region
        %p166 = scmp.lt.s32.totalorder %s17, 1
        %s167 = scalar_select %p166, %s17, 1
        %s168 = scalar_lea.vmem %s2, %s167
      $region28: #{encoder_forward.10} parent=19 // pred_fallthru
        _
    $region20: #{encoder_forward.10} parent=5 // pred_fallthru
      _
    %p169 = scmp.le.s32.totalorder 1, %s9
    %p170 = scmp.lt.s32.totalorder %s9, 3
    %p171 = pnand %p169, %p170
    %p172 = pneg %p171
    // Predicated region
    $region29: #{encoder_forward.10} parent=5 // pred_check
      _
    $region30: #{encoder_forward.10} parent=5 // pred_check_branch
      %174 = sbr.rel (%p171) target = $region32
    $region31: #{encoder_forward.10} parent=5 // pred_region
      %s175 = ssub.s32 %s9, 1
      %s176 = smul.u32 2, %s18
      %p177 = scmp.lt.s32.totalorder %s176, 1
      %s178 = scalar_select %p177, %s176, 1
      %s179 = smul.addr %s178, 4
      %s180 = scalar_lea.vmem %s0, %s179
      %p181 = pneg %p47
      %p182 = pneg %p44
      %p183 = scmp.lt.s32.totalorder %s19, 1
      %s184 = scalar_select %p183, %s19, 1
      %s185 = smul.addr %s184, 2
      %s186 = smul.addr %s185, 4
      %s187 = scalar_lea.vmem %s1, %s186
      %p188 = pneg %p73
      %p189 = pneg %p70
      %p190 = scmp.lt.s32.totalorder %s19, 1
      %s191 = scalar_select %p190, %s19, 1
      %s192 = scalar_lea.vmem %s2, %s191
      %p193 = pneg %p99
      %p194 = pneg %p96
      %p195 = pneg %p127
      %p196 = pneg %p124
      %s197 = smul.u32 2, %s18
      %p198 = scmp.lt.s32.totalorder %s19, 1
      %s199 = scalar_select %p198, %s19, 1
      %p200 = scmp.lt.s32.totalorder %s197, 1
      %s201 = scalar_select %p200, %s197, 1
      %s202 = smul.addr %s199, 2
      %s203 = sadd.s32 %s201, %s202
      %s204 = smul.addr %s203, 4
      %s205 = scalar_lea.vmem %s3, %s204
      %s206 = smul.u32 2, %s18
      %p207 = scmp.lt.s32.totalorder %s206, 1
      %s208 = scalar_select %p207, %s206, 1
      %s209 = smul.addr %s208, 4
      %s210 = scalar_lea.vmem %s0, %s209
      %s211 = smul.u32 2, %s18
      %p212 = scmp.lt.s32.totalorder %s19, 1
      %s213 = scalar_select %p212, %s19, 1
      %s214 = smul.addr %s213, 2
      %s215 = smul.addr %s214, 4
      %s216 = scalar_lea.vmem %s1, %s215
      %p217 = scmp.lt.s32.totalorder %s19, 1
      %s218 = scalar_select %p217, %s19, 1
      %s219 = scalar_lea.vmem %s2, %s218
      %s220 = smul.u32 2, %s18
      %p221 = scmp.lt.s32.totalorder %s19, 1
      %s222 = scalar_select %p221, %s19, 1
      %p223 = scmp.lt.s32.totalorder %s220, 1
      %s224 = scalar_select %p223, %s220, 1
      %s225 = smul.addr %s222, 2
      %s226 = sadd.s32 %s224, %s225
      %s227 = smul.addr %s226, 4
      %s228 = scalar_lea.vmem %s3, %s227
      %s229 = smul.u32 2, %s18
      %v231 = vld [vmem:[%s210] sm:$0xf]
      %v232 = vld [vmem:[%s210 + $0x4] sm:$0xf]
      %v233 = vld [vmem:[%s216] sm:$0xf]
      %v234 = vld [vmem:[%s216 + $0x4] sm:$0xf]
      %v235 = vld [vmem:[%s219] sm:$0x1]
      %v237 = vlaneseq
      %v238 = vshrl.u32 %v237, 7
      %v239 = vsub.s32 0, %v238
      %v240 = vrot.slane %v235, %v239
      %v244 = vunpack.c.l.b16 %v231
      %v245 = vunpack.c.l.b16 %v232
      %v246 = vpack.c.b16 %v245, %v244
      %v249 = vunpack.c.l.b16 %v233
      %v250 = vunpack.c.l.b16 %v234
      %v251 = vpack.c.b16 %v250, %v249
      %vm253 = vcmask 130048
      %v255 = vsel %vm253, %v246, 0
      %257 = vmatprep.subr.bf16.mxu0 0
      %258 = vmatpush1.bf16.msra.mxu0 %v251
      %259 = vmatprep.subr.bf16.mxu0 0
      %260 = vmatpush1.bf16.msra.mxu0 0
      %261 = vmatprep.subr.bf16.mxu0 0
      %262 = vmatpush1.bf16.msra.mxu0 0
      %263 = vmatprep.subr.bf16.mxu0 0
      %264 = vmatpush1.bf16.msra.mxu0 0
      %265 = vmatprep.subr.bf16.mxu0 0
      %266 = vmatpush1.bf16.msra.mxu0 0
      %267 = vmatprep.subr.bf16.mxu0 0
      %268 = vmatpush1.bf16.msra.mxu0 0
      %269 = vmatprep.subr.bf16.mxu0 0
      %270 = vmatpush1.bf16.msra.mxu0 0
      %271 = vmatprep.subr.bf16.mxu0 0
      %272 = vmatpush1.bf16.msra.mxu0 0
      %273 = vmatprep.subr.bf16.mxu0 0
      %274 = vmatpush1.bf16.msra.mxu0 0
      %275 = vmatprep.subr.bf16.mxu0 0
      %276 = vmatpush1.bf16.msra.mxu0 0
      %277 = vmatprep.subr.bf16.mxu0 0
      %278 = vmatpush1.bf16.msra.mxu0 0
      %279 = vmatprep.subr.bf16.mxu0 0
      %280 = vmatpush1.bf16.msra.mxu0 0
      %281 = vmatprep.subr.bf16.mxu0 0
      %282 = vmatpush1.bf16.msra.mxu0 0
      %283 = vmatprep.subr.bf16.mxu0 0
      %284 = vmatpush1.bf16.msra.mxu0 0
      %285 = vmatprep.subr.bf16.mxu0 0
      %286 = vmatpush1.bf16.msra.mxu0 0
      %287 = vmatprep.subr.bf16.mxu0 0
      %288 = vmatpush1.bf16.msra.mxu0 0
      %289 = vmatprep.mubr.bf16.mxu0 0
      %290 = vmatmul.mubr.bf16.gmra.mrb[0].mxu0 %v255
      %v291 = vpop.f32.mrb[0].mxu0
      %v292 = vadd.f32 %v240, %v291
      %v293 = vpop.f32.mrb[0].mxu0
      %v294 = vpop.f32.mrb[0].mxu0
      %v295 = vadd.f32 %v240, %v294
      %v296 = vpop.f32.mrb[0].mxu0
      %297 = vdwg.mxu0
      %v298 = vpack.c.bf16 %v295, %v292
      %v300 = vunpack.c.l.b16 %v298
      %v301 = vunpack.c.h.b16 %v298
      %v302 = vpack.c.b16 %v300, %v300
      %v303 = vpack.c.b16 %v301, %v301
      %vm306 = vcmask 388096
      %307 = vst.msk [vmem:[%s228] sm:$0xf] %vm306, %v302
      %308 = vst.msk [vmem:[%s228 + $0x4] sm:$0xf] %vm306, %v303
      %s309 = smul.u32 2, %s18
      %p310 = scmp.lt.s32.totalorder %s19, 1
      %s311 = scalar_select %p310, %s19, 1
      %p312 = scmp.lt.s32.totalorder %s309, 1
      %s313 = scalar_select %p312, %s309, 1
      %s314 = smul.addr %s311, 2
      %s315 = sadd.s32 %s313, %s314
      %s316 = smul.addr %s315, 4
      %s317 = scalar_lea.vmem %s3, %s316
      // Predicated region
      $region33: #{encoder_forward.10} parent=31 // pred_check
        %p318 = pneg %p124
      $region34: #{encoder_forward.10} parent=31 // pred_check_branch
        %320 = sbr.rel (%p318) target = $region36
      $region35: #{encoder_forward.10} parent=31 // pred_region
        %s321 = smul.u32 2, %s18
      $region36: #{encoder_forward.10} parent=31 // pred_fallthru
        _
    $region32: #{encoder_forward.10} parent=5 // pred_fallthru
      _
    %p322 = scmp.le.s32.totalorder 2, %s9
    // Predicated region
    $region37: #{encoder_forward.10} parent=5 // pred_check
      %p323 = pneg %p322
    $region38: #{encoder_forward.10} parent=5 // pred_check_branch
      %325 = sbr.rel (%p323) target = $region40
    $region39: #{encoder_forward.10} parent=5 // pred_region
      %s326 = ssub.s32 %s9, 2
      // Predicated region
      $region41: #{encoder_forward.10} parent=39 // pred_check
        %p327 = pneg %p130
      $region42: #{encoder_forward.10} parent=39 // pred_check_branch
        %329 = sbr.rel (%p327) target = $region44
      $region43: #{encoder_forward.10} parent=39 // pred_region
        %s330 = smul.u32 2, %s20
        %p331 = scmp.lt.s32.totalorder %s21, 1
        %s332 = scalar_select %p331, %s21, 1
        %p333 = scmp.lt.s32.totalorder %s330, 1
        %s334 = scalar_select %p333, %s330, 1
        %s335 = smul.addr %s332, 2
        %s336 = sadd.s32 %s334, %s335
        %s337 = smul.addr %s336, 4
        %s338 = scalar_lea.vmem %s3, %s337
      $region44: #{encoder_forward.10} parent=39 // pred_fallthru
        _
    $region40: #{encoder_forward.10} parent=5 // pred_fallthru
      _
  $region6: #{encoder_forward.10} parent=0 // loop_footer
    %s13 = sadd.s32 1, %s9
  $region7: #{encoder_forward.10} parent=0 // loop_footer_branch
    %8 = sbr.rel target = $region3
  $region8: #{encoder_forward.10} parent=0 // loop_exit
    _

// kernel: encoder_forward.8
$region0: #{encoder_forward.8}
  #allocation0 [shape = 'u32[]', space=smem, size = 0x4, offset = 0x4, fixed_abs, tag = 'smem constant byte address 0x4 - core index']
  #allocation1 [shape = 'u32[144,128]{1,0:T(1,128)}', space=vmem, size = 0x12000, scoped, tag = 'internal scratch']
  #allocation2 [shape = 'bf16[11,16]{1,0:T(8,128)(2,1)}', space=vmem, size = 0x1000, scoped, tag = 'scratch operand']
  #allocation3 [shape = 'bf16[10,64]{1,0:T(8,128)(2,1)}', space=vmem, size = 0x1000, scoped, tag = 'scratch operand']
  #allocation4 [shape = 'bf16[10,16]{1,0:T(8,128)(2,1)}', space=vmem, size = 0x1000, scoped, tag = 'scratch operand']
  %s0 = inlined_call_operand.vmem [shape: bf16[2,8,16], index: 0, kind: input, shape index: {}]
  %s1 = inlined_call_operand.vmem [shape: bf16[2,32,64], index: 1, kind: input, shape index: {}]
  %s2 = inlined_call_operand.vmem [shape: f32[1,64], index: 2, kind: input, shape index: {}]
  %s3 = inlined_call_operand.vmem [shape: f32[1,64], index: 3, kind: input, shape index: {}]
  %s4 = inlined_call_operand.vmem [shape: bf16[3,64,16], index: 4, kind: input, shape index: {}]
  %s5 = inlined_call_operand.vmem [shape: f32[1,16], index: 5, kind: input, shape index: {}]
  %s6 = inlined_call_operand.vmem [shape: f32[1,16], index: 6, kind: input, shape index: {}]
  %s7 = inlined_call_operand.vmem [shape: bf16[48,16], index: 7, kind: input, shape index: {}]
  %s8 = inlined_call_operand.vmem [shape: f32[1,16], index: 8, kind: input, shape index: {}]
  %s9 = inlined_call_operand.vmem [shape: f32[1,16], index: 9, kind: input, shape index: {}]
  %s10 = inlined_call_operand.vmem [shape: bf16[2,8,16], index: 10, kind: output, shape index: {}]
  %s11 = sld [smem:[#allocation0]]
  $region73: #{encoder_forward.8} parent=0
    _
  %s13 = ssub.s32 1, %s11
  %s14 = scalar_select 0, %s13, %s11
  loop: start=0, step=1, limit=4
  $region2: #{encoder_forward.8} parent=0 // loop_pre_header
    _
  $region3: #{encoder_forward.8} parent=0 // loop_header
    %s16 = sphi 0, %s20
    %p17 = scmp.ge.s32.totalorder %s16, 4
    %s26 = sphi 0, %s28
    %s29 = sphi 0, %s26
    %s30 = sphi 0, %s29
    %s46 = sphi 0, %s30
    %s50 = sphi 0, %s50
    %s52 = sphi 0, %s50
    %s53 = sphi 0, %s52
    %s67 = sphi 0, %s53
    %s71 = sphi 0, %s71
    %s73 = sphi 0, %s71
    %s74 = sphi 0, %s73
    %s88 = sphi 0, %s74
    %s92 = sphi 0, %s92
    %s94 = sphi 0, %s92
    %s95 = sphi 0, %s94
    %s109 = sphi 0, %s95
    %s113 = sphi 0, %s113
    %s115 = sphi 0, %s113
    %s116 = sphi 0, %s115
    %s130 = sphi 0, %s116
    %s134 = sphi 0, %s134
    %s136 = sphi 0, %s134
    %s137 = sphi 0, %s136
    %s151 = sphi 0, %s137
    %s155 = sphi 0, %s155
    %s157 = sphi 0, %s155
    %s158 = sphi 0, %s157
    %s172 = sphi 0, %s158
    %s176 = sphi 0, %s176
    %s178 = sphi 0, %s176
    %s179 = sphi 0, %s178
    %s193 = sphi 0, %s179
    %s197 = sphi 0, %s197
    %s199 = sphi 0, %s197
    %s200 = sphi 0, %s199
    %s214 = sphi 0, %s200
    %s218 = sphi 0, %s218
    %s220 = sphi 0, %s218
    %s221 = sphi 0, %s220
    %s235 = sphi 0, %s221
    %s241 = sphi 0, %s243
    %s244 = sphi 0, %s241
    %s245 = sphi 0, %s244
    %s261 = sphi 0, %s245
  $region4: #{encoder_forward.8} parent=0 // loop_header_branch
    %19 = sbr.rel (%p17) target = $region8
  $region5: #{encoder_forward.8} parent=0 // loop_body
    %s21 = ssub.s32 %s16, 1
    %s22 = ssub.s32 %s16, 2
    %s23 = sadd.s32 %s16, 1
    %s24 = ssub.s32 %s16, %s23
    %p25 = scmp.eq.s32.totalorder %s24, 0
    %s27 = sadd.s32 %s26, 1
    %s28 = scalar_select %p25, %s26, %s27
    %p31 = pneg %p25
    %p32 = scmp.eq.s32.totalorder %s16, 1
    %p33 = por %p31, %p32
    %p34 = scmp.ne.s32.totalorder %s26, %s29
    %p35 = scmp.eq.s32.totalorder %s16, 0
    %p36 = por %p34, %p35
    %p37 = scmp.ne.s32.totalorder %s26, %s29
    %p38 = scmp.eq.s32.totalorder %s21, 1
    %p39 = por %p37, %p38
    %p40 = scmp.ne.s32.totalorder %s29, %s30
    %p41 = scmp.eq.s32.totalorder %s21, 0
    %p42 = por %p40, %p41
    %p43 = scmp.ne.s32.totalorder %s29, %s30
    %p44 = scmp.eq.s32.totalorder %s22, 1
    %p45 = por %p43, %p44
    %p47 = scmp.ne.s32.totalorder %s30, %s46
    %p48 = scmp.eq.s32.totalorder %s22, 0
    %p49 = por %p47, %p48
    %s51 = sadd.s32 %s50, 1
    %p54 = scmp.eq.s32.totalorder %s16, 1
    %p55 = scmp.ne.s32.totalorder %s50, %s52
    %p56 = scmp.eq.s32.totalorder %s16, 0
    %p57 = por %p55, %p56
    %p58 = scmp.ne.s32.totalorder %s50, %s52
    %p59 = scmp.eq.s32.totalorder %s21, 1
    %p60 = por %p58, %p59
    %p61 = scmp.ne.s32.totalorder %s52, %s53
    %p62 = scmp.eq.s32.totalorder %s21, 0
    %p63 = por %p61, %p62
    %p64 = scmp.ne.s32.totalorder %s52, %s53
    %p65 = scmp.eq.s32.totalorder %s22, 1
    %p66 = por %p64, %p65
    %p68 = scmp.ne.s32.totalorder %s53, %s67
    %p69 = scmp.eq.s32.totalorder %s22, 0
    %p70 = por %p68, %p69
    %s72 = sadd.s32 %s71, 1
    %p75 = scmp.eq.s32.totalorder %s16, 1
    %p76 = scmp.ne.s32.totalorder %s71, %s73
    %p77 = scmp.eq.s32.totalorder %s16, 0
    %p78 = por %p76, %p77
    %p79 = scmp.ne.s32.totalorder %s71, %s73
    %p80 = scmp.eq.s32.totalorder %s21, 1
    %p81 = por %p79, %p80
    %p82 = scmp.ne.s32.totalorder %s73, %s74
    %p83 = scmp.eq.s32.totalorder %s21, 0
    %p84 = por %p82, %p83
    %p85 = scmp.ne.s32.totalorder %s73, %s74
    %p86 = scmp.eq.s32.totalorder %s22, 1
    %p87 = por %p85, %p86
    %p89 = scmp.ne.s32.totalorder %s74, %s88
    %p90 = scmp.eq.s32.totalorder %s22, 0
    %p91 = por %p89, %p90
    %s93 = sadd.s32 %s92, 1
    %p96 = scmp.eq.s32.totalorder %s16, 1
    %p97 = scmp.ne.s32.totalorder %s92, %s94
    %p98 = scmp.eq.s32.totalorder %s16, 0
    %p99 = por %p97, %p98
    %p100 = scmp.ne.s32.totalorder %s92, %s94
    %p101 = scmp.eq.s32.totalorder %s21, 1
    %p102 = por %p100, %p101
    %p103 = scmp.ne.s32.totalorder %s94, %s95
    %p104 = scmp.eq.s32.totalorder %s21, 0
    %p105 = por %p103, %p104
    %p106 = scmp.ne.s32.totalorder %s94, %s95
    %p107 = scmp.eq.s32.totalorder %s22, 1
    %p108 = por %p106, %p107
    %p110 = scmp.ne.s32.totalorder %s95, %s109
    %p111 = scmp.eq.s32.totalorder %s22, 0
    %p112 = por %p110, %p111
    %s114 = sadd.s32 %s113, 1
    %p117 = scmp.eq.s32.totalorder %s16, 1
    %p118 = scmp.ne.s32.totalorder %s113, %s115
    %p119 = scmp.eq.s32.totalorder %s16, 0
    %p120 = por %p118, %p119
    %p121 = scmp.ne.s32.totalorder %s113, %s115
    %p122 = scmp.eq.s32.totalorder %s21, 1
    %p123 = por %p121, %p122
    %p124 = scmp.ne.s32.totalorder %s115, %s116
    %p125 = scmp.eq.s32.totalorder %s21, 0
    %p126 = por %p124, %p125
    %p127 = scmp.ne.s32.totalorder %s115, %s116
    %p128 = scmp.eq.s32.totalorder %s22, 1
    %p129 = por %p127, %p128
    %p131 = scmp.ne.s32.totalorder %s116, %s130
    %p132 = scmp.eq.s32.totalorder %s22, 0
    %p133 = por %p131, %p132
    %s135 = sadd.s32 %s134, 1
    %p138 = scmp.eq.s32.totalorder %s16, 1
    %p139 = scmp.ne.s32.totalorder %s134, %s136
    %p140 = scmp.eq.s32.totalorder %s16, 0
    %p141 = por %p139, %p140
    %p142 = scmp.ne.s32.totalorder %s134, %s136
    %p143 = scmp.eq.s32.totalorder %s21, 1
    %p144 = por %p142, %p143
    %p145 = scmp.ne.s32.totalorder %s136, %s137
    %p146 = scmp.eq.s32.totalorder %s21, 0
    %p147 = por %p145, %p146
    %p148 = scmp.ne.s32.totalorder %s136, %s137
    %p149 = scmp.eq.s32.totalorder %s22, 1
    %p150 = por %p148, %p149
    %p152 = scmp.ne.s32.totalorder %s137, %s151
    %p153 = scmp.eq.s32.totalorder %s22, 0
    %p154 = por %p152, %p153
    %s156 = sadd.s32 %s155, 1
    %p159 = scmp.eq.s32.totalorder %s16, 1
    %p160 = scmp.ne.s32.totalorder %s155, %s157
    %p161 = scmp.eq.s32.totalorder %s16, 0
    %p162 = por %p160, %p161
    %p163 = scmp.ne.s32.totalorder %s155, %s157
    %p164 = scmp.eq.s32.totalorder %s21, 1
    %p165 = por %p163, %p164
    %p166 = scmp.ne.s32.totalorder %s157, %s158
    %p167 = scmp.eq.s32.totalorder %s21, 0
    %p168 = por %p166, %p167
    %p169 = scmp.ne.s32.totalorder %s157, %s158
    %p170 = scmp.eq.s32.totalorder %s22, 1
    %p171 = por %p169, %p170
    %p173 = scmp.ne.s32.totalorder %s158, %s172
    %p174 = scmp.eq.s32.totalorder %s22, 0
    %p175 = por %p173, %p174
    %s177 = sadd.s32 %s176, 1
    %p180 = scmp.eq.s32.totalorder %s16, 1
    %p181 = scmp.ne.s32.totalorder %s176, %s178
    %p182 = scmp.eq.s32.totalorder %s16, 0
    %p183 = por %p181, %p182
    %p184 = scmp.ne.s32.totalorder %s176, %s178
    %p185 = scmp.eq.s32.totalorder %s21, 1
    %p186 = por %p184, %p185
    %p187 = scmp.ne.s32.totalorder %s178, %s179
    %p188 = scmp.eq.s32.totalorder %s21, 0
    %p189 = por %p187, %p188
    %p190 = scmp.ne.s32.totalorder %s178, %s179
    %p191 = scmp.eq.s32.totalorder %s22, 1
    %p192 = por %p190, %p191
    %p194 = scmp.ne.s32.totalorder %s179, %s193
    %p195 = scmp.eq.s32.totalorder %s22, 0
    %p196 = por %p194, %p195
    %s198 = sadd.s32 %s197, 1
    %p201 = scmp.eq.s32.totalorder %s16, 1
    %p202 = scmp.ne.s32.totalorder %s197, %s199
    %p203 = scmp.eq.s32.totalorder %s16, 0
    %p204 = por %p202, %p203
    %p205 = scmp.ne.s32.totalorder %s197, %s199
    %p206 = scmp.eq.s32.totalorder %s21, 1
    %p207 = por %p205, %p206
    %p208 = scmp.ne.s32.totalorder %s199, %s200
    %p209 = scmp.eq.s32.totalorder %s21, 0
    %p210 = por %p208, %p209
    %p211 = scmp.ne.s32.totalorder %s199, %s200
    %p212 = scmp.eq.s32.totalorder %s22, 1
    %p213 = por %p211, %p212
    %p215 = scmp.ne.s32.totalorder %s200, %s214
    %p216 = scmp.eq.s32.totalorder %s22, 0
    %p217 = por %p215, %p216
    %s219 = sadd.s32 %s218, 1
    %p222 = scmp.eq.s32.totalorder %s16, 1
    %p223 = scmp.ne.s32.totalorder %s218, %s220
    %p224 = scmp.eq.s32.totalorder %s16, 0
    %p225 = por %p223, %p224
    %p226 = scmp.ne.s32.totalorder %s218, %s220
    %p227 = scmp.eq.s32.totalorder %s21, 1
    %p228 = por %p226, %p227
    %p229 = scmp.ne.s32.totalorder %s220, %s221
    %p230 = scmp.eq.s32.totalorder %s21, 0
    %p231 = por %p229, %p230
    %p232 = scmp.ne.s32.totalorder %s220, %s221
    %p233 = scmp.eq.s32.totalorder %s22, 1
    %p234 = por %p232, %p233
    %p236 = scmp.ne.s32.totalorder %s221, %s235
    %p237 = scmp.eq.s32.totalorder %s22, 0
    %p238 = por %p236, %p237
    %s239 = ssub.s32 %s16, %s23
    %p240 = scmp.eq.s32.totalorder %s239, 0
    %s242 = sadd.s32 %s241, 1
    %s243 = scalar_select %p240, %s241, %s242
    %p246 = pneg %p240
    %p247 = scmp.eq.s32.totalorder %s16, 1
    %p248 = por %p246, %p247
    %p249 = scmp.ne.s32.totalorder %s241, %s244
    %p250 = scmp.eq.s32.totalorder %s16, 0
    %p251 = por %p249, %p250
    %p252 = scmp.ne.s32.totalorder %s241, %s244
    %p253 = scmp.eq.s32.totalorder %s21, 1
    %p254 = por %p252, %p253
    %p255 = scmp.ne.s32.totalorder %s244, %s245
    %p256 = scmp.eq.s32.totalorder %s21, 0
    %p257 = por %p255, %p256
    %p258 = scmp.ne.s32.totalorder %s244, %s245
    %p259 = scmp.eq.s32.totalorder %s22, 1
    %p260 = por %p258, %p259
    %p262 = scmp.ne.s32.totalorder %s245, %s261
    %p263 = scmp.eq.s32.totalorder %s22, 0
    %p264 = por %p262, %p263
    %p265 = scmp.le.s32.totalorder 1, %s16
    %p266 = scmp.lt.s32.totalorder %s16, 3
    %p267 = pnand %p265, %p266
    %p268 = pneg %p267
    // Predicated region
    $region9: #{encoder_forward.8} parent=5 // pred_check
      _
    $region10: #{encoder_forward.8} parent=5 // pred_check_branch
      %270 = sbr.rel (%p267) target = $region12
    $region11: #{encoder_forward.8} parent=5 // pred_region
      %s271 = ssub.s32 %s16, 1
      // Predicated region
      $region13: #{encoder_forward.8} parent=11 // pred_check
        %p272 = pneg %p63
      $region14: #{encoder_forward.8} parent=11 // pred_check_branch
        %274 = sbr.rel (%p272) target = $region16
      $region15: #{encoder_forward.8} parent=11 // pred_region
        _
      $region16: #{encoder_forward.8} parent=11 // pred_fallthru
        _
      // Predicated region
      $region17: #{encoder_forward.8} parent=11 // pred_check
        %p275 = pneg %p84
      $region18: #{encoder_forward.8} parent=11 // pred_check_branch
        %277 = sbr.rel (%p275) target = $region20
      $region19: #{encoder_forward.8} parent=11 // pred_region
        _
      $region20: #{encoder_forward.8} parent=11 // pred_fallthru
        _
      // Predicated region
      $region21: #{encoder_forward.8} parent=11 // pred_check
        %p278 = pneg %p105
      $region22: #{encoder_forward.8} parent=11 // pred_check_branch
        %280 = sbr.rel (%p278) target = $region24
      $region23: #{encoder_forward.8} parent=11 // pred_region
        _
      $region24: #{encoder_forward.8} parent=11 // pred_fallthru
        _
      // Predicated region
      $region25: #{encoder_forward.8} parent=11 // pred_check
        %p281 = pneg %p126
      $region26: #{encoder_forward.8} parent=11 // pred_check_branch
        %283 = sbr.rel (%p281) target = $region28
      $region27: #{encoder_forward.8} parent=11 // pred_region
        _
      $region28: #{encoder_forward.8} parent=11 // pred_fallthru
        _
      // Predicated region
      $region29: #{encoder_forward.8} parent=11 // pred_check
        %p284 = pneg %p147
      $region30: #{encoder_forward.8} parent=11 // pred_check_branch
        %286 = sbr.rel (%p284) target = $region32
      $region31: #{encoder_forward.8} parent=11 // pred_region
        _
      $region32: #{encoder_forward.8} parent=11 // pred_fallthru
        _
      // Predicated region
      $region33: #{encoder_forward.8} parent=11 // pred_check
        %p287 = pneg %p168
      $region34: #{encoder_forward.8} parent=11 // pred_check_branch
        %289 = sbr.rel (%p287) target = $region36
      $region35: #{encoder_forward.8} parent=11 // pred_region
        _
      $region36: #{encoder_forward.8} parent=11 // pred_fallthru
        _
      // Predicated region
      $region37: #{encoder_forward.8} parent=11 // pred_check
        %p290 = pneg %p189
      $region38: #{encoder_forward.8} parent=11 // pred_check_branch
        %292 = sbr.rel (%p290) target = $region40
      $region39: #{encoder_forward.8} parent=11 // pred_region
        _
      $region40: #{encoder_forward.8} parent=11 // pred_fallthru
        _
      // Predicated region
      $region41: #{encoder_forward.8} parent=11 // pred_check
        %p293 = pneg %p210
      $region42: #{encoder_forward.8} parent=11 // pred_check_branch
        %295 = sbr.rel (%p293) target = $region44
      $region43: #{encoder_forward.8} parent=11 // pred_region
        _
      $region44: #{encoder_forward.8} parent=11 // pred_fallthru
        _
      // Predicated region
      $region45: #{encoder_forward.8} parent=11 // pred_check
        %p296 = pneg %p231
      $region46: #{encoder_forward.8} parent=11 // pred_check_branch
        %298 = sbr.rel (%p296) target = $region48
      $region47: #{encoder_forward.8} parent=11 // pred_region
        _
      $region48: #{encoder_forward.8} parent=11 // pred_fallthru
        _
    $region12: #{encoder_forward.8} parent=5 // pred_fallthru
      _
    %p299 = scmp.lt.s32.totalorder %s16, 2
    // Predicated region
    $region49: #{encoder_forward.8} parent=5 // pred_check
      %p300 = pneg %p299
    $region50: #{encoder_forward.8} parent=5 // pred_check_branch
      %302 = sbr.rel (%p300) target = $region52
    $region51: #{encoder_forward.8} parent=5 // pred_region
      // Predicated region
      $region53: #{encoder_forward.8} parent=51 // pred_check
        %p303 = pneg %p36
      $region54: #{encoder_forward.8} parent=51 // pred_check_branch
        %305 = sbr.rel (%p303) target = $region56
      $region55: #{encoder_forward.8} parent=51 // pred_region
        %p306 = scmp.lt.s32.totalorder %s16, 1
        %s307 = scalar_select %p306, %s16, 1
        %s308 = smul.addr %s307, 4
        %s309 = scalar_lea.vmem %s0, %s308
      $region56: #{encoder_forward.8} parent=51 // pred_fallthru
        _
    $region52: #{encoder_forward.8} parent=5 // pred_fallthru
      _
    %p310 = scmp.le.s32.totalorder 1, %s16
    %p311 = scmp.lt.s32.totalorder %s16, 3
    %p312 = pnand %p310, %p311
    %p313 = pneg %p312
    // Predicated region
    $region57: #{encoder_forward.8} parent=5 // pred_check
      _
    $region58: #{encoder_forward.8} parent=5 // pred_check_branch
      %315 = sbr.rel (%p312) target = $region60
    $region59: #{encoder_forward.8} parent=5 // pred_region
      %s316 = ssub.s32 %s16, 1
      %p317 = scmp.lt.s32.totalorder %s21, 1
      %s318 = scalar_select %p317, %s21, 1
      %s319 = smul.addr %s318, 4
      %s320 = scalar_lea.vmem %s0, %s319
      %p321 = pneg %p42
      %p322 = pneg %p39
      %p323 = pneg %p63
      %p324 = pneg %p60
      %p325 = pneg %p84
      %p326 = pneg %p81
      %p327 = pneg %p105
      %p328 = pneg %p102
      %p329 = pneg %p126
      %p330 = pneg %p123
      %p331 = pneg %p147
      %p332 = pneg %p144
      %p333 = pneg %p168
      %p334 = pneg %p165
      %p335 = pneg %p189
      %p336 = pneg %p186
      %p337 = pneg %p210
      %p338 = pneg %p207
      %p339 = pneg %p231
      %p340 = pneg %p228
      %p341 = pneg %p257
      %p342 = pneg %p254
      %p343 = scmp.lt.s32.totalorder %s21, 1
      %s344 = scalar_select %p343, %s21, 1
      %s345 = smul.addr %s344, 4
      %s346 = scalar_lea.vmem %s10, %s345
      %p347 = scmp.lt.s32.totalorder %s21, 1
      %s348 = scalar_select %p347, %s21, 1
      %s349 = smul.addr %s348, 4
      %s350 = scalar_lea.vmem %s0, %s349
      %p351 = scmp.lt.s32.totalorder %s21, 1
      %s352 = scalar_select %p351, %s21, 1
      %s353 = smul.addr %s352, 4
      %s354 = scalar_lea.vmem %s10, %s353
      %vm356 = vcmask 122880
      %357 = vst.msk [vmem:[#allocation2] sm:$0x1] %vm356, 0
      %vm358 = vcmask 123905
      %vm359 = vsmask.f32 1280
      %vm360 = vmand %vm358, %vm359
      %v361 = vld [vmem:[#allocation2 + $0x4] sm:$0x2]
      %v362 = vsel %vm360, 0, %v361
      %363 = vst [vmem:[#allocation2 + $0x4] sm:$0x2] %v362
      %v364 = vld [vmem:[%s350] sm:$0xf]
      %v366 = vrot.slane %v364, 7
      %v367 = vrot.slane %v366, 4
      %vm370 = vcmask 125953
      %371 = vst.msk [vmem:[#allocation2] sm:$0xe] %vm370, %v366
      %372 = vst.msk [vmem:[#allocation2 + $0x4] sm:$0x1] %vm356, %v367
      %v373 = vld [vmem:[#allocation2] sm:$0xf]
      %v374 = vld [vmem:[#allocation2 + $0x4] sm:$0x1]
      %v377 = vunpack.c.l.b16 %v373
      %v378 = vunpack.c.l.b16 %v374
      %v379 = vpack.c.b16 %v378, %v377
      %v381 = vshrl.u32 %v379, 16
      %v383 = vshll.u32 %v379, 16
      %v385 = vrot.slane %v383, 1
      %v386 = vor.u32 %v381, %v385
      %387 = vrot.lane.b32.xlu0 %v386, 16
      %v388 = vpop.permute.xlu0 %387
      %vm389 = vcmask 130048
      %v392 = vsel %vm389, %v373, %v388
      %v393 = vld [vmem:[%s1] sm:$0xf]
      %v394 = vld [vmem:[%s1 + $0x4] sm:$0xf]
      %v395 = vld [vmem:[%s1 + $0x8] sm:$0xf]
      %v396 = vld [vmem:[%s1 + $0xc] sm:$0xf]
      %v397 = vld [vmem:[#allocation2] sm:$0xe]
      %v398 = vld [vmem:[#allocation2 + $0x4] sm:$0x3]
      %v400 = vunpack.c.l.b16 %v397
      %v401 = vpack.c.b16 %v378, %v400
      %v403 = vunpack.c.l.b16 %v398
      %v404 = vpack.c.b16 %v403, %v400
      %v406 = vshrl.u32 %v404, 16
      %v408 = vshll.u32 %v404, 16
      %v410 = vrot.slane %v408, 1
      %v411 = vor.u32 %v406, %v410
      %412 = vrot.lane.b32.xlu0 %v411, 16
      %v413 = vpop.permute.xlu0 %412
      %v416 = vsel %vm389, %v401, %v413
      %s417 = scalar_lea.vmem %s1, 16
      %v418 = vld [vmem:[%s417] sm:$0xf]
      %v419 = vld [vmem:[%s417 + $0x4] sm:$0xf]
      %v420 = vld [vmem:[%s417 + $0x8] sm:$0xf]
      %v421 = vld [vmem:[%s417 + $0xc] sm:$0xf]
      %v423 = vrot.slane %v416, 1
      %v428 = vunpack.c.l.b16 %v418
      %v429 = vunpack.c.l.b16 %v419
      %v430 = vunpack.c.l.b16 %v420
      %v431 = vunpack.c.l.b16 %v421
      %v432 = vpack.c.b16 %v429, %v428
      %v433 = vpack.c.b16 %v431, %v430
      %vm436 = vcmask 261120
      %v438 = vsel %vm436, %v423, 0
      %440 = vmatprep.subr.bf16.mxu0 0
      %441 = vmatpush1.bf16.msra.mxu0 %v432
      %442 = vmatprep.subr.bf16.mxu0 0
      %443 = vmatpush1.bf16.msra.mxu0 %v433
      %444 = vmatprep.subr.bf16.mxu0 0
      %445 = vmatpush1.bf16.msra.mxu0 0
      %446 = vmatprep.subr.bf16.mxu0 0
      %447 = vmatpush1.bf16.msra.mxu0 0
      %448 = vmatprep.subr.bf16.mxu0 0
      %449 = vmatpush1.bf16.msra.mxu0 0
      %450 = vmatprep.subr.bf16.mxu0 0
      %451 = vmatpush1.bf16.msra.mxu0 0
      %452 = vmatprep.subr.bf16.mxu0 0
      %453 = vmatpush1.bf16.msra.mxu0 0
      %454 = vmatprep.subr.bf16.mxu0 0
      %455 = vmatpush1.bf16.msra.mxu0 0
      %456 = vmatprep.subr.bf16.mxu0 0
      %457 = vmatpush1.bf16.msra.mxu0 0
      %458 = vmatprep.subr.bf16.mxu0 0
      %459 = vmatpush1.bf16.msra.mxu0 0
      %460 = vmatprep.subr.bf16.mxu0 0
      %461 = vmatpush1.bf16.msra.mxu0 0
      %462 = vmatprep.subr.bf16.mxu0 0
      %463 = vmatpush1.bf16.msra.mxu0 0
      %464 = vmatprep.subr.bf16.mxu0 0
      %465 = vmatpush1.bf16.msra.mxu0 0
      %466 = vmatprep.subr.bf16.mxu0 0
      %467 = vmatpush1.bf16.msra.mxu0 0
      %468 = vmatprep.subr.bf16.mxu0 0
      %469 = vmatpush1.bf16.msra.mxu0 0
      %470 = vmatprep.subr.bf16.mxu0 0
      %471 = vmatpush1.bf16.msra.mxu0 0
      %472 = vmatprep.mubr.bf16.mxu0 0
      %473 = vmatmul.mubr.bf16.gmra.mrb[0].mxu0 %v438
      %v474 = vpop.f32.mrb[0].mxu0
      %v475 = vadd.f32 0.0, %v474
      %v476 = vpop.f32.mrb[0].mxu0
      %v477 = vpop.f32.mrb[0].mxu0
      %v478 = vpop.f32.mrb[0].mxu0
      %479 = vdwg.mxu0
      %v484 = vunpack.c.l.b16 %v393
      %v485 = vunpack.c.l.b16 %v394
      %v486 = vunpack.c.l.b16 %v395
      %v487 = vunpack.c.l.b16 %v396
      %v488 = vpack.c.b16 %v485, %v484
      %v489 = vpack.c.b16 %v487, %v486
      %v492 = vsel %vm436, %v392, 0
      %494 = vmatprep.subr.bf16.mxu0 0
      %495 = vmatpush1.bf16.msra.mxu0 %v488
      %496 = vmatprep.subr.bf16.mxu0 0
      %497 = vmatpush1.bf16.msra.mxu0 %v489
      %498 = vmatprep.subr.bf16.mxu0 0
      %499 = vmatpush1.bf16.msra.mxu0 0
      %500 = vmatprep.subr.bf16.mxu0 0
      %501 = vmatpush1.bf16.msra.mxu0 0
      %502 = vmatprep.subr.bf16.mxu0 0
      %503 = vmatpush1.bf16.msra.mxu0 0
      %504 = vmatprep.subr.bf16.mxu0 0
      %505 = vmatpush1.bf16.msra.mxu0 0
      %506 = vmatprep.subr.bf16.mxu0 0
      %507 = vmatpush1.bf16.msra.mxu0 0
      %508 = vmatprep.subr.bf16.mxu0 0
      %509 = vmatpush1.bf16.msra.mxu0 0
      %510 = vmatprep.subr.bf16.mxu0 0
      %511 = vmatpush1.bf16.msra.mxu0 0
      %512 = vmatprep.subr.bf16.mxu0 0
      %513 = vmatpush1.bf16.msra.mxu0 0
      %514 = vmatprep.subr.bf16.mxu0 0
      %515 = vmatpush1.bf16.msra.mxu0 0
      %516 = vmatprep.subr.bf16.mxu0 0
      %517 = vmatpush1.bf16.msra.mxu0 0
      %518 = vmatprep.subr.bf16.mxu0 0
      %519 = vmatpush1.bf16.msra.mxu0 0
      %520 = vmatprep.subr.bf16.mxu0 0
      %521 = vmatpush1.bf16.msra.mxu0 0
      %522 = vmatprep.subr.bf16.mxu0 0
      %523 = vmatpush1.bf16.msra.mxu0 0
      %524 = vmatprep.subr.bf16.mxu0 0
      %525 = vmatpush1.bf16.msra.mxu0 0
      %526 = vmatprep.mubr.bf16.mxu0 0
      %527 = vmatmul.mubr.bf16.gmra.mrb[0].mxu0 %v492
      %v528 = vpop.f32.mrb[0].mxu0
      %v529 = vadd.f32 %v475, %v528
      %v530 = vpop.f32.mrb[0].mxu0
      %v531 = vpop.f32.mrb[0].mxu0
      %v532 = vpop.f32.mrb[0].mxu0
      %533 = vdwg.mxu0
      %v534 = vld [vmem:[%s2] sm:$0x1]
      %v536 = vlaneseq
      %v537 = vshrl.u32 %v536, 7
      %v538 = vsub.s32 0, %v537
      %v539 = vrot.slane %v534, %v538
      %v541 = vmul.f32 %v529, %v539
      %v542 = vld [vmem:[%s3] sm:$0x1]
      %v544 = vlaneseq
      %v545 = vshrl.u32 %v544, 7
      %v546 = vsub.s32 0, %v545
      %v547 = vrot.slane %v542, %v546
      %v549 = vadd.f32 %v541, %v547
      %v550 = vmax.f32 %v549, 0.0
      %vm551 = vcmask 516096
      %vm552 = vsmask.f32 256
      %vm553 = vmand %vm551, %vm552
      %v554 = vld [vmem:[#allocation3] sm:$0x1]
      %v555 = vsel %vm553, 0, %v554
      %556 = vst [vmem:[#allocation3] sm:$0x1] %v555
      %vm557 = vsmask.f32 7938
      %vm558 = vmand %vm551, %vm557
      %v559 = vld [vmem:[#allocation3 + $0x4] sm:$0x1]
      %v560 = vsel %vm558, 0, %v559
      %561 = vst [vmem:[#allocation3 + $0x4] sm:$0x1] %v560
      %v563 = vrot.slane %v550, 1
      %v565 = vmax.f32 %v550, %v563
      %v566 = vpack.c.bf16 %v565, %v565
      %v568 = vunpack.c.l.b16 %v566
      %v569 = vpack.c.b16 %v568, %v568
      %v571 = vshrl.u32 %v569, 16
      %v573 = vrot.slane %v571, 7
      %v574 = vshll.u32 %v569, 16
      %v576 = vor.u32 %v573, %v574
      %vm578 = vcmask 519168
      %vm579 = vmand %vm578, %vm557
      %v580 = vld [vmem:[#allocation3] sm:$0xf]
      %v581 = vsel %vm579, %v576, %v580
      %582 = vst [vmem:[#allocation3] sm:$0xf] %v581
      %v583 = vpack.c.bf16 %v550, %v550
      %v585 = vunpack.c.l.b16 %v583
      %v586 = vpack.c.b16 %v585, %v585
      %v588 = vshrl.u32 %v586, 16
      %v590 = vrot.slane %v588, 7
      %v591 = vrot.slane %v590, 4
      %v593 = vld [vmem:[#allocation3 + $0x4] sm:$0x1]
      %v594 = vsel %vm553, %v591, %v593
      %595 = vst [vmem:[#allocation3 + $0x4] sm:$0x1] %v594
      %v596 = vld [vmem:[#allocation3] sm:$0xf]
      %v597 = vld [vmem:[%s4] sm:$0xf]
      %v598 = vld [vmem:[%s4 + $0x4] sm:$0xf]
      %v599 = vld [vmem:[%s4 + $0x8] sm:$0xf]
      %v600 = vld [vmem:[%s4 + $0xc] sm:$0xf]
      %v601 = vld [vmem:[%s4 + $0x10] sm:$0xf]
      %v602 = vld [vmem:[%s4 + $0x14] sm:$0xf]
      %v603 = vld [vmem:[%s4 + $0x18] sm:$0xf]
      %v604 = vld [vmem:[%s4 + $0x1c] sm:$0xf]
      %v605 = vld [vmem:[#allocation3 + $0x4] sm:$0x1]
      %s606 = scalar_lea.vmem %s4, 32
      %v607 = vld [vmem:[%s606] sm:$0xf]
      %v608 = vld [vmem:[%s606 + $0x4] sm:$0xf]
      %v609 = vld [vmem:[%s606 + $0x8] sm:$0xf]
      %v610 = vld [vmem:[%s606 + $0xc] sm:$0xf]
      %v611 = vld [vmem:[%s606 + $0x10] sm:$0xf]
      %v612 = vld [vmem:[%s606 + $0x14] sm:$0xf]
      %v613 = vld [vmem:[%s606 + $0x18] sm:$0xf]
      %v614 = vld [vmem:[%s606 + $0x1c] sm:$0xf]
      %v617 = vunpack.c.l.b16 %v596
      %v618 = vunpack.c.l.b16 %v605
      %v619 = vpack.c.b16 %v618, %v617
      %v621 = vshrl.u32 %v619, 16
      %v623 = vshll.u32 %v619, 16
      %v625 = vrot.slane %v623, 1
      %v626 = vor.u32 %v621, %v625
      %v635 = vunpack.c.l.b16 %v607
      %v636 = vunpack.c.l.b16 %v608
      %v637 = vunpack.c.l.b16 %v609
      %v638 = vunpack.c.l.b16 %v610
      %v639 = vunpack.c.l.b16 %v611
      %v640 = vunpack.c.l.b16 %v612
      %v641 = vunpack.c.l.b16 %v613
      %v642 = vunpack.c.l.b16 %v614
      %v643 = vpack.c.b16 %v636, %v635
      %v644 = vpack.c.b16 %v638, %v637
      %v645 = vpack.c.b16 %v640, %v639
      %v646 = vpack.c.b16 %v642, %v641
      %vm651 = vcmask 523264
      %v653 = vsel %vm651, %v626, 0
      %655 = vmatprep.subr.bf16.mxu0 0
      %656 = vmatpush1.bf16.msra.mxu0 %v643
      %657 = vmatprep.subr.bf16.mxu0 0
      %658 = vmatpush1.bf16.msra.mxu0 %v644
      %659 = vmatprep.subr.bf16.mxu0 0
      %660 = vmatpush1.bf16.msra.mxu0 %v645
      %661 = vmatprep.subr.bf16.mxu0 0
      %662 = vmatpush1.bf16.msra.mxu0 %v646
      %663 = vmatprep.subr.bf16.mxu0 0
      %664 = vmatpush1.bf16.msra.mxu0 0
      %665 = vmatprep.subr.bf16.mxu0 0
      %666 = vmatpush1.bf16.msra.mxu0 0
      %667 = vmatprep.subr.bf16.mxu0 0
      %668 = vmatpush1.bf16.msra.mxu0 0
      %669 = vmatprep.subr.bf16.mxu0 0
      %670 = vmatpush1.bf16.msra.mxu0 0
      %671 = vmatprep.subr.bf16.mxu0 0
      %672 = vmatpush1.bf16.msra.mxu0 0
      %673 = vmatprep.subr.bf16.mxu0 0
      %674 = vmatpush1.bf16.msra.mxu0 0
      %675 = vmatprep.subr.bf16.mxu0 0
      %676 = vmatpush1.bf16.msra.mxu0 0
      %677 = vmatprep.subr.bf16.mxu0 0
      %678 = vmatpush1.bf16.msra.mxu0 0
      %679 = vmatprep.subr.bf16.mxu0 0
      %680 = vmatpush1.bf16.msra.mxu0 0
      %681 = vmatprep.subr.bf16.mxu0 0
      %682 = vmatpush1.bf16.msra.mxu0 0
      %683 = vmatprep.subr.bf16.mxu0 0
      %684 = vmatpush1.bf16.msra.mxu0 0
      %685 = vmatprep.subr.bf16.mxu0 0
      %686 = vmatpush1.bf16.msra.mxu0 0
      %687 = vmatprep.mubr.bf16.mxu0 0
      %688 = vmatmul.mubr.bf16.gmra.mrb[0].mxu0 %v653
      %v689 = vpop.f32.mrb[0].mxu0
      %v690 = vadd.f32 0.0, %v689
      %v691 = vpop.f32.mrb[0].mxu0
      %v692 = vpop.f32.mrb[0].mxu0
      %v693 = vpop.f32.mrb[0].mxu0
      %694 = vdwg.mxu0
      %v703 = vunpack.c.l.b16 %v597
      %v704 = vunpack.c.l.b16 %v598
      %v705 = vunpack.c.l.b16 %v599
      %v706 = vunpack.c.l.b16 %v600
      %v707 = vunpack.c.l.b16 %v601
      %v708 = vunpack.c.l.b16 %v602
      %v709 = vunpack.c.l.b16 %v603
      %v710 = vunpack.c.l.b16 %v604
      %v711 = vpack.c.b16 %v704, %v703
      %v712 = vpack.c.b16 %v706, %v705
      %v713 = vpack.c.b16 %v708, %v707
      %v714 = vpack.c.b16 %v710, %v709
      %v720 = vsel %vm651, %v596, 0
      %722 = vmatprep.subr.bf16.mxu0 0
      %723 = vmatpush1.bf16.msra.mxu0 %v711
      %724 = vmatprep.subr.bf16.mxu0 0
      %725 = vmatpush1.bf16.msra.mxu0 %v712
      %726 = vmatprep.subr.bf16.mxu0 0
      %727 = vmatpush1.bf16.msra.mxu0 %v713
      %728 = vmatprep.subr.bf16.mxu0 0
      %729 = vmatpush1.bf16.msra.mxu0 %v714
      %730 = vmatprep.subr.bf16.mxu0 0
      %731 = vmatpush1.bf16.msra.mxu0 0
      %732 = vmatprep.subr.bf16.mxu0 0
      %733 = vmatpush1.bf16.msra.mxu0 0
      %734 = vmatprep.subr.bf16.mxu0 0
      %735 = vmatpush1.bf16.msra.mxu0 0
      %736 = vmatprep.subr.bf16.mxu0 0
      %737 = vmatpush1.bf16.msra.mxu0 0
      %738 = vmatprep.subr.bf16.mxu0 0
      %739 = vmatpush1.bf16.msra.mxu0 0
      %740 = vmatprep.subr.bf16.mxu0 0
      %741 = vmatpush1.bf16.msra.mxu0 0
      %742 = vmatprep.subr.bf16.mxu0 0
      %743 = vmatpush1.bf16.msra.mxu0 0
      %744 = vmatprep.subr.bf16.mxu0 0
      %745 = vmatpush1.bf16.msra.mxu0 0
      %746 = vmatprep.subr.bf16.mxu0 0
      %747 = vmatpush1.bf16.msra.mxu0 0
      %748 = vmatprep.subr.bf16.mxu0 0
      %749 = vmatpush1.bf16.msra.mxu0 0
      %750 = vmatprep.subr.bf16.mxu0 0
      %751 = vmatpush1.bf16.msra.mxu0 0
      %752 = vmatprep.subr.bf16.mxu0 0
      %753 = vmatpush1.bf16.msra.mxu0 0
      %754 = vmatprep.mubr.bf16.mxu0 0
      %755 = vmatmul.mubr.bf16.gmra.mrb[0].mxu0 %v720
      %v756 = vpop.f32.mrb[0].mxu0
      %v757 = vadd.f32 %v690, %v756
      %v758 = vpop.f32.mrb[0].mxu0
      %v759 = vpop.f32.mrb[0].mxu0
      %v760 = vpop.f32.mrb[0].mxu0
      %761 = vdwg.mxu0
      %v762 = vld [vmem:[#allocation3] sm:$0xe]
      %s763 = scalar_lea.vmem %s4, 64
      %v764 = vld [vmem:[%s763] sm:$0xf]
      %v765 = vld [vmem:[%s763 + $0x4] sm:$0xf]
      %v766 = vld [vmem:[%s763 + $0x8] sm:$0xf]
      %v767 = vld [vmem:[%s763 + $0xc] sm:$0xf]
      %v768 = vld [vmem:[%s763 + $0x10] sm:$0xf]
      %v769 = vld [vmem:[%s763 + $0x14] sm:$0xf]
      %v770 = vld [vmem:[%s763 + $0x18] sm:$0xf]
      %v771 = vld [vmem:[%s763 + $0x1c] sm:$0xf]
      %v773 = vunpack.c.l.b16 %v762
      %v774 = vpack.c.b16 %v618, %v773
      %v775 = vrot.slane %v774, 1
      %v784 = vunpack.c.l.b16 %v764
      %v785 = vunpack.c.l.b16 %v765
      %v786 = vunpack.c.l.b16 %v766
      %v787 = vunpack.c.l.b16 %v767
      %v788 = vunpack.c.l.b16 %v768
      %v789 = vunpack.c.l.b16 %v769
      %v790 = vunpack.c.l.b16 %v770
      %v791 = vunpack.c.l.b16 %v771
      %v792 = vpack.c.b16 %v785, %v784
      %v793 = vpack.c.b16 %v787, %v786
      %v794 = vpack.c.b16 %v789, %v788
      %v795 = vpack.c.b16 %v791, %v790
      %v801 = vsel %vm651, %v775, 0
      %803 = vmatprep.subr.bf16.mxu0 0
      %804 = vmatpush1.bf16.msra.mxu0 %v792
      %805 = vmatprep.subr.bf16.mxu0 0
      %806 = vmatpush1.bf16.msra.mxu0 %v793
      %807 = vmatprep.subr.bf16.mxu0 0
      %808 = vmatpush1.bf16.msra.mxu0 %v794
      %809 = vmatprep.subr.bf16.mxu0 0
      %810 = vmatpush1.bf16.msra.mxu0 %v795
      %811 = vmatprep.subr.bf16.mxu0 0
      %812 = vmatpush1.bf16.msra.mxu0 0
      %813 = vmatprep.subr.bf16.mxu0 0
      %814 = vmatpush1.bf16.msra.mxu0 0
      %815 = vmatprep.subr.bf16.mxu0 0
      %816 = vmatpush1.bf16.msra.mxu0 0
      %817 = vmatprep.subr.bf16.mxu0 0
      %818 = vmatpush1.bf16.msra.mxu0 0
      %819 = vmatprep.subr.bf16.mxu0 0
      %820 = vmatpush1.bf16.msra.mxu0 0
      %821 = vmatprep.subr.bf16.mxu0 0
      %822 = vmatpush1.bf16.msra.mxu0 0
      %823 = vmatprep.subr.bf16.mxu0 0
      %824 = vmatpush1.bf16.msra.mxu0 0
      %825 = vmatprep.subr.bf16.mxu0 0
      %826 = vmatpush1.bf16.msra.mxu0 0
      %827 = vmatprep.subr.bf16.mxu0 0
      %828 = vmatpush1.bf16.msra.mxu0 0
      %829 = vmatprep.subr.bf16.mxu0 0
      %830 = vmatpush1.bf16.msra.mxu0 0
      %831 = vmatprep.subr.bf16.mxu0 0
      %832 = vmatpush1.bf16.msra.mxu0 0
      %833 = vmatprep.subr.bf16.mxu0 0
      %834 = vmatpush1.bf16.msra.mxu0 0
      %835 = vmatprep.mubr.bf16.mxu0 0
      %836 = vmatmul.mubr.bf16.gmra.mrb[0].mxu0 %v801
      %v837 = vpop.f32.mrb[0].mxu0
      %v838 = vadd.f32 0.0, %v837
      %v839 = vpop.f32.mrb[0].mxu0
      %v840 = vpop.f32.mrb[0].mxu0
      %v841 = vpop.f32.mrb[0].mxu0
      %842 = vdwg.mxu0
      %v843 = vadd.f32 %v757, %v838
      %v844 = vld [vmem:[%s5] sm:$0x1]
      %v846 = vlaneseq
      %v847 = vshrl.u32 %v846, 7
      %v848 = vsub.s32 0, %v847
      %v849 = vrot.slane %v844, %v848
      %v851 = vmul.f32 %v843, %v849
      %v852 = vld [vmem:[%s6] sm:$0x1]
      %v854 = vlaneseq
      %v855 = vshrl.u32 %v854, 7
      %v856 = vsub.s32 0, %v855
      %v857 = vrot.slane %v852, %v856
      %v859 = vadd.f32 %v851, %v857
      %v860 = vmax.f32 %v859, 0.0
      %vm861 = vcmask 122880
      %vm862 = vmand %vm861, %vm552
      %v863 = vld [vmem:[#allocation4] sm:$0x1]
      %v864 = vsel %vm862, 0, %v863
      %865 = vst [vmem:[#allocation4] sm:$0x1] %v864
      %vm866 = vmand %vm861, %vm557
      %v867 = vld [vmem:[#allocation4 + $0x4] sm:$0x1]
      %v868 = vsel %vm866, 0, %v867
      %869 = vst [vmem:[#allocation4 + $0x4] sm:$0x1] %v868
      %v870 = vpack.c.bf16 %v860, %v860
      %v872 = vunpack.c.l.b16 %v870
      %v873 = vpack.c.b16 %v872, %v872
      %v875 = vshrl.u32 %v873, 16
      %v877 = vrot.slane %v875, 7
      %v878 = vshll.u32 %v873, 16
      %v880 = vor.u32 %v877, %v878
      %v881 = vrot.slane %v877, 4
      %vm884 = vcmask 125952
      %vm885 = vmand %vm884, %vm557
      %v886 = vld [vmem:[#allocation4] sm:$0xf]
      %v887 = vsel %vm885, %v880, %v886
      %888 = vst [vmem:[#allocation4] sm:$0xf] %v887
      %v889 = vld [vmem:[#allocation4 + $0x4] sm:$0x1]
      %v890 = vsel %vm862, %v881, %v889
      %891 = vst [vmem:[#allocation4 + $0x4] sm:$0x1] %v890
      %v892 = vld [vmem:[#allocation4] sm:$0xf]
      %v893 = vld [vmem:[#allocation4 + $0x4] sm:$0x1]
      %v894 = vld [vmem:[#allocation4] sm:$0xe]
      %v897 = vunpack.c.l.b16 %v892
      %v898 = vunpack.c.l.b16 %v893
      %v899 = vpack.c.b16 %v898, %v897
      %v901 = vshrl.u32 %v899, 16
      %v903 = vshll.u32 %v899, 16
      %v905 = vrot.slane %v903, 1
      %v906 = vor.u32 %v901, %v905
      %907 = vrot.lane.b32.xlu0 %v906, 16
      %v908 = vpop.permute.xlu0 %907
      %v910 = vunpack.c.l.b16 %v894
      %v911 = vpack.c.b16 %v898, %v910
      %v912 = vrot.slane %v911, 1
      %913 = vrot.lane.b32.xlu0 %v912, 32
      %v914 = vpop.permute.xlu0 %913
      %v917 = vsel %vm389, %v892, %v908
      %v919 = vsel %vm436, %v917, %v914
      %v920 = vld [vmem:[%s7] sm:$0xf]
      %v921 = vld [vmem:[%s7 + $0x4] sm:$0xf]
      %v922 = vld [vmem:[%s7 + $0x8] sm:$0xf]
      %v923 = vld [vmem:[%s7 + $0xc] sm:$0xf]
      %v924 = vld [vmem:[%s7 + $0x10] sm:$0xf]
      %v925 = vld [vmem:[%s7 + $0x14] sm:$0xf]
      %v932 = vunpack.c.l.b16 %v920
      %v933 = vunpack.c.l.b16 %v921
      %v934 = vunpack.c.l.b16 %v922
      %v935 = vunpack.c.l.b16 %v923
      %v936 = vunpack.c.l.b16 %v924
      %v937 = vunpack.c.l.b16 %v925
      %v938 = vpack.c.b16 %v933, %v932
      %v939 = vpack.c.b16 %v935, %v934
      %v940 = vpack.c.b16 %v937, %v936
      %vm944 = vcmask 392192
      %v945 = vsel %vm944, %v919, 0
      %947 = vmatprep.subr.bf16.mxu0 0
      %948 = vmatpush1.bf16.msra.mxu0 %v938
      %949 = vmatprep.subr.bf16.mxu0 0
      %950 = vmatpush1.bf16.msra.mxu0 %v939
      %951 = vmatprep.subr.bf16.mxu0 0
      %952 = vmatpush1.bf16.msra.mxu0 %v940
      %953 = vmatprep.subr.bf16.mxu0 0
      %954 = vmatpush1.bf16.msra.mxu0 0
      %955 = vmatprep.subr.bf16.mxu0 0
      %956 = vmatpush1.bf16.msra.mxu0 0
      %957 = vmatprep.subr.bf16.mxu0 0
      %958 = vmatpush1.bf16.msra.mxu0 0
      %959 = vmatprep.subr.bf16.mxu0 0
      %960 = vmatpush1.bf16.msra.mxu0 0
      %961 = vmatprep.subr.bf16.mxu0 0
      %962 = vmatpush1.bf16.msra.mxu0 0
      %963 = vmatprep.subr.bf16.mxu0 0
      %964 = vmatpush1.bf16.msra.mxu0 0
      %965 = vmatprep.subr.bf16.mxu0 0
      %966 = vmatpush1.bf16.msra.mxu0 0
      %967 = vmatprep.subr.bf16.mxu0 0
      %968 = vmatpush1.bf16.msra.mxu0 0
      %969 = vmatprep.subr.bf16.mxu0 0
      %970 = vmatpush1.bf16.msra.mxu0 0
      %971 = vmatprep.subr.bf16.mxu0 0
      %972 = vmatpush1.bf16.msra.mxu0 0
      %973 = vmatprep.subr.bf16.mxu0 0
      %974 = vmatpush1.bf16.msra.mxu0 0
      %975 = vmatprep.subr.bf16.mxu0 0
      %976 = vmatpush1.bf16.msra.mxu0 0
      %977 = vmatprep.subr.bf16.mxu0 0
      %978 = vmatpush1.bf16.msra.mxu0 0
      %979 = vmatprep.mubr.bf16.mxu0 0
      %980 = vmatmul.mubr.bf16.gmra.mrb[0].mxu0 %v945
      %v981 = vpop.f32.mrb[0].mxu0
      %v982 = vadd.f32 0.0, %v981
      %v983 = vpop.f32.mrb[0].mxu0
      %v984 = vpop.f32.mrb[0].mxu0
      %v985 = vpop.f32.mrb[0].mxu0
      %986 = vdwg.mxu0
      %v987 = vld [vmem:[%s8] sm:$0x1]
      %v989 = vlaneseq
      %v990 = vshrl.u32 %v989, 7
      %v991 = vsub.s32 0, %v990
      %v992 = vrot.slane %v987, %v991
      %v994 = vmul.f32 %v982, %v992
      %v995 = vld [vmem:[%s9] sm:$0x1]
      %v997 = vlaneseq
      %v998 = vshrl.u32 %v997, 7
      %v999 = vsub.s32 0, %v998
      %v1000 = vrot.slane %v995, %v999
      %v1002 = vadd.f32 %v994, %v1000
      %v1003 = vld [vmem:[%s350] sm:$0xf]
      %v1004 = vunpack.c.l.bf16 %v1003
      %v1005 = vadd.f32 %v1002, %v1004
      %v1006 = vpack.c.bf16 %v1005, %v1005
      %vm1007 = vcmask 125952
      %1008 = vst.msk [vmem:[%s354] sm:$0xf] %vm1007, %v1006
      %p1009 = scmp.lt.s32.totalorder %s21, 1
      %s1010 = scalar_select %p1009, %s21, 1
      %s1011 = smul.addr %s1010, 4
      %s1012 = scalar_lea.vmem %s10, %s1011
      // Predicated region
      $region61: #{encoder_forward.8} parent=59 // pred_check
        %p1013 = pneg %p254
      $region62: #{encoder_forward.8} parent=59 // pred_check_branch
        %1015 = sbr.rel (%p1013) target = $region64
      $region63: #{encoder_forward.8} parent=59 // pred_region
        _
      $region64: #{encoder_forward.8} parent=59 // pred_fallthru
        _
    $region60: #{encoder_forward.8} parent=5 // pred_fallthru
      _
    %p1016 = scmp.le.s32.totalorder 2, %s16
    // Predicated region
    $region65: #{encoder_forward.8} parent=5 // pred_check
      %p1017 = pneg %p1016
    $region66: #{encoder_forward.8} parent=5 // pred_check_branch
      %1019 = sbr.rel (%p1017) target = $region68
    $region67: #{encoder_forward.8} parent=5 // pred_region
      %s1020 = ssub.s32 %s16, 2
      // Predicated region
      $region69: #{encoder_forward.8} parent=67 // pred_check
        %p1021 = pneg %p260
      $region70: #{encoder_forward.8} parent=67 // pred_check_branch
        %1023 = sbr.rel (%p1021) target = $region72
      $region71: #{encoder_forward.8} parent=67 // pred_region
        %p1024 = scmp.lt.s32.totalorder %s22, 1
        %s1025 = scalar_select %p1024, %s22, 1
        %s1026 = smul.addr %s1025, 4
        %s1027 = scalar_lea.vmem %s10, %s1026
      $region72: #{encoder_forward.8} parent=67 // pred_fallthru
        _
    $region68: #{encoder_forward.8} parent=5 // pred_fallthru
      _
  $region6: #{encoder_forward.8} parent=0 // loop_footer
    %s20 = sadd.s32 1, %s16
  $region7: #{encoder_forward.8} parent=0 // loop_footer_branch
    %15 = sbr.rel target = $region3
  $region8: #{encoder_forward.8} parent=0 // loop_exit
    _

// kernel: encoder_forward.11
$region0: #{encoder_forward.11}
  #allocation0 [shape = 'u32[]', space=smem, size = 0x4, offset = 0x4, fixed_abs, tag = 'smem constant byte address 0x4 - core index']
  #allocation1 [shape = 'u32[144,128]{1,0:T(1,128)}', space=vmem, size = 0x12000, scoped, tag = 'internal scratch']
  #allocation2 [shape = 'f32[2,16]{1,0:T(2,128)}', space=vmem, size = 0x400, scoped, tag = 'scratch operand']
  %s0 = inlined_call_operand.vmem [shape: bf16[2,8,2,48], index: 0, kind: input, shape index: {}]
  %s1 = inlined_call_operand.vmem [shape: bf16[2,16,48], index: 1, kind: input, shape index: {}]
  %s2 = inlined_call_operand.vmem [shape: f32[2,1,48], index: 2, kind: input, shape index: {}]
  %s3 = inlined_call_operand.vmem [shape: bf16[2,8,2,16], index: 3, kind: output, shape index: {0}]
  %s4 = inlined_call_operand.vmem [shape: f32[2,2,16], index: 4, kind: output, shape index: {1}]
  %5 = xla_tuple %s3, %s4
  %s6 = sld [smem:[#allocation0]]
  $region64: #{encoder_forward.11} parent=0
    _
  %s8 = ssub.s32 1, %s6
  %s9 = scalar_select 0, %s8, %s6
  loop: start=0, step=1, limit=4
  $region2: #{encoder_forward.11} parent=0 // loop_pre_header
    _
  $region3: #{encoder_forward.11} parent=0 // loop_header
    %s11 = sphi 0, %s15
    %p12 = scmp.ge.s32.totalorder %s11, 4
    %s18 = sphi 0, %s30
    %s19 = sphi 0, %s26
    %s20 = sphi 0, %s18
    %s21 = sphi 0, %s19
    %s22 = sphi 0, %s20
    %s23 = sphi 0, %s21
    %s45 = sphi 0, %s47
    %s48 = sphi 0, %s45
    %s49 = sphi 0, %s48
    %s65 = sphi 0, %s49
    %s71 = sphi 0, %s73
    %s74 = sphi 0, %s71
    %s75 = sphi 0, %s74
    %s91 = sphi 0, %s75
    %s97 = sphi 0, %s99
    %s100 = sphi 0, %s97
    %s101 = sphi 0, %s100
    %s117 = sphi 0, %s101
    %s135 = sphi 0, %s137
    %s138 = sphi 0, %s135
    %s139 = sphi 0, %s138
    %s155 = sphi 0, %s139
    %s161 = sphi 0, %s163
    %s164 = sphi 0, %s161
    %s165 = sphi 0, %s164
    %s181 = sphi 0, %s165
  $region4: #{encoder_forward.11} parent=0 // loop_header_branch
    %14 = sbr.rel (%p12) target = $region8
  $region5: #{encoder_forward.11} parent=0 // loop_body
    %s16 = ssub.s32 %s11, 1
    %s17 = ssub.s32 %s11, 2
    %s24 = sadd.s32 1, %s19
    %p25 = scmp.ge.s32.totalorder %s24, 1
    %s26 = scalar_select %p25, 0, %s24
    %s27 = sadd.s32 1, %s18
    %s28 = scalar_select %p25, %s27, %s18
    %p29 = scmp.ge.s32.totalorder %s28, 2
    %s30 = scalar_select %p29, 0, %s28
    %s31 = ssub.s32 0, %s19
    %s32 = smul.u32 %s18, %s31
    %s33 = ssub.s32 1, %s18
    %s34 = smul.u32 %s33, %s19
    %s35 = sadd.s32 %s32, %s34
    %s36 = ssub.s32 0, %s26
    %s37 = smul.u32 %s30, %s36
    %s38 = ssub.s32 1, %s30
    %s39 = smul.u32 %s38, %s26
    %s40 = sadd.s32 %s37, %s39
    %s41 = ssub.s32 %s18, %s30
    %s42 = ssub.s32 %s35, %s40
    %s43 = sor.u32 %s41, %s42
    %p44 = scmp.eq.s32.totalorder %s43, 0
    %s46 = sadd.s32 %s45, 1
    %s47 = scalar_select %p44, %s45, %s46
    %p50 = pneg %p44
    %p51 = scmp.eq.s32.totalorder %s11, 1
    %p52 = por %p50, %p51
    %p53 = scmp.ne.s32.totalorder %s45, %s48
    %p54 = scmp.eq.s32.totalorder %s11, 0
    %p55 = por %p53, %p54
    %p56 = scmp.ne.s32.totalorder %s45, %s48
    %p57 = scmp.eq.s32.totalorder %s16, 1
    %p58 = por %p56, %p57
    %p59 = scmp.ne.s32.totalorder %s48, %s49
    %p60 = scmp.eq.s32.totalorder %s16, 0
    %p61 = por %p59, %p60
    %p62 = scmp.ne.s32.totalorder %s48, %s49
    %p63 = scmp.eq.s32.totalorder %s17, 1
    %p64 = por %p62, %p63
    %p66 = scmp.ne.s32.totalorder %s49, %s65
    %p67 = scmp.eq.s32.totalorder %s17, 0
    %p68 = por %p66, %p67
    %s69 = ssub.s32 %s18, %s30
    %p70 = scmp.eq.s32.totalorder %s69, 0
    %s72 = sadd.s32 %s71, 1
    %s73 = scalar_select %p70, %s71, %s72
    %p76 = pneg %p70
    %p77 = scmp.eq.s32.totalorder %s11, 1
    %p78 = por %p76, %p77
    %p79 = scmp.ne.s32.totalorder %s71, %s74
    %p80 = scmp.eq.s32.totalorder %s11, 0
    %p81 = por %p79, %p80
    %p82 = scmp.ne.s32.totalorder %s71, %s74
    %p83 = scmp.eq.s32.totalorder %s16, 1
    %p84 = por %p82, %p83
    %p85 = scmp.ne.s32.totalorder %s74, %s75
    %p86 = scmp.eq.s32.totalorder %s16, 0
    %p87 = por %p85, %p86
    %p88 = scmp.ne.s32.totalorder %s74, %s75
    %p89 = scmp.eq.s32.totalorder %s17, 1
    %p90 = por %p88, %p89
    %p92 = scmp.ne.s32.totalorder %s75, %s91
    %p93 = scmp.eq.s32.totalorder %s17, 0
    %p94 = por %p92, %p93
    %s95 = ssub.s32 %s18, %s30
    %p96 = scmp.eq.s32.totalorder %s95, 0
    %s98 = sadd.s32 %s97, 1
    %s99 = scalar_select %p96, %s97, %s98
    %p102 = pneg %p96
    %p103 = scmp.eq.s32.totalorder %s11, 1
    %p104 = por %p102, %p103
    %p105 = scmp.ne.s32.totalorder %s97, %s100
    %p106 = scmp.eq.s32.totalorder %s11, 0
    %p107 = por %p105, %p106
    %p108 = scmp.ne.s32.totalorder %s97, %s100
    %p109 = scmp.eq.s32.totalorder %s16, 1
    %p110 = por %p108, %p109
    %p111 = scmp.ne.s32.totalorder %s100, %s101
    %p112 = scmp.eq.s32.totalorder %s16, 0
    %p113 = por %p111, %p112
    %p114 = scmp.ne.s32.totalorder %s100, %s101
    %p115 = scmp.eq.s32.totalorder %s17, 1
    %p116 = por %p114, %p115
    %p118 = scmp.ne.s32.totalorder %s101, %s117
    %p119 = scmp.eq.s32.totalorder %s17, 0
    %p120 = por %p118, %p119
    %s121 = ssub.s32 0, %s19
    %s122 = smul.u32 %s18, %s121
    %s123 = ssub.s32 1, %s18
    %s124 = smul.u32 %s123, %s19
    %s125 = sadd.s32 %s122, %s124
    %s126 = ssub.s32 0, %s26
    %s127 = smul.u32 %s30, %s126
    %s128 = ssub.s32 1, %s30
    %s129 = smul.u32 %s128, %s26
    %s130 = sadd.s32 %s127, %s129
    %s131 = ssub.s32 %s18, %s30
    %s132 = ssub.s32 %s125, %s130
    %s133 = sor.u32 %s131, %s132
    %p134 = scmp.eq.s32.totalorder %s133, 0
    %s136 = sadd.s32 %s135, 1
    %s137 = scalar_select %p134, %s135, %s136
    %p140 = pneg %p134
    %p141 = scmp.eq.s32.totalorder %s11, 1
    %p142 = por %p140, %p141
    %p143 = scmp.ne.s32.totalorder %s135, %s138
    %p144 = scmp.eq.s32.totalorder %s11, 0
    %p145 = por %p143, %p144
    %p146 = scmp.ne.s32.totalorder %s135, %s138
    %p147 = scmp.eq.s32.totalorder %s16, 1
    %p148 = por %p146, %p147
    %p149 = scmp.ne.s32.totalorder %s138, %s139
    %p150 = scmp.eq.s32.totalorder %s16, 0
    %p151 = por %p149, %p150
    %p152 = scmp.ne.s32.totalorder %s138, %s139
    %p153 = scmp.eq.s32.totalorder %s17, 1
    %p154 = por %p152, %p153
    %p156 = scmp.ne.s32.totalorder %s139, %s155
    %p157 = scmp.eq.s32.totalorder %s17, 0
    %p158 = por %p156, %p157
    %s159 = ssub.s32 %s18, %s30
    %p160 = scmp.eq.s32.totalorder %s159, 0
    %s162 = sadd.s32 %s161, 1
    %s163 = scalar_select %p160, %s161, %s162
    %p166 = pneg %p160
    %p167 = scmp.eq.s32.totalorder %s11, 1
    %p168 = por %p166, %p167
    %p169 = scmp.ne.s32.totalorder %s161, %s164
    %p170 = scmp.eq.s32.totalorder %s11, 0
    %p171 = por %p169, %p170
    %p172 = scmp.ne.s32.totalorder %s161, %s164
    %p173 = scmp.eq.s32.totalorder %s16, 1
    %p174 = por %p172, %p173
    %p175 = scmp.ne.s32.totalorder %s164, %s165
    %p176 = scmp.eq.s32.totalorder %s16, 0
    %p177 = por %p175, %p176
    %p178 = scmp.ne.s32.totalorder %s164, %s165
    %p179 = scmp.eq.s32.totalorder %s17, 1
    %p180 = por %p178, %p179
    %p182 = scmp.ne.s32.totalorder %s165, %s181
    %p183 = scmp.eq.s32.totalorder %s17, 0
    %p184 = por %p182, %p183
    %p185 = scmp.le.s32.totalorder 1, %s11
    %p186 = scmp.lt.s32.totalorder %s11, 3
    %p187 = pnand %p185, %p186
    %p188 = pneg %p187
    // Predicated region
    $region9: #{encoder_forward.11} parent=5 // pred_check
      _
    $region10: #{encoder_forward.11} parent=5 // pred_check_branch
      %190 = sbr.rel (%p187) target = $region12
    $region11: #{encoder_forward.11} parent=5 // pred_region
      %s191 = ssub.s32 %s11, 1
    $region12: #{encoder_forward.11} parent=5 // pred_fallthru
      _
    %p192 = scmp.lt.s32.totalorder %s11, 2
    // Predicated region
    $region13: #{encoder_forward.11} parent=5 // pred_check
      %p193 = pneg %p192
    $region14: #{encoder_forward.11} parent=5 // pred_check_branch
      %195 = sbr.rel (%p193) target = $region16
    $region15: #{encoder_forward.11} parent=5 // pred_region
      // Predicated region
      $region17: #{encoder_forward.11} parent=15 // pred_check
        %p196 = pneg %p55
      $region18: #{encoder_forward.11} parent=15 // pred_check_branch
        %198 = sbr.rel (%p196) target = $region20
      $region19: #{encoder_forward.11} parent=15 // pred_region
        %s199 = ssub.s32 0, %s19
        %s200 = smul.u32 %s18, %s199
        %s201 = ssub.s32 1, %s18
        %s202 = smul.u32 %s201, %s19
        %s203 = sadd.s32 %s200, %s202
        %s204 = smul.u32 8, %s203
        %p205 = scmp.lt.s32.totalorder %s18, 1
        %s206 = scalar_select %p205, %s18, 1
        %p207 = scmp.lt.s32.totalorder %s204, 7
        %s208 = scalar_select %p207, %s204, 7
        %s209 = smul.addr %s206, 8
        %s210 = sadd.s32 %s208, %s209
        %s211 = scalar_lea.vmem %s0, %s210
        %s212 = ssub.s32 0, %s19
        %s213 = smul.u32 %s18, %s212
        %s214 = ssub.s32 1, %s18
        %s215 = smul.u32 %s214, %s19
        %s216 = sadd.s32 %s213, %s215
        %s217 = smul.u32 8, %s216
      $region20: #{encoder_forward.11} parent=15 // pred_fallthru
        _
      // Predicated region
      $region21: #{encoder_forward.11} parent=15 // pred_check
        %p218 = pneg %p81
      $region22: #{encoder_forward.11} parent=15 // pred_check_branch
        %220 = sbr.rel (%p218) target = $region24
      $region23: #{encoder_forward.11} parent=15 // pred_region
        %p221 = scmp.lt.s32.totalorder %s18, 1
        %s222 = scalar_select %p221, %s18, 1
        %s223 = smul.addr %s222, 2
        %s224 = smul.addr %s223, 4
        %s225 = scalar_lea.vmem %s1, %s224
      $region24: #{encoder_forward.11} parent=15 // pred_fallthru
        _
      // Predicated region
      $region25: #{encoder_forward.11} parent=15 // pred_check
        %p226 = pneg %p107
      $region26: #{encoder_forward.11} parent=15 // pred_check_branch
        %228 = sbr.rel (%p226) target = $region28
      $region27: #{encoder_forward.11} parent=15 // pred_region
        %p229 = scmp.lt.s32.totalorder %s18, 1
        %s230 = scalar_select %p229, %s18, 1
        %s231 = scalar_lea.vmem %s2, %s230
      $region28: #{encoder_forward.11} parent=15 // pred_fallthru
        _
    $region16: #{encoder_forward.11} parent=5 // pred_fallthru
      _
    %p232 = scmp.le.s32.totalorder 1, %s11
    %p233 = scmp.lt.s32.totalorder %s11, 3
    %p234 = pnand %p232, %p233
    %p235 = pneg %p234
    // Predicated region
    $region29: #{encoder_forward.11} parent=5 // pred_check
      _
    $region30: #{encoder_forward.11} parent=5 // pred_check_branch
      %237 = sbr.rel (%p234) target = $region32
    $region31: #{encoder_forward.11} parent=5 // pred_region
      %s238 = ssub.s32 %s11, 1
      %s239 = ssub.s32 0, %s21
      %s240 = smul.u32 %s20, %s239
      %s241 = ssub.s32 1, %s20
      %s242 = smul.u32 %s241, %s21
      %s243 = sadd.s32 %s240, %s242
      %s244 = smul.u32 8, %s243
      %p245 = scmp.lt.s32.totalorder %s20, 1
      %s246 = scalar_select %p245, %s20, 1
      %p247 = scmp.lt.s32.totalorder %s244, 7
      %s248 = scalar_select %p247, %s244, 7
      %s249 = smul.addr %s246, 8
      %s250 = sadd.s32 %s248, %s249
      %s251 = scalar_lea.vmem %s0, %s250
      %p252 = pneg %p61
      %p253 = pneg %p58
      %p254 = scmp.lt.s32.totalorder %s20, 1
      %s255 = scalar_select %p254, %s20, 1
      %s256 = smul.addr %s255, 2
      %s257 = smul.addr %s256, 4
      %s258 = scalar_lea.vmem %s1, %s257
      %p259 = pneg %p87
      %p260 = pneg %p84
      %p261 = scmp.lt.s32.totalorder %s20, 1
      %s262 = scalar_select %p261, %s20, 1
      %s263 = scalar_lea.vmem %s2, %s262
      %p264 = pneg %p113
      %p265 = pneg %p110
      %p266 = pneg %p151
      %p267 = pneg %p148
      %s268 = ssub.s32 0, %s21
      %s269 = smul.u32 %s20, %s268
      %s270 = ssub.s32 1, %s20
      %s271 = smul.u32 %s270, %s21
      %s272 = sadd.s32 %s269, %s271
      %s273 = smul.u32 8, %s272
      %p274 = scmp.lt.s32.totalorder %s20, 1
      %s275 = scalar_select %p274, %s20, 1
      %p276 = scmp.lt.s32.totalorder %s273, 7
      %s277 = scalar_select %p276, %s273, 7
      %s278 = smul.addr %s275, 8
      %s279 = sadd.s32 %s277, %s278
      %s280 = scalar_lea.vmem %s3, %s279
      %p281 = pneg %p177
      %p282 = pneg %p174
      %p283 = scmp.lt.s32.totalorder %s20, 1
      %s284 = scalar_select %p283, %s20, 1
      %s285 = smul.addr %s284, 2
      %s286 = scalar_lea.vmem %s4, %s285
      %s287 = ssub.s32 0, %s21
      %s288 = smul.u32 %s20, %s287
      %s289 = ssub.s32 1, %s20
      %s290 = smul.u32 %s289, %s21
      %s291 = sadd.s32 %s288, %s290
      %s292 = smul.u32 8, %s291
      %p293 = scmp.lt.s32.totalorder %s20, 1
      %s294 = scalar_select %p293, %s20, 1
      %p295 = scmp.lt.s32.totalorder %s292, 7
      %s296 = scalar_select %p295, %s292, 7
      %s297 = smul.addr %s294, 8
      %s298 = sadd.s32 %s296, %s297
      %s299 = scalar_lea.vmem %s0, %s298
      %s300 = ssub.s32 0, %s21
      %s301 = smul.u32 %s20, %s300
      %s302 = ssub.s32 1, %s20
      %s303 = smul.u32 %s302, %s21
      %s304 = sadd.s32 %s301, %s303
      %s305 = smul.u32 8, %s304
      %p306 = scmp.lt.s32.totalorder %s20, 1
      %s307 = scalar_select %p306, %s20, 1
      %s308 = smul.addr %s307, 2
      %s309 = smul.addr %s308, 4
      %s310 = scalar_lea.vmem %s1, %s309
      %p311 = scmp.lt.s32.totalorder %s20, 1
      %s312 = scalar_select %p311, %s20, 1
      %s313 = scalar_lea.vmem %s2, %s312
      %s314 = ssub.s32 0, %s21
      %s315 = smul.u32 %s20, %s314
      %s316 = ssub.s32 1, %s20
      %s317 = smul.u32 %s316, %s21
      %s318 = sadd.s32 %s315, %s317
      %s319 = smul.u32 8, %s318
      %p320 = scmp.lt.s32.totalorder %s20, 1
      %s321 = scalar_select %p320, %s20, 1
      %p322 = scmp.lt.s32.totalorder %s319, 7
      %s323 = scalar_select %p322, %s319, 7
      %s324 = smul.addr %s321, 8
      %s325 = sadd.s32 %s323, %s324
      %s326 = scalar_lea.vmem %s3, %s325
      %s327 = ssub.s32 0, %s21
      %s328 = smul.u32 %s20, %s327
      %s329 = ssub.s32 1, %s20
      %s330 = smul.u32 %s329, %s21
      %s331 = sadd.s32 %s328, %s330
      %s332 = smul.u32 8, %s331
      %p333 = scmp.lt.s32.totalorder %s20, 1
      %s334 = scalar_select %p333, %s20, 1
      %s335 = smul.addr %s334, 2
      %s336 = scalar_lea.vmem %s4, %s335
      %p338 = scmp.eq.s32.totalorder %s21, 0
      // Predicated region
      $region33: #{encoder_forward.11} parent=31 // pred_check
        %p339 = pneg %p338
      $region34: #{encoder_forward.11} parent=31 // pred_check_branch
        %341 = sbr.rel (%p339) target = $region36
      $region35: #{encoder_forward.11} parent=31 // pred_region
        %vm342 = vcmask 123904
        %343 = vst.msk [vmem:[#allocation2] sm:$0x3] %vm342, 0.0
      $region36: #{encoder_forward.11} parent=31 // pred_fallthru
        _
      %v344 = vld [vmem:[%s310] sm:$0xf]
      %v345 = vld [vmem:[%s310 + $0x4] sm:$0xf]
      %v346 = vld [vmem:[%s313] sm:$0x1]
      %p347 = scmp.eq.s32.totalorder %s20, 1
      %v348 = vld [vmem:[#allocation2] sm:$0x3]
      loop: start=0, step=1, limit=8
      $region37: #{encoder_forward.11} parent=31 // loop_pre_header
        _
      $region38: #{encoder_forward.11} parent=31 // loop_header
        %s350 = sphi 0, %s354
        %p351 = scmp.ge.s32.totalorder %s350, 8
        %v355 = vphi %v348, %v493
      $region39: #{encoder_forward.11} parent=31 // loop_header_branch
        %353 = sbr.rel (%p351) target = $region43
      $region40: #{encoder_forward.11} parent=31 // loop_body
        %s356 = ssub.s32 7, %s350
        %s357 = scalar_select %p347, %s356, %s350
        %s358 = scalar_lea.vmem %s299, %s357
        %v359 = vld [vmem:[%s358] sm:$0x1]
        %v360 = vpack.c.bf16 %v355, %v355
        %v362 = vlaneseq
        %v363 = vshrl.u32 %v362, 7
        %v364 = vsub.s32 0, %v363
        %v365 = vrot.slane %v346, %v364
        %v369 = vunpack.c.l.b16 %v344
        %v370 = vunpack.c.l.b16 %v345
        %v371 = vpack.c.b16 %v370, %v369
        %vm373 = vcmask 130048
        %v375 = vsel %vm373, %v360, 0
        %377 = vmatprep.subr.bf16.mxu0 0
        %378 = vmatpush1.bf16.msra.mxu0 %v371
        %379 = vmatprep.subr.bf16.mxu0 0
        %380 = vmatpush1.bf16.msra.mxu0 0
        %381 = vmatprep.subr.bf16.mxu0 0
        %382 = vmatpush1.bf16.msra.mxu0 0
        %383 = vmatprep.subr.bf16.mxu0 0
        %384 = vmatpush1.bf16.msra.mxu0 0
        %385 = vmatprep.subr.bf16.mxu0 0
        %386 = vmatpush1.bf16.msra.mxu0 0
        %387 = vmatprep.subr.bf16.mxu0 0
        %388 = vmatpush1.bf16.msra.mxu0 0
        %389 = vmatprep.subr.bf16.mxu0 0
        %390 = vmatpush1.bf16.msra.mxu0 0
        %391 = vmatprep.subr.bf16.mxu0 0
        %392 = vmatpush1.bf16.msra.mxu0 0
        %393 = vmatprep.subr.bf16.mxu0 0
        %394 = vmatpush1.bf16.msra.mxu0 0
        %395 = vmatprep.subr.bf16.mxu0 0
        %396 = vmatpush1.bf16.msra.mxu0 0
        %397 = vmatprep.subr.bf16.mxu0 0
        %398 = vmatpush1.bf16.msra.mxu0 0
        %399 = vmatprep.subr.bf16.mxu0 0
        %400 = vmatpush1.bf16.msra.mxu0 0
        %401 = vmatprep.subr.bf16.mxu0 0
        %402 = vmatpush1.bf16.msra.mxu0 0
        %403 = vmatprep.subr.bf16.mxu0 0
        %404 = vmatpush1.bf16.msra.mxu0 0
        %405 = vmatprep.subr.bf16.mxu0 0
        %406 = vmatpush1.bf16.msra.mxu0 0
        %407 = vmatprep.subr.bf16.mxu0 0
        %408 = vmatpush1.bf16.msra.mxu0 0
        %409 = vmatprep.mubr.bf16.mxu0 0
        %410 = vmatmul.mubr.bf16.gmra.mrb[0].mxu0 %v375
        %v411 = vpop.f32.mrb[0].mxu0
        %v412 = vadd.f32 %v365, %v411
        %v413 = vpop.f32.mrb[0].mxu0
        %v414 = vpop.f32.mrb[0].mxu0
        %v415 = vpop.f32.mrb[0].mxu0
        %416 = vdwg.mxu0
        %v417 = vunpack.c.l.bf16 %v359
        %v418 = vadd.f32 %v417, %v412
        %v419 = vxor.u32 %v418, 2147483648
        %v420 = vmul.f32 %v419, 1.442695
        %v421 = vpow.pop %v420
        %v422 = vadd.f32 %v421, 1.0
        %v423 = vrcp.pop %v422
        %v424 = vmul.f32 1.0, %v423
        %v427 = vunpack.c.l.s4 1983009808
        %v428 = vunpack.c.0.s8 %v427
        %v429 = vlaneseq
        %v430 = vshrl.u32 %v429, 7
        %v431 = vsub.s32 %v428, %v430
        %v432 = vrot.slane %v412, %v431
        %433 = vrot.lane.b32.xlu0 %v432, 96
        %v434 = vpop.permute.xlu0 %433
        %v436 = vmul.f32 %v424, %v434
        %438 = vrot.lane.b32.xlu0 %v436, 32
        %v439 = vpop.permute.xlu0 %438
        %v441 = vadd.f32 %v417, %v439
        %v442 = vtanh.pop %v441
        %v443 = vsub.f32 1.0, %v424
        %445 = vrot.lane.b32.xlu0 %v442, 112
        %v446 = vpop.permute.xlu0 %445
        %v448 = vmul.f32 %v443, %v446
        %v451 = vunpack.c.l.s4 1983009808
        %v452 = vunpack.c.0.s8 %v451
        %v453 = vlaneseq
        %v454 = vshrl.u32 %v453, 7
        %v455 = vsub.s32 %v452, %v454
        %v456 = vrot.slane %v355, %v455
        %457 = vrot.lane.b32.xlu0 %v456, 16
        %v458 = vpop.permute.xlu0 %457
        %v460 = vmul.f32 %v424, %v458
        %v461 = vadd.f32 %v448, %v460
        %v462 = vpack.c.bf16 %v461, %v461
        %v465 = vunpack.c.l.s4 1966171168
        %v466 = vunpack.c.0.s8 %v465
        %v467 = vlaneseq
        %v468 = vshrl.u32 %v467, 7
        %v469 = vsub.s32 %v466, %v468
        %v470 = vrot.slane %v462, %v469
        %v472 = vunpack.c.l.s4 1966171168
        %v473 = vunpack.c.0.s8 %v472
        %v474 = vlaneseq
        %v475 = vshrl.u32 %v474, 7
        %v476 = vsub.s32 %v473, %v475
        %v477 = vrot.slane %v470, %v476
        %478 = vrot.lane.b32.xlu0 %v477, 112
        %v479 = vpop.permute.xlu0 %478
        %s481 = scalar_lea.vmem %s326, %s357
        %vm482 = vcmask 122880
        %483 = vst.msk [vmem:[%s481] sm:$0x1] %vm482, %v479
        %v486 = vunpack.c.l.s4 1983009808
        %v487 = vunpack.c.0.s8 %v486
        %v488 = vlaneseq
        %v489 = vshrl.u32 %v488, 7
        %v490 = vsub.s32 %v487, %v489
        %v491 = vrot.slane %v461, %v490
        %492 = vrot.lane.b32.xlu0 %v491, 112
        %v493 = vpop.permute.xlu0 %492
      $region41: #{encoder_forward.11} parent=31 // loop_footer
        %s354 = sadd.s32 1, %s350
      $region42: #{encoder_forward.11} parent=31 // loop_footer_branch
        %349 = sbr.rel target = $region38
      $region43: #{encoder_forward.11} parent=31 // loop_exit
        _
      %vm495 = vcmask 123904
      %496 = vst.msk [vmem:[#allocation2] sm:$0x3] %vm495, %v355
      %497 = vst.msk [vmem:[%s336] sm:$0x3] %vm495, %v355
      %s498 = ssub.s32 0, %s21
      %s499 = smul.u32 %s20, %s498
      %s500 = ssub.s32 1, %s20
      %s501 = smul.u32 %s500, %s21
      %s502 = sadd.s32 %s499, %s501
      %s503 = smul.u32 8, %s502
      %p504 = scmp.lt.s32.totalorder %s20, 1
      %s505 = scalar_select %p504, %s20, 1
      %p506 = scmp.lt.s32.totalorder %s503, 7
      %s507 = scalar_select %p506, %s503, 7
      %s508 = smul.addr %s505, 8
      %s509 = sadd.s32 %s507, %s508
      %s510 = scalar_lea.vmem %s3, %s509
      %p511 = scmp.lt.s32.totalorder %s20, 1
      %s512 = scalar_select %p511, %s20, 1
      %s513 = smul.addr %s512, 2
      %s514 = scalar_lea.vmem %s4, %s513
      // Predicated region
      $region44: #{encoder_forward.11} parent=31 // pred_check
        %p515 = pneg %p148
      $region45: #{encoder_forward.11} parent=31 // pred_check_branch
        %517 = sbr.rel (%p515) target = $region47
      $region46: #{encoder_forward.11} parent=31 // pred_region
        %s518 = ssub.s32 0, %s21
        %s519 = smul.u32 %s20, %s518
        %s520 = ssub.s32 1, %s20
        %s521 = smul.u32 %s520, %s21
        %s522 = sadd.s32 %s519, %s521
        %s523 = smul.u32 8, %s522
      $region47: #{encoder_forward.11} parent=31 // pred_fallthru
        _
      // Predicated region
      $region48: #{encoder_forward.11} parent=31 // pred_check
        %p524 = pneg %p174
      $region49: #{encoder_forward.11} parent=31 // pred_check_branch
        %526 = sbr.rel (%p524) target = $region51
      $region50: #{encoder_forward.11} parent=31 // pred_region
        _
      $region51: #{encoder_forward.11} parent=31 // pred_fallthru
        _
    $region32: #{encoder_forward.11} parent=5 // pred_fallthru
      _
    %p527 = scmp.le.s32.totalorder 2, %s11
    // Predicated region
    $region52: #{encoder_forward.11} parent=5 // pred_check
      %p528 = pneg %p527
    $region53: #{encoder_forward.11} parent=5 // pred_check_branch
      %530 = sbr.rel (%p528) target = $region55
    $region54: #{encoder_forward.11} parent=5 // pred_region
      %s531 = ssub.s32 %s11, 2
      // Predicated region
      $region56: #{encoder_forward.11} parent=54 // pred_check
        %p532 = pneg %p154
      $region57: #{encoder_forward.11} parent=54 // pred_check_branch
        %534 = sbr.rel (%p532) target = $region59
      $region58: #{encoder_forward.11} parent=54 // pred_region
        %s535 = ssub.s32 0, %s23
        %s536 = smul.u32 %s22, %s535
        %s537 = ssub.s32 1, %s22
        %s538 = smul.u32 %s537, %s23
        %s539 = sadd.s32 %s536, %s538
        %s540 = smul.u32 8, %s539
        %p541 = scmp.lt.s32.totalorder %s22, 1
        %s542 = scalar_select %p541, %s22, 1
        %p543 = scmp.lt.s32.totalorder %s540, 7
        %s544 = scalar_select %p543, %s540, 7
        %s545 = smul.addr %s542, 8
        %s546 = sadd.s32 %s544, %s545
        %s547 = scalar_lea.vmem %s3, %s546
      $region59: #{encoder_forward.11} parent=54 // pred_fallthru
        _
      // Predicated region
      $region60: #{encoder_forward.11} parent=54 // pred_check
        %p548 = pneg %p180
      $region61: #{encoder_forward.11} parent=54 // pred_check_branch
        %550 = sbr.rel (%p548) target = $region63
      $region62: #{encoder_forward.11} parent=54 // pred_region
        %p551 = scmp.lt.s32.totalorder %s22, 1
        %s552 = scalar_select %p551, %s22, 1
        %s553 = smul.addr %s552, 2
        %s554 = scalar_lea.vmem %s4, %s553
      $region63: #{encoder_forward.11} parent=54 // pred_fallthru
        _
    $region55: #{encoder_forward.11} parent=5 // pred_fallthru
      _
  $region6: #{encoder_forward.11} parent=0 // loop_footer
    %s15 = sadd.s32 1, %s11
  $region7: #{encoder_forward.11} parent=0 // loop_footer_branch
    %10 = sbr.rel target = $region3
  $region8: #{encoder_forward.11} parent=0 // loop_exit
    _

// kernel: encoder_forward.12
$region0: #{encoder_forward.12}
  #allocation0 [shape = 'u32[]', space=smem, size = 0x4, offset = 0x4, fixed_abs, tag = 'smem constant byte address 0x4 - core index']
  #allocation1 [shape = 'u32[144,128]{1,0:T(1,128)}', space=vmem, size = 0x12000, scoped, tag = 'internal scratch']
  %s0 = inlined_call_operand.vmem [shape: bf16[16,16], index: 0, kind: input, shape index: {}]
  %s1 = inlined_call_operand.vmem [shape: bf16[16,16], index: 1, kind: input, shape index: {}]
  %s2 = inlined_call_operand.vmem [shape: bf16[2,16,48], index: 2, kind: input, shape index: {}]
  %s3 = inlined_call_operand.vmem [shape: bf16[2,16,48], index: 3, kind: input, shape index: {}]
  %s4 = inlined_call_operand.vmem [shape: f32[2,1,48], index: 4, kind: input, shape index: {}]
  %s5 = inlined_call_operand.vmem [shape: bf16[2,16,48], index: 5, kind: output, shape index: {}]
  %s6 = sld [smem:[#allocation0]]
  $region53: #{encoder_forward.12} parent=0
    _
  %s8 = ssub.s32 1, %s6
  %s9 = scalar_select 0, %s8, %s6
  loop: start=0, step=1, limit=4
  $region2: #{encoder_forward.12} parent=0 // loop_pre_header
    _
  $region3: #{encoder_forward.12} parent=0 // loop_header
    %s11 = sphi 0, %s15
    %p12 = scmp.ge.s32.totalorder %s11, 4
    %s18 = sphi 0, %s30
    %s19 = sphi 0, %s26
    %s20 = sphi 0, %s18
    %s21 = sphi 0, %s19
    %s22 = sphi 0, %s20
    %s23 = sphi 0, %s21
    %s33 = sphi 0, %s35
    %s36 = sphi 0, %s33
    %s37 = sphi 0, %s36
    %s53 = sphi 0, %s37
    %s59 = sphi 0, %s61
    %s62 = sphi 0, %s59
    %s63 = sphi 0, %s62
    %s79 = sphi 0, %s63
    %s85 = sphi 0, %s87
    %s88 = sphi 0, %s85
    %s89 = sphi 0, %s88
    %s105 = sphi 0, %s89
    %s111 = sphi 0, %s113
    %s114 = sphi 0, %s111
    %s115 = sphi 0, %s114
    %s131 = sphi 0, %s115
    %s137 = sphi 0, %s139
    %s140 = sphi 0, %s137
    %s141 = sphi 0, %s140
    %s157 = sphi 0, %s141
    %s165 = sphi 0, %s167
    %s168 = sphi 0, %s165
    %s169 = sphi 0, %s168
    %s185 = sphi 0, %s169
  $region4: #{encoder_forward.12} parent=0 // loop_header_branch
    %14 = sbr.rel (%p12) target = $region8
  $region5: #{encoder_forward.12} parent=0 // loop_body
    %s16 = ssub.s32 %s11, 1
    %s17 = ssub.s32 %s11, 2
    %s24 = sadd.s32 1, %s19
    %p25 = scmp.ge.s32.totalorder %s24, 2
    %s26 = scalar_select %p25, 0, %s24
    %s27 = sadd.s32 1, %s18
    %s28 = scalar_select %p25, %s27, %s18
    %p29 = scmp.ge.s32.totalorder %s28, 1
    %s30 = scalar_select %p29, 0, %s28
    %s31 = ssub.s32 %s18, %s30
    %p32 = scmp.eq.s32.totalorder %s31, 0
    %s34 = sadd.s32 %s33, 1
    %s35 = scalar_select %p32, %s33, %s34
    %p38 = pneg %p32
    %p39 = scmp.eq.s32.totalorder %s11, 1
    %p40 = por %p38, %p39
    %p41 = scmp.ne.s32.totalorder %s33, %s36
    %p42 = scmp.eq.s32.totalorder %s11, 0
    %p43 = por %p41, %p42
    %p44 = scmp.ne.s32.totalorder %s33, %s36
    %p45 = scmp.eq.s32.totalorder %s16, 1
    %p46 = por %p44, %p45
    %p47 = scmp.ne.s32.totalorder %s36, %s37
    %p48 = scmp.eq.s32.totalorder %s16, 0
    %p49 = por %p47, %p48
    %p50 = scmp.ne.s32.totalorder %s36, %s37
    %p51 = scmp.eq.s32.totalorder %s17, 1
    %p52 = por %p50, %p51
    %p54 = scmp.ne.s32.totalorder %s37, %s53
    %p55 = scmp.eq.s32.totalorder %s17, 0
    %p56 = por %p54, %p55
    %s57 = ssub.s32 %s18, %s30
    %p58 = scmp.eq.s32.totalorder %s57, 0
    %s60 = sadd.s32 %s59, 1
    %s61 = scalar_select %p58, %s59, %s60
    %p64 = pneg %p58
    %p65 = scmp.eq.s32.totalorder %s11, 1
    %p66 = por %p64, %p65
    %p67 = scmp.ne.s32.totalorder %s59, %s62
    %p68 = scmp.eq.s32.totalorder %s11, 0
    %p69 = por %p67, %p68
    %p70 = scmp.ne.s32.totalorder %s59, %s62
    %p71 = scmp.eq.s32.totalorder %s16, 1
    %p72 = por %p70, %p71
    %p73 = scmp.ne.s32.totalorder %s62, %s63
    %p74 = scmp.eq.s32.totalorder %s16, 0
    %p75 = por %p73, %p74
    %p76 = scmp.ne.s32.totalorder %s62, %s63
    %p77 = scmp.eq.s32.totalorder %s17, 1
    %p78 = por %p76, %p77
    %p80 = scmp.ne.s32.totalorder %s63, %s79
    %p81 = scmp.eq.s32.totalorder %s17, 0
    %p82 = por %p80, %p81
    %s83 = ssub.s32 %s19, %s26
    %p84 = scmp.eq.s32.totalorder %s83, 0
    %s86 = sadd.s32 %s85, 1
    %s87 = scalar_select %p84, %s85, %s86
    %p90 = pneg %p84
    %p91 = scmp.eq.s32.totalorder %s11, 1
    %p92 = por %p90, %p91
    %p93 = scmp.ne.s32.totalorder %s85, %s88
    %p94 = scmp.eq.s32.totalorder %s11, 0
    %p95 = por %p93, %p94
    %p96 = scmp.ne.s32.totalorder %s85, %s88
    %p97 = scmp.eq.s32.totalorder %s16, 1
    %p98 = por %p96, %p97
    %p99 = scmp.ne.s32.totalorder %s88, %s89
    %p100 = scmp.eq.s32.totalorder %s16, 0
    %p101 = por %p99, %p100
    %p102 = scmp.ne.s32.totalorder %s88, %s89
    %p103 = scmp.eq.s32.totalorder %s17, 1
    %p104 = por %p102, %p103
    %p106 = scmp.ne.s32.totalorder %s89, %s105
    %p107 = scmp.eq.s32.totalorder %s17, 0
    %p108 = por %p106, %p107
    %s109 = ssub.s32 %s19, %s26
    %p110 = scmp.eq.s32.totalorder %s109, 0
    %s112 = sadd.s32 %s111, 1
    %s113 = scalar_select %p110, %s111, %s112
    %p116 = pneg %p110
    %p117 = scmp.eq.s32.totalorder %s11, 1
    %p118 = por %p116, %p117
    %p119 = scmp.ne.s32.totalorder %s111, %s114
    %p120 = scmp.eq.s32.totalorder %s11, 0
    %p121 = por %p119, %p120
    %p122 = scmp.ne.s32.totalorder %s111, %s114
    %p123 = scmp.eq.s32.totalorder %s16, 1
    %p124 = por %p122, %p123
    %p125 = scmp.ne.s32.totalorder %s114, %s115
    %p126 = scmp.eq.s32.totalorder %s16, 0
    %p127 = por %p125, %p126
    %p128 = scmp.ne.s32.totalorder %s114, %s115
    %p129 = scmp.eq.s32.totalorder %s17, 1
    %p130 = por %p128, %p129
    %p132 = scmp.ne.s32.totalorder %s115, %s131
    %p133 = scmp.eq.s32.totalorder %s17, 0
    %p134 = por %p132, %p133
    %s135 = ssub.s32 %s19, %s26
    %p136 = scmp.eq.s32.totalorder %s135, 0
    %s138 = sadd.s32 %s137, 1
    %s139 = scalar_select %p136, %s137, %s138
    %p142 = pneg %p136
    %p143 = scmp.eq.s32.totalorder %s11, 1
    %p144 = por %p142, %p143
    %p145 = scmp.ne.s32.totalorder %s137, %s140
    %p146 = scmp.eq.s32.totalorder %s11, 0
    %p147 = por %p145, %p146
    %p148 = scmp.ne.s32.totalorder %s137, %s140
    %p149 = scmp.eq.s32.totalorder %s16, 1
    %p150 = por %p148, %p149
    %p151 = scmp.ne.s32.totalorder %s140, %s141
    %p152 = scmp.eq.s32.totalorder %s16, 0
    %p153 = por %p151, %p152
    %p154 = scmp.ne.s32.totalorder %s140, %s141
    %p155 = scmp.eq.s32.totalorder %s17, 1
    %p156 = por %p154, %p155
    %p158 = scmp.ne.s32.totalorder %s141, %s157
    %p159 = scmp.eq.s32.totalorder %s17, 0
    %p160 = por %p158, %p159
    %s161 = ssub.s32 %s19, %s26
    %s162 = ssub.s32 %s18, %s30
    %s163 = sor.u32 %s161, %s162
    %p164 = scmp.eq.s32.totalorder %s163, 0
    %s166 = sadd.s32 %s165, 1
    %s167 = scalar_select %p164, %s165, %s166
    %p170 = pneg %p164
    %p171 = scmp.eq.s32.totalorder %s11, 1
    %p172 = por %p170, %p171
    %p173 = scmp.ne.s32.totalorder %s165, %s168
    %p174 = scmp.eq.s32.totalorder %s11, 0
    %p175 = por %p173, %p174
    %p176 = scmp.ne.s32.totalorder %s165, %s168
    %p177 = scmp.eq.s32.totalorder %s16, 1
    %p178 = por %p176, %p177
    %p179 = scmp.ne.s32.totalorder %s168, %s169
    %p180 = scmp.eq.s32.totalorder %s16, 0
    %p181 = por %p179, %p180
    %p182 = scmp.ne.s32.totalorder %s168, %s169
    %p183 = scmp.eq.s32.totalorder %s17, 1
    %p184 = por %p182, %p183
    %p186 = scmp.ne.s32.totalorder %s169, %s185
    %p187 = scmp.eq.s32.totalorder %s17, 0
    %p188 = por %p186, %p187
    %p189 = scmp.le.s32.totalorder 1, %s11
    %p190 = scmp.lt.s32.totalorder %s11, 3
    %p191 = pnand %p189, %p190
    %p192 = pneg %p191
    // Predicated region
    $region9: #{encoder_forward.12} parent=5 // pred_check
      _
    $region10: #{encoder_forward.12} parent=5 // pred_check_branch
      %194 = sbr.rel (%p191) target = $region12
    $region11: #{encoder_forward.12} parent=5 // pred_region
      %s195 = ssub.s32 %s11, 1
      // Predicated region
      $region13: #{encoder_forward.12} parent=11 // pred_check
        %p196 = pneg %p49
      $region14: #{encoder_forward.12} parent=11 // pred_check_branch
        %198 = sbr.rel (%p196) target = $region16
      $region15: #{encoder_forward.12} parent=11 // pred_region
        %s199 = smul.u32 2, %s20
        %p200 = scmp.lt.s32.totalorder %s199, 1
        %s201 = scalar_select %p200, %s199, 1
        %s202 = smul.addr %s201, 4
        %s203 = scalar_lea.vmem %s0, %s202
        %s204 = smul.u32 2, %s20
      $region16: #{encoder_forward.12} parent=11 // pred_fallthru
        _
      // Predicated region
      $region17: #{encoder_forward.12} parent=11 // pred_check
        %p205 = pneg %p75
      $region18: #{encoder_forward.12} parent=11 // pred_check_branch
        %207 = sbr.rel (%p205) target = $region20
      $region19: #{encoder_forward.12} parent=11 // pred_region
        %s208 = smul.u32 2, %s20
        %p209 = scmp.lt.s32.totalorder %s208, 1
        %s210 = scalar_select %p209, %s208, 1
        %s211 = smul.addr %s210, 4
        %s212 = scalar_lea.vmem %s1, %s211
        %s213 = smul.u32 2, %s20
      $region20: #{encoder_forward.12} parent=11 // pred_fallthru
        _
    $region12: #{encoder_forward.12} parent=5 // pred_fallthru
      _
    %p214 = scmp.lt.s32.totalorder %s11, 2
    // Predicated region
    $region21: #{encoder_forward.12} parent=5 // pred_check
      %p215 = pneg %p214
    $region22: #{encoder_forward.12} parent=5 // pred_check_branch
      %217 = sbr.rel (%p215) target = $region24
    $region23: #{encoder_forward.12} parent=5 // pred_region
      // Predicated region
      $region25: #{encoder_forward.12} parent=23 // pred_check
        %p218 = pneg %p95
      $region26: #{encoder_forward.12} parent=23 // pred_check_branch
        %220 = sbr.rel (%p218) target = $region28
      $region27: #{encoder_forward.12} parent=23 // pred_region
        %p221 = scmp.lt.s32.totalorder %s19, 1
        %s222 = scalar_select %p221, %s19, 1
        %s223 = smul.addr %s222, 2
        %s224 = smul.addr %s223, 4
        %s225 = scalar_lea.vmem %s2, %s224
      $region28: #{encoder_forward.12} parent=23 // pred_fallthru
        _
      // Predicated region
      $region29: #{encoder_forward.12} parent=23 // pred_check
        %p226 = pneg %p121
      $region30: #{encoder_forward.12} parent=23 // pred_check_branch
        %228 = sbr.rel (%p226) target = $region32
      $region31: #{encoder_forward.12} parent=23 // pred_region
        %p229 = scmp.lt.s32.totalorder %s19, 1
        %s230 = scalar_select %p229, %s19, 1
        %s231 = smul.addr %s230, 2
        %s232 = smul.addr %s231, 4
        %s233 = scalar_lea.vmem %s3, %s232
      $region32: #{encoder_forward.12} parent=23 // pred_fallthru
        _
      // Predicated region
      $region33: #{encoder_forward.12} parent=23 // pred_check
        %p234 = pneg %p147
      $region34: #{encoder_forward.12} parent=23 // pred_check_branch
        %236 = sbr.rel (%p234) target = $region36
      $region35: #{encoder_forward.12} parent=23 // pred_region
        %p237 = scmp.lt.s32.totalorder %s19, 1
        %s238 = scalar_select %p237, %s19, 1
        %s239 = scalar_lea.vmem %s4, %s238
      $region36: #{encoder_forward.12} parent=23 // pred_fallthru
        _
    $region24: #{encoder_forward.12} parent=5 // pred_fallthru
      _
    %p240 = scmp.le.s32.totalorder 1, %s11
    %p241 = scmp.lt.s32.totalorder %s11, 3
    %p242 = pnand %p240, %p241
    %p243 = pneg %p242
    // Predicated region
    $region37: #{encoder_forward.12} parent=5 // pred_check
      _
    $region38: #{encoder_forward.12} parent=5 // pred_check_branch
      %245 = sbr.rel (%p242) target = $region40
    $region39: #{encoder_forward.12} parent=5 // pred_region
      %s246 = ssub.s32 %s11, 1
      %s247 = smul.u32 2, %s20
      %p248 = scmp.lt.s32.totalorder %s247, 1
      %s249 = scalar_select %p248, %s247, 1
      %s250 = smul.addr %s249, 4
      %s251 = scalar_lea.vmem %s0, %s250
      %p252 = pneg %p49
      %p253 = pneg %p46
      %s254 = smul.u32 2, %s20
      %p255 = scmp.lt.s32.totalorder %s254, 1
      %s256 = scalar_select %p255, %s254, 1
      %s257 = smul.addr %s256, 4
      %s258 = scalar_lea.vmem %s1, %s257
      %p259 = pneg %p75
      %p260 = pneg %p72
      %p261 = scmp.lt.s32.totalorder %s21, 1
      %s262 = scalar_select %p261, %s21, 1
      %s263 = smul.addr %s262, 2
      %s264 = smul.addr %s263, 4
      %s265 = scalar_lea.vmem %s2, %s264
      %p266 = pneg %p101
      %p267 = pneg %p98
      %p268 = scmp.lt.s32.totalorder %s21, 1
      %s269 = scalar_select %p268, %s21, 1
      %s270 = smul.addr %s269, 2
      %s271 = smul.addr %s270, 4
      %s272 = scalar_lea.vmem %s3, %s271
      %p273 = pneg %p127
      %p274 = pneg %p124
      %p275 = scmp.lt.s32.totalorder %s21, 1
      %s276 = scalar_select %p275, %s21, 1
      %s277 = scalar_lea.vmem %s4, %s276
      %p278 = pneg %p153
      %p279 = pneg %p150
      %p280 = pneg %p181
      %p281 = pneg %p178
      %s282 = smul.u32 2, %s20
      %p283 = scmp.lt.s32.totalorder %s21, 1
      %s284 = scalar_select %p283, %s21, 1
      %p285 = scmp.lt.s32.totalorder %s282, 1
      %s286 = scalar_select %p285, %s282, 1
      %s287 = smul.addr %s284, 2
      %s288 = sadd.s32 %s286, %s287
      %s289 = smul.addr %s288, 4
      %s290 = scalar_lea.vmem %s5, %s289
      %s291 = smul.u32 2, %s20
      %p292 = scmp.lt.s32.totalorder %s291, 1
      %s293 = scalar_select %p292, %s291, 1
      %s294 = smul.addr %s293, 4
      %s295 = scalar_lea.vmem %s0, %s294
      %s296 = smul.u32 2, %s20
      %s297 = smul.u32 2, %s20
      %p298 = scmp.lt.s32.totalorder %s297, 1
      %s299 = scalar_select %p298, %s297, 1
      %s300 = smul.addr %s299, 4
      %s301 = scalar_lea.vmem %s1, %s300
      %s302 = smul.u32 2, %s20
      %p303 = scmp.lt.s32.totalorder %s21, 1
      %s304 = scalar_select %p303, %s21, 1
      %s305 = smul.addr %s304, 2
      %s306 = smul.addr %s305, 4
      %s307 = scalar_lea.vmem %s2, %s306
      %p308 = scmp.lt.s32.totalorder %s21, 1
      %s309 = scalar_select %p308, %s21, 1
      %s310 = smul.addr %s309, 2
      %s311 = smul.addr %s310, 4
      %s312 = scalar_lea.vmem %s3, %s311
      %p313 = scmp.lt.s32.totalorder %s21, 1
      %s314 = scalar_select %p313, %s21, 1
      %s315 = scalar_lea.vmem %s4, %s314
      %s316 = smul.u32 2, %s20
      %p317 = scmp.lt.s32.totalorder %s21, 1
      %s318 = scalar_select %p317, %s21, 1
      %p319 = scmp.lt.s32.totalorder %s316, 1
      %s320 = scalar_select %p319, %s316, 1
      %s321 = smul.addr %s318, 2
      %s322 = sadd.s32 %s320, %s321
      %s323 = smul.addr %s322, 4
      %s324 = scalar_lea.vmem %s5, %s323
      %s325 = smul.u32 2, %s20
      %v327 = vld [vmem:[%s295] sm:$0xf]
      %v328 = vld [vmem:[%s295 + $0x4] sm:$0xf]
      %v329 = vld [vmem:[%s307] sm:$0xf]
      %v330 = vld [vmem:[%s307 + $0x4] sm:$0xf]
      %v331 = vld [vmem:[%s301] sm:$0xf]
      %v332 = vld [vmem:[%s301 + $0x4] sm:$0xf]
      %v333 = vld [vmem:[%s312] sm:$0xf]
      %v334 = vld [vmem:[%s312 + $0x4] sm:$0xf]
      %v337 = vunpack.c.l.b16 %v331
      %v338 = vunpack.c.l.b16 %v332
      %v339 = vpack.c.b16 %v338, %v337
      %v342 = vunpack.c.l.b16 %v333
      %v343 = vunpack.c.l.b16 %v334
      %v344 = vpack.c.b16 %v343, %v342
      %vm346 = vcmask 130048
      %v348 = vsel %vm346, %v339, 0
      %350 = vmatprep.subr.bf16.mxu0 0
      %351 = vmatpush1.bf16.msra.mxu0 %v344
      %352 = vmatprep.subr.bf16.mxu0 0
      %353 = vmatpush1.bf16.msra.mxu0 0
      %354 = vmatprep.subr.bf16.mxu0 0
      %355 = vmatpush1.bf16.msra.mxu0 0
      %356 = vmatprep.subr.bf16.mxu0 0
      %357 = vmatpush1.bf16.msra.mxu0 0
      %358 = vmatprep.subr.bf16.mxu0 0
      %359 = vmatpush1.bf16.msra.mxu0 0
      %360 = vmatprep.subr.bf16.mxu0 0
      %361 = vmatpush1.bf16.msra.mxu0 0
      %362 = vmatprep.subr.bf16.mxu0 0
      %363 = vmatpush1.bf16.msra.mxu0 0
      %364 = vmatprep.subr.bf16.mxu0 0
      %365 = vmatpush1.bf16.msra.mxu0 0
      %366 = vmatprep.subr.bf16.mxu0 0
      %367 = vmatpush1.bf16.msra.mxu0 0
      %368 = vmatprep.subr.bf16.mxu0 0
      %369 = vmatpush1.bf16.msra.mxu0 0
      %370 = vmatprep.subr.bf16.mxu0 0
      %371 = vmatpush1.bf16.msra.mxu0 0
      %372 = vmatprep.subr.bf16.mxu0 0
      %373 = vmatpush1.bf16.msra.mxu0 0
      %374 = vmatprep.subr.bf16.mxu0 0
      %375 = vmatpush1.bf16.msra.mxu0 0
      %376 = vmatprep.subr.bf16.mxu0 0
      %377 = vmatpush1.bf16.msra.mxu0 0
      %378 = vmatprep.subr.bf16.mxu0 0
      %379 = vmatpush1.bf16.msra.mxu0 0
      %380 = vmatprep.subr.bf16.mxu0 0
      %381 = vmatpush1.bf16.msra.mxu0 0
      %382 = vmatprep.mubr.bf16.mxu0 0
      %383 = vmatmul.mubr.bf16.gmra.mrb[0].mxu0 %v348
      %v384 = vpop.f32.mrb[0].mxu0
      %v385 = vadd.f32 0.0, %v384
      %v386 = vpop.f32.mrb[0].mxu0
      %v387 = vpop.f32.mrb[0].mxu0
      %v388 = vadd.f32 0.0, %v387
      %v389 = vpop.f32.mrb[0].mxu0
      %390 = vdwg.mxu0
      %v393 = vunpack.c.l.b16 %v327
      %v394 = vunpack.c.l.b16 %v328
      %v395 = vpack.c.b16 %v394, %v393
      %v398 = vunpack.c.l.b16 %v329
      %v399 = vunpack.c.l.b16 %v330
      %v400 = vpack.c.b16 %v399, %v398
      %v403 = vsel %vm346, %v395, 0
      %405 = vmatprep.subr.bf16.mxu0 0
      %406 = vmatpush1.bf16.msra.mxu0 %v400
      %407 = vmatprep.subr.bf16.mxu0 0
      %408 = vmatpush1.bf16.msra.mxu0 0
      %409 = vmatprep.subr.bf16.mxu0 0
      %410 = vmatpush1.bf16.msra.mxu0 0
      %411 = vmatprep.subr.bf16.mxu0 0
      %412 = vmatpush1.bf16.msra.mxu0 0
      %413 = vmatprep.subr.bf16.mxu0 0
      %414 = vmatpush1.bf16.msra.mxu0 0
      %415 = vmatprep.subr.bf16.mxu0 0
      %416 = vmatpush1.bf16.msra.mxu0 0
      %417 = vmatprep.subr.bf16.mxu0 0
      %418 = vmatpush1.bf16.msra.mxu0 0
      %419 = vmatprep.subr.bf16.mxu0 0
      %420 = vmatpush1.bf16.msra.mxu0 0
      %421 = vmatprep.subr.bf16.mxu0 0
      %422 = vmatpush1.bf16.msra.mxu0 0
      %423 = vmatprep.subr.bf16.mxu0 0
      %424 = vmatpush1.bf16.msra.mxu0 0
      %425 = vmatprep.subr.bf16.mxu0 0
      %426 = vmatpush1.bf16.msra.mxu0 0
      %427 = vmatprep.subr.bf16.mxu0 0
      %428 = vmatpush1.bf16.msra.mxu0 0
      %429 = vmatprep.subr.bf16.mxu0 0
      %430 = vmatpush1.bf16.msra.mxu0 0
      %431 = vmatprep.subr.bf16.mxu0 0
      %432 = vmatpush1.bf16.msra.mxu0 0
      %433 = vmatprep.subr.bf16.mxu0 0
      %434 = vmatpush1.bf16.msra.mxu0 0
      %435 = vmatprep.subr.bf16.mxu0 0
      %436 = vmatpush1.bf16.msra.mxu0 0
      %437 = vmatprep.mubr.bf16.mxu0 0
      %438 = vmatmul.mubr.bf16.gmra.mrb[0].mxu0 %v403
      %v439 = vpop.f32.mrb[0].mxu0
      %v440 = vadd.f32 %v385, %v439
      %v441 = vpop.f32.mrb[0].mxu0
      %v442 = vpop.f32.mrb[0].mxu0
      %v443 = vadd.f32 %v388, %v442
      %v444 = vpop.f32.mrb[0].mxu0
      %445 = vdwg.mxu0
      %v446 = vld [vmem:[%s315] sm:$0x1]
      %v448 = vlaneseq
      %v449 = vshrl.u32 %v448, 7
      %v450 = vsub.s32 0, %v449
      %v451 = vrot.slane %v446, %v450
      %v453 = vadd.f32 %v440, %v451
      %v454 = vadd.f32 %v443, %v451
      %v455 = vpack.c.bf16 %v454, %v453
      %v457 = vunpack.c.l.b16 %v455
      %v458 = vunpack.c.h.b16 %v455
      %v459 = vpack.c.b16 %v457, %v457
      %v460 = vpack.c.b16 %v458, %v458
      %vm463 = vcmask 388096
      %464 = vst.msk [vmem:[%s324] sm:$0xf] %vm463, %v459
      %465 = vst.msk [vmem:[%s324 + $0x4] sm:$0xf] %vm463, %v460
      %s466 = smul.u32 2, %s20
      %p467 = scmp.lt.s32.totalorder %s21, 1
      %s468 = scalar_select %p467, %s21, 1
      %p469 = scmp.lt.s32.totalorder %s466, 1
      %s470 = scalar_select %p469, %s466, 1
      %s471 = smul.addr %s468, 2
      %s472 = sadd.s32 %s470, %s471
      %s473 = smul.addr %s472, 4
      %s474 = scalar_lea.vmem %s5, %s473
      // Predicated region
      $region41: #{encoder_forward.12} parent=39 // pred_check
        %p475 = pneg %p178
      $region42: #{encoder_forward.12} parent=39 // pred_check_branch
        %477 = sbr.rel (%p475) target = $region44
      $region43: #{encoder_forward.12} parent=39 // pred_region
        %s478 = smul.u32 2, %s20
      $region44: #{encoder_forward.12} parent=39 // pred_fallthru
        _
    $region40: #{encoder_forward.12} parent=5 // pred_fallthru
      _
    %p479 = scmp.le.s32.totalorder 2, %s11
    // Predicated region
    $region45: #{encoder_forward.12} parent=5 // pred_check
      %p480 = pneg %p479
    $region46: #{encoder_forward.12} parent=5 // pred_check_branch
      %482 = sbr.rel (%p480) target = $region48
    $region47: #{encoder_forward.12} parent=5 // pred_region
      %s483 = ssub.s32 %s11, 2
      // Predicated region
      $region49: #{encoder_forward.12} parent=47 // pred_check
        %p484 = pneg %p184
      $region50: #{encoder_forward.12} parent=47 // pred_check_branch
        %486 = sbr.rel (%p484) target = $region52
      $region51: #{encoder_forward.12} parent=47 // pred_region
        %s487 = smul.u32 2, %s22
        %p488 = scmp.lt.s32.totalorder %s23, 1
        %s489 = scalar_select %p488, %s23, 1
        %p490 = scmp.lt.s32.totalorder %s487, 1
        %s491 = scalar_select %p490, %s487, 1
        %s492 = smul.addr %s489, 2
        %s493 = sadd.s32 %s491, %s492
        %s494 = smul.addr %s493, 4
        %s495 = scalar_lea.vmem %s5, %s494
      $region52: #{encoder_forward.12} parent=47 // pred_fallthru
        _
    $region48: #{encoder_forward.12} parent=5 // pred_fallthru
      _
  $region6: #{encoder_forward.12} parent=0 // loop_footer
    %s15 = sadd.s32 1, %s11
  $region7: #{encoder_forward.12} parent=0 // loop_footer_branch
    %10 = sbr.rel target = $region3
  $region8: #{encoder_forward.12} parent=0 // loop_exit
    _

// kernel: encoder_forward.13
$region0: #{encoder_forward.13}
  #allocation0 [shape = 'u32[]', space=smem, size = 0x4, offset = 0x4, fixed_abs, tag = 'smem constant byte address 0x4 - core index']
  #allocation1 [shape = 'u32[144,128]{1,0:T(1,128)}', space=vmem, size = 0x12000, scoped, tag = 'internal scratch']
  #allocation2 [shape = 'f32[2,16]{1,0:T(2,128)}', space=vmem, size = 0x400, scoped, tag = 'scratch operand']
  %s0 = inlined_call_operand.vmem [shape: bf16[2,8,2,48], index: 0, kind: input, shape index: {}]
  %s1 = inlined_call_operand.vmem [shape: bf16[2,16,48], index: 1, kind: input, shape index: {}]
  %s2 = inlined_call_operand.vmem [shape: f32[2,1,48], index: 2, kind: input, shape index: {}]
  %s3 = inlined_call_operand.vmem [shape: f32[2,8,2,16], index: 3, kind: output, shape index: {0}]
  %s4 = inlined_call_operand.vmem [shape: f32[2,2,16], index: 4, kind: output, shape index: {1}]
  %5 = xla_tuple %s3, %s4
  %s6 = sld [smem:[#allocation0]]
  $region64: #{encoder_forward.13} parent=0
    _
  %s8 = ssub.s32 1, %s6
  %s9 = scalar_select 0, %s8, %s6
  loop: start=0, step=1, limit=4
  $region2: #{encoder_forward.13} parent=0 // loop_pre_header
    _
  $region3: #{encoder_forward.13} parent=0 // loop_header
    %s11 = sphi 0, %s15
    %p12 = scmp.ge.s32.totalorder %s11, 4
    %s18 = sphi 0, %s30
    %s19 = sphi 0, %s26
    %s20 = sphi 0, %s18
    %s21 = sphi 0, %s19
    %s22 = sphi 0, %s20
    %s23 = sphi 0, %s21
    %s45 = sphi 0, %s47
    %s48 = sphi 0, %s45
    %s49 = sphi 0, %s48
    %s65 = sphi 0, %s49
    %s71 = sphi 0, %s73
    %s74 = sphi 0, %s71
    %s75 = sphi 0, %s74
    %s91 = sphi 0, %s75
    %s97 = sphi 0, %s99
    %s100 = sphi 0, %s97
    %s101 = sphi 0, %s100
    %s117 = sphi 0, %s101
    %s135 = sphi 0, %s137
    %s138 = sphi 0, %s135
    %s139 = sphi 0, %s138
    %s155 = sphi 0, %s139
    %s161 = sphi 0, %s163
    %s164 = sphi 0, %s161
    %s165 = sphi 0, %s164
    %s181 = sphi 0, %s165
  $region4: #{encoder_forward.13} parent=0 // loop_header_branch
    %14 = sbr.rel (%p12) target = $region8
  $region5: #{encoder_forward.13} parent=0 // loop_body
    %s16 = ssub.s32 %s11, 1
    %s17 = ssub.s32 %s11, 2
    %s24 = sadd.s32 1, %s19
    %p25 = scmp.ge.s32.totalorder %s24, 1
    %s26 = scalar_select %p25, 0, %s24
    %s27 = sadd.s32 1, %s18
    %s28 = scalar_select %p25, %s27, %s18
    %p29 = scmp.ge.s32.totalorder %s28, 2
    %s30 = scalar_select %p29, 0, %s28
    %s31 = ssub.s32 0, %s19
    %s32 = smul.u32 %s18, %s31
    %s33 = ssub.s32 1, %s18
    %s34 = smul.u32 %s33, %s19
    %s35 = sadd.s32 %s32, %s34
    %s36 = ssub.s32 0, %s26
    %s37 = smul.u32 %s30, %s36
    %s38 = ssub.s32 1, %s30
    %s39 = smul.u32 %s38, %s26
    %s40 = sadd.s32 %s37, %s39
    %s41 = ssub.s32 %s18, %s30
    %s42 = ssub.s32 %s35, %s40
    %s43 = sor.u32 %s41, %s42
    %p44 = scmp.eq.s32.totalorder %s43, 0
    %s46 = sadd.s32 %s45, 1
    %s47 = scalar_select %p44, %s45, %s46
    %p50 = pneg %p44
    %p51 = scmp.eq.s32.totalorder %s11, 1
    %p52 = por %p50, %p51
    %p53 = scmp.ne.s32.totalorder %s45, %s48
    %p54 = scmp.eq.s32.totalorder %s11, 0
    %p55 = por %p53, %p54
    %p56 = scmp.ne.s32.totalorder %s45, %s48
    %p57 = scmp.eq.s32.totalorder %s16, 1
    %p58 = por %p56, %p57
    %p59 = scmp.ne.s32.totalorder %s48, %s49
    %p60 = scmp.eq.s32.totalorder %s16, 0
    %p61 = por %p59, %p60
    %p62 = scmp.ne.s32.totalorder %s48, %s49
    %p63 = scmp.eq.s32.totalorder %s17, 1
    %p64 = por %p62, %p63
    %p66 = scmp.ne.s32.totalorder %s49, %s65
    %p67 = scmp.eq.s32.totalorder %s17, 0
    %p68 = por %p66, %p67
    %s69 = ssub.s32 %s18, %s30
    %p70 = scmp.eq.s32.totalorder %s69, 0
    %s72 = sadd.s32 %s71, 1
    %s73 = scalar_select %p70, %s71, %s72
    %p76 = pneg %p70
    %p77 = scmp.eq.s32.totalorder %s11, 1
    %p78 = por %p76, %p77
    %p79 = scmp.ne.s32.totalorder %s71, %s74
    %p80 = scmp.eq.s32.totalorder %s11, 0
    %p81 = por %p79, %p80
    %p82 = scmp.ne.s32.totalorder %s71, %s74
    %p83 = scmp.eq.s32.totalorder %s16, 1
    %p84 = por %p82, %p83
    %p85 = scmp.ne.s32.totalorder %s74, %s75
    %p86 = scmp.eq.s32.totalorder %s16, 0
    %p87 = por %p85, %p86
    %p88 = scmp.ne.s32.totalorder %s74, %s75
    %p89 = scmp.eq.s32.totalorder %s17, 1
    %p90 = por %p88, %p89
    %p92 = scmp.ne.s32.totalorder %s75, %s91
    %p93 = scmp.eq.s32.totalorder %s17, 0
    %p94 = por %p92, %p93
    %s95 = ssub.s32 %s18, %s30
    %p96 = scmp.eq.s32.totalorder %s95, 0
    %s98 = sadd.s32 %s97, 1
    %s99 = scalar_select %p96, %s97, %s98
    %p102 = pneg %p96
    %p103 = scmp.eq.s32.totalorder %s11, 1
    %p104 = por %p102, %p103
    %p105 = scmp.ne.s32.totalorder %s97, %s100
    %p106 = scmp.eq.s32.totalorder %s11, 0
    %p107 = por %p105, %p106
    %p108 = scmp.ne.s32.totalorder %s97, %s100
    %p109 = scmp.eq.s32.totalorder %s16, 1
    %p110 = por %p108, %p109
    %p111 = scmp.ne.s32.totalorder %s100, %s101
    %p112 = scmp.eq.s32.totalorder %s16, 0
    %p113 = por %p111, %p112
    %p114 = scmp.ne.s32.totalorder %s100, %s101
    %p115 = scmp.eq.s32.totalorder %s17, 1
    %p116 = por %p114, %p115
    %p118 = scmp.ne.s32.totalorder %s101, %s117
    %p119 = scmp.eq.s32.totalorder %s17, 0
    %p120 = por %p118, %p119
    %s121 = ssub.s32 0, %s19
    %s122 = smul.u32 %s18, %s121
    %s123 = ssub.s32 1, %s18
    %s124 = smul.u32 %s123, %s19
    %s125 = sadd.s32 %s122, %s124
    %s126 = ssub.s32 0, %s26
    %s127 = smul.u32 %s30, %s126
    %s128 = ssub.s32 1, %s30
    %s129 = smul.u32 %s128, %s26
    %s130 = sadd.s32 %s127, %s129
    %s131 = ssub.s32 %s18, %s30
    %s132 = ssub.s32 %s125, %s130
    %s133 = sor.u32 %s131, %s132
    %p134 = scmp.eq.s32.totalorder %s133, 0
    %s136 = sadd.s32 %s135, 1
    %s137 = scalar_select %p134, %s135, %s136
    %p140 = pneg %p134
    %p141 = scmp.eq.s32.totalorder %s11, 1
    %p142 = por %p140, %p141
    %p143 = scmp.ne.s32.totalorder %s135, %s138
    %p144 = scmp.eq.s32.totalorder %s11, 0
    %p145 = por %p143, %p144
    %p146 = scmp.ne.s32.totalorder %s135, %s138
    %p147 = scmp.eq.s32.totalorder %s16, 1
    %p148 = por %p146, %p147
    %p149 = scmp.ne.s32.totalorder %s138, %s139
    %p150 = scmp.eq.s32.totalorder %s16, 0
    %p151 = por %p149, %p150
    %p152 = scmp.ne.s32.totalorder %s138, %s139
    %p153 = scmp.eq.s32.totalorder %s17, 1
    %p154 = por %p152, %p153
    %p156 = scmp.ne.s32.totalorder %s139, %s155
    %p157 = scmp.eq.s32.totalorder %s17, 0
    %p158 = por %p156, %p157
    %s159 = ssub.s32 %s18, %s30
    %p160 = scmp.eq.s32.totalorder %s159, 0
    %s162 = sadd.s32 %s161, 1
    %s163 = scalar_select %p160, %s161, %s162
    %p166 = pneg %p160
    %p167 = scmp.eq.s32.totalorder %s11, 1
    %p168 = por %p166, %p167
    %p169 = scmp.ne.s32.totalorder %s161, %s164
    %p170 = scmp.eq.s32.totalorder %s11, 0
    %p171 = por %p169, %p170
    %p172 = scmp.ne.s32.totalorder %s161, %s164
    %p173 = scmp.eq.s32.totalorder %s16, 1
    %p174 = por %p172, %p173
    %p175 = scmp.ne.s32.totalorder %s164, %s165
    %p176 = scmp.eq.s32.totalorder %s16, 0
    %p177 = por %p175, %p176
    %p178 = scmp.ne.s32.totalorder %s164, %s165
    %p179 = scmp.eq.s32.totalorder %s17, 1
    %p180 = por %p178, %p179
    %p182 = scmp.ne.s32.totalorder %s165, %s181
    %p183 = scmp.eq.s32.totalorder %s17, 0
    %p184 = por %p182, %p183
    %p185 = scmp.le.s32.totalorder 1, %s11
    %p186 = scmp.lt.s32.totalorder %s11, 3
    %p187 = pnand %p185, %p186
    %p188 = pneg %p187
    // Predicated region
    $region9: #{encoder_forward.13} parent=5 // pred_check
      _
    $region10: #{encoder_forward.13} parent=5 // pred_check_branch
      %190 = sbr.rel (%p187) target = $region12
    $region11: #{encoder_forward.13} parent=5 // pred_region
      %s191 = ssub.s32 %s11, 1
    $region12: #{encoder_forward.13} parent=5 // pred_fallthru
      _
    %p192 = scmp.lt.s32.totalorder %s11, 2
    // Predicated region
    $region13: #{encoder_forward.13} parent=5 // pred_check
      %p193 = pneg %p192
    $region14: #{encoder_forward.13} parent=5 // pred_check_branch
      %195 = sbr.rel (%p193) target = $region16
    $region15: #{encoder_forward.13} parent=5 // pred_region
      // Predicated region
      $region17: #{encoder_forward.13} parent=15 // pred_check
        %p196 = pneg %p55
      $region18: #{encoder_forward.13} parent=15 // pred_check_branch
        %198 = sbr.rel (%p196) target = $region20
      $region19: #{encoder_forward.13} parent=15 // pred_region
        %s199 = ssub.s32 0, %s19
        %s200 = smul.u32 %s18, %s199
        %s201 = ssub.s32 1, %s18
        %s202 = smul.u32 %s201, %s19
        %s203 = sadd.s32 %s200, %s202
        %s204 = smul.u32 8, %s203
        %p205 = scmp.lt.s32.totalorder %s18, 1
        %s206 = scalar_select %p205, %s18, 1
        %p207 = scmp.lt.s32.totalorder %s204, 7
        %s208 = scalar_select %p207, %s204, 7
        %s209 = smul.addr %s206, 8
        %s210 = sadd.s32 %s208, %s209
        %s211 = scalar_lea.vmem %s0, %s210
        %s212 = ssub.s32 0, %s19
        %s213 = smul.u32 %s18, %s212
        %s214 = ssub.s32 1, %s18
        %s215 = smul.u32 %s214, %s19
        %s216 = sadd.s32 %s213, %s215
        %s217 = smul.u32 8, %s216
      $region20: #{encoder_forward.13} parent=15 // pred_fallthru
        _
      // Predicated region
      $region21: #{encoder_forward.13} parent=15 // pred_check
        %p218 = pneg %p81
      $region22: #{encoder_forward.13} parent=15 // pred_check_branch
        %220 = sbr.rel (%p218) target = $region24
      $region23: #{encoder_forward.13} parent=15 // pred_region
        %p221 = scmp.lt.s32.totalorder %s18, 1
        %s222 = scalar_select %p221, %s18, 1
        %s223 = smul.addr %s222, 2
        %s224 = smul.addr %s223, 4
        %s225 = scalar_lea.vmem %s1, %s224
      $region24: #{encoder_forward.13} parent=15 // pred_fallthru
        _
      // Predicated region
      $region25: #{encoder_forward.13} parent=15 // pred_check
        %p226 = pneg %p107
      $region26: #{encoder_forward.13} parent=15 // pred_check_branch
        %228 = sbr.rel (%p226) target = $region28
      $region27: #{encoder_forward.13} parent=15 // pred_region
        %p229 = scmp.lt.s32.totalorder %s18, 1
        %s230 = scalar_select %p229, %s18, 1
        %s231 = scalar_lea.vmem %s2, %s230
      $region28: #{encoder_forward.13} parent=15 // pred_fallthru
        _
    $region16: #{encoder_forward.13} parent=5 // pred_fallthru
      _
    %p232 = scmp.le.s32.totalorder 1, %s11
    %p233 = scmp.lt.s32.totalorder %s11, 3
    %p234 = pnand %p232, %p233
    %p235 = pneg %p234
    // Predicated region
    $region29: #{encoder_forward.13} parent=5 // pred_check
      _
    $region30: #{encoder_forward.13} parent=5 // pred_check_branch
      %237 = sbr.rel (%p234) target = $region32
    $region31: #{encoder_forward.13} parent=5 // pred_region
      %s238 = ssub.s32 %s11, 1
      %s239 = ssub.s32 0, %s21
      %s240 = smul.u32 %s20, %s239
      %s241 = ssub.s32 1, %s20
      %s242 = smul.u32 %s241, %s21
      %s243 = sadd.s32 %s240, %s242
      %s244 = smul.u32 8, %s243
      %p245 = scmp.lt.s32.totalorder %s20, 1
      %s246 = scalar_select %p245, %s20, 1
      %p247 = scmp.lt.s32.totalorder %s244, 7
      %s248 = scalar_select %p247, %s244, 7
      %s249 = smul.addr %s246, 8
      %s250 = sadd.s32 %s248, %s249
      %s251 = scalar_lea.vmem %s0, %s250
      %p252 = pneg %p61
      %p253 = pneg %p58
      %p254 = scmp.lt.s32.totalorder %s20, 1
      %s255 = scalar_select %p254, %s20, 1
      %s256 = smul.addr %s255, 2
      %s257 = smul.addr %s256, 4
      %s258 = scalar_lea.vmem %s1, %s257
      %p259 = pneg %p87
      %p260 = pneg %p84
      %p261 = scmp.lt.s32.totalorder %s20, 1
      %s262 = scalar_select %p261, %s20, 1
      %s263 = scalar_lea.vmem %s2, %s262
      %p264 = pneg %p113
      %p265 = pneg %p110
      %p266 = pneg %p151
      %p267 = pneg %p148
      %s268 = ssub.s32 0, %s21
      %s269 = smul.u32 %s20, %s268
      %s270 = ssub.s32 1, %s20
      %s271 = smul.u32 %s270, %s21
      %s272 = sadd.s32 %s269, %s271
      %s273 = smul.u32 8, %s272
      %p274 = scmp.lt.s32.totalorder %s20, 1
      %s275 = scalar_select %p274, %s20, 1
      %p276 = scmp.lt.s32.totalorder %s273, 7
      %s277 = scalar_select %p276, %s273, 7
      %s278 = smul.addr %s275, 8
      %s279 = sadd.s32 %s277, %s278
      %s280 = smul.addr %s279, 2
      %s281 = scalar_lea.vmem %s3, %s280
      %p282 = pneg %p177
      %p283 = pneg %p174
      %p284 = scmp.lt.s32.totalorder %s20, 1
      %s285 = scalar_select %p284, %s20, 1
      %s286 = smul.addr %s285, 2
      %s287 = scalar_lea.vmem %s4, %s286
      %s288 = ssub.s32 0, %s21
      %s289 = smul.u32 %s20, %s288
      %s290 = ssub.s32 1, %s20
      %s291 = smul.u32 %s290, %s21
      %s292 = sadd.s32 %s289, %s291
      %s293 = smul.u32 8, %s292
      %p294 = scmp.lt.s32.totalorder %s20, 1
      %s295 = scalar_select %p294, %s20, 1
      %p296 = scmp.lt.s32.totalorder %s293, 7
      %s297 = scalar_select %p296, %s293, 7
      %s298 = smul.addr %s295, 8
      %s299 = sadd.s32 %s297, %s298
      %s300 = scalar_lea.vmem %s0, %s299
      %s301 = ssub.s32 0, %s21
      %s302 = smul.u32 %s20, %s301
      %s303 = ssub.s32 1, %s20
      %s304 = smul.u32 %s303, %s21
      %s305 = sadd.s32 %s302, %s304
      %s306 = smul.u32 8, %s305
      %p307 = scmp.lt.s32.totalorder %s20, 1
      %s308 = scalar_select %p307, %s20, 1
      %s309 = smul.addr %s308, 2
      %s310 = smul.addr %s309, 4
      %s311 = scalar_lea.vmem %s1, %s310
      %p312 = scmp.lt.s32.totalorder %s20, 1
      %s313 = scalar_select %p312, %s20, 1
      %s314 = scalar_lea.vmem %s2, %s313
      %s315 = ssub.s32 0, %s21
      %s316 = smul.u32 %s20, %s315
      %s317 = ssub.s32 1, %s20
      %s318 = smul.u32 %s317, %s21
      %s319 = sadd.s32 %s316, %s318
      %s320 = smul.u32 8, %s319
      %p321 = scmp.lt.s32.totalorder %s20, 1
      %s322 = scalar_select %p321, %s20, 1
      %p323 = scmp.lt.s32.totalorder %s320, 7
      %s324 = scalar_select %p323, %s320, 7
      %s325 = smul.addr %s322, 8
      %s326 = sadd.s32 %s324, %s325
      %s327 = smul.addr %s326, 2
      %s328 = scalar_lea.vmem %s3, %s327
      %s329 = ssub.s32 0, %s21
      %s330 = smul.u32 %s20, %s329
      %s331 = ssub.s32 1, %s20
      %s332 = smul.u32 %s331, %s21
      %s333 = sadd.s32 %s330, %s332
      %s334 = smul.u32 8, %s333
      %p335 = scmp.lt.s32.totalorder %s20, 1
      %s336 = scalar_select %p335, %s20, 1
      %s337 = smul.addr %s336, 2
      %s338 = scalar_lea.vmem %s4, %s337
      %p340 = scmp.eq.s32.totalorder %s21, 0
      // Predicated region
      $region33: #{encoder_forward.13} parent=31 // pred_check
        %p341 = pneg %p340
      $region34: #{encoder_forward.13} parent=31 // pred_check_branch
        %343 = sbr.rel (%p341) target = $region36
      $region35: #{encoder_forward.13} parent=31 // pred_region
        %vm344 = vcmask 123904
        %345 = vst.msk [vmem:[#allocation2] sm:$0x3] %vm344, 0.0
      $region36: #{encoder_forward.13} parent=31 // pred_fallthru
        _
      %v346 = vld [vmem:[%s311] sm:$0xf]
      %v347 = vld [vmem:[%s311 + $0x4] sm:$0xf]
      %v348 = vld [vmem:[%s314] sm:$0x1]
      %p349 = scmp.eq.s32.totalorder %s20, 1
      %v350 = vld [vmem:[#allocation2] sm:$0x3]
      loop: start=0, step=1, limit=8
      $region37: #{encoder_forward.13} parent=31 // loop_pre_header
        _
      $region38: #{encoder_forward.13} parent=31 // loop_header
        %s352 = sphi 0, %s356
        %p353 = scmp.ge.s32.totalorder %s352, 8
        %v357 = vphi %v350, %v473
      $region39: #{encoder_forward.13} parent=31 // loop_header_branch
        %355 = sbr.rel (%p353) target = $region43
      $region40: #{encoder_forward.13} parent=31 // loop_body
        %s358 = ssub.s32 7, %s352
        %s359 = scalar_select %p349, %s358, %s352
        %s360 = scalar_lea.vmem %s300, %s359
        %v361 = vld [vmem:[%s360] sm:$0x1]
        %v362 = vpack.c.bf16 %v357, %v357
        %v364 = vlaneseq
        %v365 = vshrl.u32 %v364, 7
        %v366 = vsub.s32 0, %v365
        %v367 = vrot.slane %v348, %v366
        %v371 = vunpack.c.l.b16 %v346
        %v372 = vunpack.c.l.b16 %v347
        %v373 = vpack.c.b16 %v372, %v371
        %vm375 = vcmask 130048
        %v377 = vsel %vm375, %v362, 0
        %379 = vmatprep.subr.bf16.mxu0 0
        %380 = vmatpush1.bf16.msra.mxu0 %v373
        %381 = vmatprep.subr.bf16.mxu0 0
        %382 = vmatpush1.bf16.msra.mxu0 0
        %383 = vmatprep.subr.bf16.mxu0 0
        %384 = vmatpush1.bf16.msra.mxu0 0
        %385 = vmatprep.subr.bf16.mxu0 0
        %386 = vmatpush1.bf16.msra.mxu0 0
        %387 = vmatprep.subr.bf16.mxu0 0
        %388 = vmatpush1.bf16.msra.mxu0 0
        %389 = vmatprep.subr.bf16.mxu0 0
        %390 = vmatpush1.bf16.msra.mxu0 0
        %391 = vmatprep.subr.bf16.mxu0 0
        %392 = vmatpush1.bf16.msra.mxu0 0
        %393 = vmatprep.subr.bf16.mxu0 0
        %394 = vmatpush1.bf16.msra.mxu0 0
        %395 = vmatprep.subr.bf16.mxu0 0
        %396 = vmatpush1.bf16.msra.mxu0 0
        %397 = vmatprep.subr.bf16.mxu0 0
        %398 = vmatpush1.bf16.msra.mxu0 0
        %399 = vmatprep.subr.bf16.mxu0 0
        %400 = vmatpush1.bf16.msra.mxu0 0
        %401 = vmatprep.subr.bf16.mxu0 0
        %402 = vmatpush1.bf16.msra.mxu0 0
        %403 = vmatprep.subr.bf16.mxu0 0
        %404 = vmatpush1.bf16.msra.mxu0 0
        %405 = vmatprep.subr.bf16.mxu0 0
        %406 = vmatpush1.bf16.msra.mxu0 0
        %407 = vmatprep.subr.bf16.mxu0 0
        %408 = vmatpush1.bf16.msra.mxu0 0
        %409 = vmatprep.subr.bf16.mxu0 0
        %410 = vmatpush1.bf16.msra.mxu0 0
        %411 = vmatprep.mubr.bf16.mxu0 0
        %412 = vmatmul.mubr.bf16.gmra.mrb[0].mxu0 %v377
        %v413 = vpop.f32.mrb[0].mxu0
        %v414 = vadd.f32 %v367, %v413
        %v415 = vpop.f32.mrb[0].mxu0
        %v416 = vpop.f32.mrb[0].mxu0
        %v417 = vpop.f32.mrb[0].mxu0
        %418 = vdwg.mxu0
        %v419 = vunpack.c.l.bf16 %v361
        %v420 = vadd.f32 %v419, %v414
        %v421 = vxor.u32 %v420, 2147483648
        %v422 = vmul.f32 %v421, 1.442695
        %v423 = vpow.pop %v422
        %v424 = vadd.f32 %v423, 1.0
        %v425 = vrcp.pop %v424
        %v426 = vmul.f32 1.0, %v425
        %v429 = vunpack.c.l.s4 1983009808
        %v430 = vunpack.c.0.s8 %v429
        %v431 = vlaneseq
        %v432 = vshrl.u32 %v431, 7
        %v433 = vsub.s32 %v430, %v432
        %v434 = vrot.slane %v414, %v433
        %435 = vrot.lane.b32.xlu0 %v434, 96
        %v436 = vpop.permute.xlu0 %435
        %v438 = vmul.f32 %v426, %v436
        %440 = vrot.lane.b32.xlu0 %v438, 32
        %v441 = vpop.permute.xlu0 %440
        %v443 = vadd.f32 %v419, %v441
        %v444 = vtanh.pop %v443
        %v445 = vsub.f32 1.0, %v426
        %447 = vrot.lane.b32.xlu0 %v444, 112
        %v448 = vpop.permute.xlu0 %447
        %v450 = vmul.f32 %v445, %v448
        %v453 = vunpack.c.l.s4 1983009808
        %v454 = vunpack.c.0.s8 %v453
        %v455 = vlaneseq
        %v456 = vshrl.u32 %v455, 7
        %v457 = vsub.s32 %v454, %v456
        %v458 = vrot.slane %v357, %v457
        %459 = vrot.lane.b32.xlu0 %v458, 16
        %v460 = vpop.permute.xlu0 %459
        %v462 = vmul.f32 %v426, %v460
        %v463 = vadd.f32 %v450, %v462
        %v466 = vunpack.c.l.s4 1983009808
        %v467 = vunpack.c.0.s8 %v466
        %v468 = vlaneseq
        %v469 = vshrl.u32 %v468, 7
        %v470 = vsub.s32 %v467, %v469
        %v471 = vrot.slane %v463, %v470
        %472 = vrot.lane.b32.xlu0 %v471, 112
        %v473 = vpop.permute.xlu0 %472
        %s475 = smul.u32 %s359, 2
        %s476 = scalar_lea.vmem %s328, %s475
        %vm477 = vcmask 123904
        %478 = vst.msk [vmem:[%s476] sm:$0x3] %vm477, %v473
      $region41: #{encoder_forward.13} parent=31 // loop_footer
        %s356 = sadd.s32 1, %s352
      $region42: #{encoder_forward.13} parent=31 // loop_footer_branch
        %351 = sbr.rel target = $region38
      $region43: #{encoder_forward.13} parent=31 // loop_exit
        _
      %vm479 = vcmask 123904
      %480 = vst.msk [vmem:[#allocation2] sm:$0x3] %vm479, %v357
      %481 = vst.msk [vmem:[%s338] sm:$0x3] %vm479, %v357
      %s482 = ssub.s32 0, %s21
      %s483 = smul.u32 %s20, %s482
      %s484 = ssub.s32 1, %s20
      %s485 = smul.u32 %s484, %s21
      %s486 = sadd.s32 %s483, %s485
      %s487 = smul.u32 8, %s486
      %p488 = scmp.lt.s32.totalorder %s20, 1
      %s489 = scalar_select %p488, %s20, 1
      %p490 = scmp.lt.s32.totalorder %s487, 7
      %s491 = scalar_select %p490, %s487, 7
      %s492 = smul.addr %s489, 8
      %s493 = sadd.s32 %s491, %s492
      %s494 = smul.addr %s493, 2
      %s495 = scalar_lea.vmem %s3, %s494
      %p496 = scmp.lt.s32.totalorder %s20, 1
      %s497 = scalar_select %p496, %s20, 1
      %s498 = smul.addr %s497, 2
      %s499 = scalar_lea.vmem %s4, %s498
      // Predicated region
      $region44: #{encoder_forward.13} parent=31 // pred_check
        %p500 = pneg %p148
      $region45: #{encoder_forward.13} parent=31 // pred_check_branch
        %502 = sbr.rel (%p500) target = $region47
      $region46: #{encoder_forward.13} parent=31 // pred_region
        %s503 = ssub.s32 0, %s21
        %s504 = smul.u32 %s20, %s503
        %s505 = ssub.s32 1, %s20
        %s506 = smul.u32 %s505, %s21
        %s507 = sadd.s32 %s504, %s506
        %s508 = smul.u32 8, %s507
      $region47: #{encoder_forward.13} parent=31 // pred_fallthru
        _
      // Predicated region
      $region48: #{encoder_forward.13} parent=31 // pred_check
        %p509 = pneg %p174
      $region49: #{encoder_forward.13} parent=31 // pred_check_branch
        %511 = sbr.rel (%p509) target = $region51
      $region50: #{encoder_forward.13} parent=31 // pred_region
        _
      $region51: #{encoder_forward.13} parent=31 // pred_fallthru
        _
    $region32: #{encoder_forward.13} parent=5 // pred_fallthru
      _
    %p512 = scmp.le.s32.totalorder 2, %s11
    // Predicated region
    $region52: #{encoder_forward.13} parent=5 // pred_check
      %p513 = pneg %p512
    $region53: #{encoder_forward.13} parent=5 // pred_check_branch
      %515 = sbr.rel (%p513) target = $region55
    $region54: #{encoder_forward.13} parent=5 // pred_region
      %s516 = ssub.s32 %s11, 2
      // Predicated region
      $region56: #{encoder_forward.13} parent=54 // pred_check
        %p517 = pneg %p154
      $region57: #{encoder_forward.13} parent=54 // pred_check_branch
        %519 = sbr.rel (%p517) target = $region59
      $region58: #{encoder_forward.13} parent=54 // pred_region
        %s520 = ssub.s32 0, %s23
        %s521 = smul.u32 %s22, %s520
        %s522 = ssub.s32 1, %s22
        %s523 = smul.u32 %s522, %s23
        %s524 = sadd.s32 %s521, %s523
        %s525 = smul.u32 8, %s524
        %p526 = scmp.lt.s32.totalorder %s22, 1
        %s527 = scalar_select %p526, %s22, 1
        %p528 = scmp.lt.s32.totalorder %s525, 7
        %s529 = scalar_select %p528, %s525, 7
        %s530 = smul.addr %s527, 8
        %s531 = sadd.s32 %s529, %s530
        %s532 = smul.addr %s531, 2
        %s533 = scalar_lea.vmem %s3, %s532
      $region59: #{encoder_forward.13} parent=54 // pred_fallthru
        _
      // Predicated region
      $region60: #{encoder_forward.13} parent=54 // pred_check
        %p534 = pneg %p180
      $region61: #{encoder_forward.13} parent=54 // pred_check_branch
        %536 = sbr.rel (%p534) target = $region63
      $region62: #{encoder_forward.13} parent=54 // pred_region
        %p537 = scmp.lt.s32.totalorder %s22, 1
        %s538 = scalar_select %p537, %s22, 1
        %s539 = smul.addr %s538, 2
        %s540 = scalar_lea.vmem %s4, %s539
      $region63: #{encoder_forward.13} parent=54 // pred_fallthru
        _
    $region55: #{encoder_forward.13} parent=5 // pred_fallthru
      _
  $region6: #{encoder_forward.13} parent=0 // loop_footer
    %s15 = sadd.s32 1, %s11
  $region7: #{encoder_forward.13} parent=0 // loop_footer_branch
    %10 = sbr.rel target = $region3
  $region8: #{encoder_forward.13} parent=0 // loop_exit
    _

</llo_original>
